<compile_context>
chip_gen: v6e
topology: v6e:2x2x1
jax: 0.10.0
libtpu: 0.0.40
codegen_flags: <defaults>
</compile_context>

<pallas_src>
import jax
import jax.numpy as jnp
import numpy as np
from jax.experimental import pallas as pl
from jax.experimental.pallas import tpu as pltpu

# ---------------- config (small, consistent with the module) ----------------
CHANNELS = 4            # DenseGrid_MLP output channels
MID_CHANNELS = 16       # config.mid_channels (grid feature channels)
N_NEURONS = 32          # config.n_neurons
N_HIDDEN_LAYERS = 2     # config.n_hidden_layers  -> weights: in->32, 32->32, 32->out
WORLD_SIZE = (8, 8, 8)  # grid spatial size (S0, S1, S2) = world (x, y, z)
XYZ_MIN = (-1.0, -1.2, -0.8)
XYZ_MAX = (1.1, 0.9, 1.3)

S0, S1, S2 = WORLD_SIZE
NXY = S0 * S1                   # 64  : xy one-hot width
KZ = S2 * MID_CHANNELS          # 128 : z-major feature slab width

TILE_UNIT = 256
TILE_MAX = 1024                 # sweepable; 1024 amortizes the ~0.35us/step overhead well


# ------------------------------- kernel -------------------------------------
def _densegrid_mlp_kernel(xyz_ref, coef_ref, zmap_ref, tab_ref, rw0_ref, w1_ref, wo_ref,
                          out_ref):
    xyz = xyz_ref[...]                                              # (T, 3) f32
    coef = coef_ref[...]                                            # (3, 3) f32
    lo = coef[0:1, :]                                               # xyz_min
    scale = coef[1:2, :]                                            # (size-1)/(xyz_max-xyz_min)
    hi = coef[2:3, :]                                               # size-1

    # align_corners=True unnormalize + border clamp, all 3 axes vectorized.
    ix = jnp.clip((xyz - lo) * scale, 0.0, hi)                      # (T, 3) float voxel coords
    i0f = jnp.floor(ix)
    fr = ix - i0f                                                   # upper-corner weight; EXACTLY 0.0
    i0 = i0f.astype(jnp.int32)                                      # at clamped borders (see invariant)

    x0 = i0[:, 0:1]; y0 = i0[:, 1:2]; z0 = i0[:, 2:3]               # (T, 1) int32
    fx = fr[:, 0:1]; fy = fr[:, 1:2]; fz = fr[:, 2:3]               # (T, 1) f32
    gx = 1.0 - fx;   gy = 1.0 - fy;   gz = 1.0 - fz

    # ---- stage 1: weighted xy one-hot (T, S0*S1), 4 bilinear corners ----
    # Single broadcast: d = lane - base, then compares against int constants.
    base = x0 * S1 + y0                                             # (T, 1) int32
    lane = jax.lax.broadcasted_iota(jnp.int32, (1, NXY), 1)
    d = lane - base                                                 # (T, NXY) int32
    scat = jnp.where(d == 0,      gx * gy, 0.0)
    scat = jnp.where(d == 1,      gx * fy, scat)
    scat = jnp.where(d == S1,     fx * gy, scat)
    scat = jnp.where(d == S1 + 1, fx * fy, scat)                    # (T, NXY) f32

    # xy gather on the MXU: per point, the C_mid features at all S2 z-levels.
    part = jnp.dot(scat, tab_ref[...], preferred_element_type=jnp.float32)   # (T, KZ)

    # ---- stage 2: z interpolation as a lane select, then fused (sum over z) @ w0 ----
    # zmap lane j holds z = j // C_mid (precomputed host-side; avoids in-kernel integer division).
    dz = zmap_ref[...] - z0                                         # (T, KZ) int32, single broadcast
    zsel = jnp.where(dz == 0, gz, 0.0)
    zsel = jnp.where(dz == 1, fz, zsel)                             # (T, KZ) f32

    # rw0 = tile(w0, (S2, 1)): one MXU matmul performs both the sum over z and the first MLP layer
    # (valid because everything before the first ReLU is linear and bias-free).
    h = jnp.dot(part * zsel, rw0_ref[...], preferred_element_type=jnp.float32)  # (T, N_NEURONS)
    h = jnp.maximum(h, 0.0)
    h = jnp.maximum(jnp.dot(h, w1_ref[...], preferred_element_type=jnp.float32), 0.0)
    out_ref[...] = jnp.dot(h, wo_ref[...], preferred_element_type=jnp.float32)


# ------------------------------- wrapper -------------------------------------
def _pick_tile(n):
    """Largest tile <= TILE_MAX that keeps >=2 grid steps when possible (v7x megacore)."""
    n_unit = ((n + TILE_UNIT - 1) // TILE_UNIT) * TILE_UNIT
    if n_unit >= 2 * TILE_MAX:
        return TILE_MAX
    if n_unit >= 2 * TILE_UNIT:
        return max(TILE_UNIT, min(TILE_MAX, ((n_unit // 2) // TILE_UNIT) * TILE_UNIT))
    return TILE_UNIT


@jax.jit
def densegrid_mlp_forward(xyz, grid_param, w0, w1, wo):
    """xyz: (..., 3) f32; grid_param: (1, C_mid, S0, S1, S2); returns (..., CHANNELS)."""
    shape = xyz.shape[:-1]
    xyz_flat = xyz.reshape(-1, 3).astype(jnp.float32)
    n = xyz_flat.shape[0]

    tile = _pick_tile(n)
    n_pad = ((n + tile - 1) // tile) * tile
    if n_pad != n:
        xyz_flat = jnp.pad(xyz_flat, ((0, n_pad - n), (0, 0)))

    # normalization constants passed as data (kernels may not capture array constants)
    lo = jnp.asarray(XYZ_MIN, jnp.float32)
    hi = jnp.asarray(XYZ_MAX, jnp.float32)
    sizes_m1 = jnp.asarray([S0 - 1.0, S1 - 1.0, S2 - 1.0], jnp.float32)
    coef = jnp.stack([lo, sizes_m1 / (hi - lo), sizes_m1], axis=0)          # (3, 3)
    zmap = (jnp.arange(KZ, dtype=jnp.int32) // MID_CHANNELS).reshape(1, KZ)  # (1, KZ)

    # (1, C, S0, S1, S2) -> (S0*S1, S2*C): row = x*S1 + y, col = z*C + c
    tab = jnp.transpose(grid_param[0].astype(jnp.float32), (1, 2, 3, 0)).reshape(NXY, KZ)
    # fold the first (linear, bias-free) MLP layer into the z-group reduction matmul
    rw0 = jnp.tile(w0.astype(jnp.float32), (S2, 1))                          # (S2*C_mid, N_NEURONS)

    out = pl.pallas_call(
        _densegrid_mlp_kernel,
        out_shape=jax.ShapeDtypeStruct((n_pad, CHANNELS), jnp.float32),
        grid_spec=pltpu.PrefetchScalarGridSpec(
            num_scalar_prefetch=0,
            grid=(n_pad // tile,),
            in_specs=[
                pl.BlockSpec((tile, 3), lambda i: (i, 0)),
                pl.BlockSpec((3, 3), lambda i: (0, 0)),
                pl.BlockSpec((1, KZ), lambda i: (0, 0)),
                pl.BlockSpec((NXY, KZ), lambda i: (0, 0)),
                pl.BlockSpec((KZ, N_NEURONS), lambda i: (0, 0)),
                pl.BlockSpec((N_NEURONS, N_NEURONS), lambda i: (0, 0)),
                pl.BlockSpec((N_NEURONS, CHANNELS), lambda i: (0, 0)),
            ],
            out_specs=pl.BlockSpec((tile, CHANNELS), lambda i: (i, 0)),
        ),
        compiler_params=pltpu.CompilerParams(dimension_semantics=("parallel",)),
    )(xyz_flat, coef, zmap, tab, rw0, w1.astype(jnp.float32), wo.astype(jnp.float32))

    out = out[:n].reshape(*shape, CHANNELS)
    if CHANNELS == 1:
        out = out.squeeze(-1)
    return out


# --------------------------- pure-JAX reference -------------------------------
def _ref_forward(xyz, grid_param, w0, w1, wo):
    shape = xyz.shape[:-1]
    p = xyz.reshape(-1, 3).astype(jnp.float32)
    vox = grid_param[0]  # (C, S0, S1, S2)
    lo = jnp.array(XYZ_MIN, jnp.float32)
    hi = jnp.array(XYZ_MAX, jnp.float32)
    sizes = jnp.array(WORLD_SIZE, jnp.float32)
    ix = jnp.clip((p - lo) / (hi - lo) * (sizes - 1.0), 0.0, sizes - 1.0)
    i0 = jnp.floor(ix)
    i1 = jnp.minimum(i0 + 1.0, sizes - 1.0)
    f = ix - i0
    i0 = i0.astype(jnp.int32)
    i1 = i1.astype(jnp.int32)
    feat = jnp.zeros((p.shape[0], MID_CHANNELS), jnp.float32)
    for xi, wx in ((i0[:, 0], 1 - f[:, 0]), (i1[:, 0], f[:, 0])):
        for yi, wy in ((i0[:, 1], 1 - f[:, 1]), (i1[:, 1], f[:, 1])):
            for zi, wz in ((i0[:, 2], 1 - f[:, 2]), (i1[:, 2], f[:, 2])):
                corner = vox[:, xi, yi, zi].T  # (N, C)
                feat = feat + (wx * wy * wz)[:, None] * corner
    h = jnp.maximum(feat @ w0, 0.0)
    h = jnp.maximum(h @ w1, 0.0)
    out = h @ wo
    return out.reshape(*shape, CHANNELS)


# --------------------------------- main ---------------------------------------
if __name__ == "__main__":
    key = jax.random.PRNGKey(0)
    k_xyz, k_grid, k0, k1, k2 = jax.random.split(key, 5)

    # queries (xyz.shape[:-1] = (4, 250) -> 1000 points: exercises padding to 1024 and a 2-tile grid)
    xyz = jax.random.uniform(k_xyz, (4, 250, 3), jnp.float32, minval=-1.4, maxval=1.4)

    # deterministic synthetic parameters (module inits grid to zeros / mlp uniform;
    # we use random values so the test is non-trivial)
    grid_param = jax.random.normal(k_grid, (1, MID_CHANNELS, S0, S1, S2), jnp.float32)
    bd = 1.0 / np.sqrt(N_NEURONS)
    w0 = jax.random.uniform(k0, (MID_CHANNELS, N_NEURONS), jnp.float32, -bd, bd)
    w1 = jax.random.uniform(k1, (N_NEURONS, N_NEURONS), jnp.float32, -bd, bd)
    wo = jax.random.uniform(k2, (N_NEURONS, CHANNELS), jnp.float32, -bd, bd)

    out = densegrid_mlp_forward(xyz, grid_param, w0, w1, wo)
    out = jax.block_until_ready(out)

    ref = _ref_forward(xyz, grid_param, w0, w1, wo)
    assert out.shape == (4, 250, CHANNELS), out.shape
    np.testing.assert_allclose(np.asarray(out), np.asarray(ref), rtol=1e-4, atol=1e-4)

    # TODO(synk): the with_grad / GeoGridGradientSample second-derivative path (custom CUDA op) is
    # not part of this forward pass and is not implemented.
    print("KERNEL_OK")
</pallas_src>

<mosaic_0001>
module attributes {stable_mosaic.version = 11 : i64} {
  func.func @_densegrid_mlp_kernel(%arg0: i32, %arg1: memref<512x3xf32, #tpu.memory_space<vmem>>, %arg2: memref<3x3xf32, #tpu.memory_space<vmem>>, %arg3: memref<1x128xi32, #tpu.memory_space<vmem>>, %arg4: memref<64x128xf32, #tpu.memory_space<vmem>>, %arg5: memref<128x32xf32, #tpu.memory_space<vmem>>, %arg6: memref<32x32xf32, #tpu.memory_space<vmem>>, %arg7: memref<32x4xf32, #tpu.memory_space<vmem>>, %arg8: memref<512x4xf32, #tpu.memory_space<vmem>>) attributes {dimension_semantics = [#tpu.dimension_semantics<parallel>], iteration_bounds = array<i64: 2>, scalar_prefetch = 0 : i64, scratch_operands = 0 : i64, tpu.core_type = #tpu.core_type<tc>, window_params = [{transform_indices = @transform_0, window_bounds = array<i64: 512, 3>}, {pipeline_mode = #tpu.pipeline_mode<synchronous>, transform_indices = @transform_1, window_bounds = array<i64: 3, 3>}, {pipeline_mode = #tpu.pipeline_mode<synchronous>, transform_indices = @transform_2, window_bounds = array<i64: 1, 128>}, {pipeline_mode = #tpu.pipeline_mode<synchronous>, transform_indices = @transform_3, window_bounds = array<i64: 64, 128>}, {pipeline_mode = #tpu.pipeline_mode<synchronous>, transform_indices = @transform_4, window_bounds = array<i64: 128, 32>}, {pipeline_mode = #tpu.pipeline_mode<synchronous>, transform_indices = @transform_5, window_bounds = array<i64: 32, 32>}, {pipeline_mode = #tpu.pipeline_mode<synchronous>, transform_indices = @transform_6, window_bounds = array<i64: 32, 4>}, {transform_indices = @transform_7, window_bounds = array<i64: 512, 4>}]} {
    %c0 = arith.constant 0 : index
    %c0_0 = arith.constant 0 : index
    %0 = vector.load %arg1[%c0, %c0_0] : memref<512x3xf32, #tpu.memory_space<vmem>>, vector<512x3xf32>
    %c0_1 = arith.constant 0 : index
    %c0_2 = arith.constant 0 : index
    %1 = vector.load %arg2[%c0_1, %c0_2] : memref<3x3xf32, #tpu.memory_space<vmem>>, vector<3x3xf32>
    %2 = vector.extract_strided_slice %1 {offsets = [0, 0], sizes = [1, 3], strides = [1, 1]} : vector<3x3xf32> to vector<1x3xf32>
    %3 = vector.extract_strided_slice %1 {offsets = [1, 0], sizes = [1, 3], strides = [1, 1]} : vector<3x3xf32> to vector<1x3xf32>
    %4 = vector.extract_strided_slice %1 {offsets = [2, 0], sizes = [1, 3], strides = [1, 1]} : vector<3x3xf32> to vector<1x3xf32>
    %5 = vector.broadcast %2 : vector<1x3xf32> to vector<512x3xf32>
    %6 = arith.subf %0, %5 : vector<512x3xf32>
    %7 = vector.broadcast %3 : vector<1x3xf32> to vector<512x3xf32>
    %8 = arith.mulf %6, %7 : vector<512x3xf32>
    %cst = arith.constant 0.000000e+00 : f32
    %9 = vector.broadcast %cst : f32 to vector<512x3xf32>
    %10 = arith.maximumf %9, %8 : vector<512x3xf32>
    %11 = vector.broadcast %4 : vector<1x3xf32> to vector<512x3xf32>
    %12 = arith.minimumf %11, %10 : vector<512x3xf32>
    %13 = math.floor %12 : vector<512x3xf32>
    %14 = arith.subf %12, %13 : vector<512x3xf32>
    %15 = arith.fptosi %13 : vector<512x3xf32> to vector<512x3xi32>
    %16 = vector.extract_strided_slice %15 {offsets = [0, 0], sizes = [512, 1], strides = [1, 1]} : vector<512x3xi32> to vector<512x1xi32>
    %17 = vector.extract_strided_slice %15 {offsets = [0, 1], sizes = [512, 1], strides = [1, 1]} : vector<512x3xi32> to vector<512x1xi32>
    %18 = vector.extract_strided_slice %15 {offsets = [0, 2], sizes = [512, 1], strides = [1, 1]} : vector<512x3xi32> to vector<512x1xi32>
    %19 = vector.extract_strided_slice %14 {offsets = [0, 0], sizes = [512, 1], strides = [1, 1]} : vector<512x3xf32> to vector<512x1xf32>
    %20 = vector.extract_strided_slice %14 {offsets = [0, 1], sizes = [512, 1], strides = [1, 1]} : vector<512x3xf32> to vector<512x1xf32>
    %21 = vector.extract_strided_slice %14 {offsets = [0, 2], sizes = [512, 1], strides = [1, 1]} : vector<512x3xf32> to vector<512x1xf32>
    %cst_3 = arith.constant 1.000000e+00 : f32
    %22 = vector.broadcast %cst_3 : f32 to vector<512x1xf32>
    %23 = arith.subf %22, %19 : vector<512x1xf32>
    %cst_4 = arith.constant 1.000000e+00 : f32
    %24 = vector.broadcast %cst_4 : f32 to vector<512x1xf32>
    %25 = arith.subf %24, %20 : vector<512x1xf32>
    %cst_5 = arith.constant 1.000000e+00 : f32
    %26 = vector.broadcast %cst_5 : f32 to vector<512x1xf32>
    %27 = arith.subf %26, %21 : vector<512x1xf32>
    %c8_i32 = arith.constant 8 : i32
    %28 = vector.broadcast %c8_i32 : i32 to vector<512x1xi32>
    %29 = arith.muli %16, %28 : vector<512x1xi32>
    %30 = arith.addi %29, %17 : vector<512x1xi32>
    %31 = tpu.iota {dimensions = array<i32: 1>} : vector<1x64xi32>
    %32 = vector.broadcast %31 : vector<1x64xi32> to vector<512x64xi32>
    %33 = vector.broadcast %30 : vector<512x1xi32> to vector<512x64xi32>
    %34 = arith.subi %32, %33 : vector<512x64xi32>
    %c0_i32 = arith.constant 0 : i32
    %35 = vector.broadcast %c0_i32 : i32 to vector<512x64xi32>
    %36 = arith.cmpi eq, %34, %35 : vector<512x64xi32>
    %37 = arith.mulf %23, %25 : vector<512x1xf32>
    %cst_6 = arith.constant 0.000000e+00 : f32
    %38 = vector.shape_cast %37 : vector<512x1xf32> to vector<512x1xf32>
    %39 = vector.broadcast %38 : vector<512x1xf32> to vector<512x64xf32>
    %40 = vector.broadcast %cst_6 : f32 to vector<512x64xf32>
    %41 = arith.select %36, %39, %40 : vector<512x64xi1>, vector<512x64xf32>
    %c1_i32 = arith.constant 1 : i32
    %42 = vector.broadcast %c1_i32 : i32 to vector<512x64xi32>
    %43 = arith.cmpi eq, %34, %42 : vector<512x64xi32>
    %44 = arith.mulf %23, %20 : vector<512x1xf32>
    %45 = vector.shape_cast %44 : vector<512x1xf32> to vector<512x1xf32>
    %46 = vector.broadcast %45 : vector<512x1xf32> to vector<512x64xf32>
    %47 = arith.select %43, %46, %41 : vector<512x64xi1>, vector<512x64xf32>
    %c8_i32_7 = arith.constant 8 : i32
    %48 = vector.broadcast %c8_i32_7 : i32 to vector<512x64xi32>
    %49 = arith.cmpi eq, %34, %48 : vector<512x64xi32>
    %50 = arith.mulf %19, %25 : vector<512x1xf32>
    %51 = vector.shape_cast %50 : vector<512x1xf32> to vector<512x1xf32>
    %52 = vector.broadcast %51 : vector<512x1xf32> to vector<512x64xf32>
    %53 = arith.select %49, %52, %47 : vector<512x64xi1>, vector<512x64xf32>
    %c9_i32 = arith.constant 9 : i32
    %54 = vector.broadcast %c9_i32 : i32 to vector<512x64xi32>
    %55 = arith.cmpi eq, %34, %54 : vector<512x64xi32>
    %56 = arith.mulf %19, %20 : vector<512x1xf32>
    %57 = vector.shape_cast %56 : vector<512x1xf32> to vector<512x1xf32>
    %58 = vector.broadcast %57 : vector<512x1xf32> to vector<512x64xf32>
    %59 = arith.select %55, %58, %53 : vector<512x64xi1>, vector<512x64xf32>
    %c0_8 = arith.constant 0 : index
    %c0_9 = arith.constant 0 : index
    %60 = vector.load %arg4[%c0_8, %c0_9] : memref<64x128xf32, #tpu.memory_space<vmem>>, vector<64x128xf32>
    %cst_10 = arith.constant dense<0.000000e+00> : vector<512x128xf32>
    %61 = tpu.matmul %59, %60, %cst_10 {dimension_numbers = #tpu.dot_dimension_numbers<[1], [0], [0], [1], [0, 0, 1, 1], [], []>} : vector<512x64xf32>, vector<64x128xf32>, vector<512x128xf32> -> vector<512x128xf32>
    %c0_11 = arith.constant 0 : index
    %c0_12 = arith.constant 0 : index
    %62 = vector.load %arg3[%c0_11, %c0_12] : memref<1x128xi32, #tpu.memory_space<vmem>>, vector<1x128xi32>
    %63 = vector.broadcast %62 : vector<1x128xi32> to vector<512x128xi32>
    %64 = vector.broadcast %18 : vector<512x1xi32> to vector<512x128xi32>
    %65 = arith.subi %63, %64 : vector<512x128xi32>
    %c0_i32_13 = arith.constant 0 : i32
    %66 = vector.broadcast %c0_i32_13 : i32 to vector<512x128xi32>
    %67 = arith.cmpi eq, %65, %66 : vector<512x128xi32>
    %cst_14 = arith.constant 0.000000e+00 : f32
    %68 = vector.shape_cast %27 : vector<512x1xf32> to vector<512x1xf32>
    %69 = vector.broadcast %68 : vector<512x1xf32> to vector<512x128xf32>
    %70 = vector.broadcast %cst_14 : f32 to vector<512x128xf32>
    %71 = arith.select %67, %69, %70 : vector<512x128xi1>, vector<512x128xf32>
    %c1_i32_15 = arith.constant 1 : i32
    %72 = vector.broadcast %c1_i32_15 : i32 to vector<512x128xi32>
    %73 = arith.cmpi eq, %65, %72 : vector<512x128xi32>
    %74 = vector.shape_cast %21 : vector<512x1xf32> to vector<512x1xf32>
    %75 = vector.broadcast %74 : vector<512x1xf32> to vector<512x128xf32>
    %76 = arith.select %73, %75, %71 : vector<512x128xi1>, vector<512x128xf32>
    %77 = arith.mulf %61, %76 : vector<512x128xf32>
    %c0_16 = arith.constant 0 : index
    %c0_17 = arith.constant 0 : index
    %78 = vector.load %arg5[%c0_16, %c0_17] : memref<128x32xf32, #tpu.memory_space<vmem>>, vector<128x32xf32>
    %cst_18 = arith.constant dense<0.000000e+00> : vector<512x32xf32>
    %79 = tpu.matmul %77, %78, %cst_18 {dimension_numbers = #tpu.dot_dimension_numbers<[1], [0], [0], [1], [0, 0, 1, 1], [], []>} : vector<512x128xf32>, vector<128x32xf32>, vector<512x32xf32> -> vector<512x32xf32>
    %cst_19 = arith.constant 0.000000e+00 : f32
    %80 = vector.broadcast %cst_19 : f32 to vector<512x32xf32>
    %81 = arith.maximumf %79, %80 : vector<512x32xf32>
    %c0_20 = arith.constant 0 : index
    %c0_21 = arith.constant 0 : index
    %82 = vector.load %arg6[%c0_20, %c0_21] : memref<32x32xf32, #tpu.memory_space<vmem>>, vector<32x32xf32>
    %cst_22 = arith.constant dense<0.000000e+00> : vector<512x32xf32>
    %83 = tpu.matmul %81, %82, %cst_22 {dimension_numbers = #tpu.dot_dimension_numbers<[1], [0], [0], [1], [0, 0, 1, 1], [], []>} : vector<512x32xf32>, vector<32x32xf32>, vector<512x32xf32> -> vector<512x32xf32>
    %cst_23 = arith.constant 0.000000e+00 : f32
    %84 = vector.broadcast %cst_23 : f32 to vector<512x32xf32>
    %85 = arith.maximumf %83, %84 : vector<512x32xf32>
    %c0_24 = arith.constant 0 : index
    %c0_25 = arith.constant 0 : index
    %86 = vector.load %arg7[%c0_24, %c0_25] : memref<32x4xf32, #tpu.memory_space<vmem>>, vector<32x4xf32>
    %cst_26 = arith.constant dense<0.000000e+00> : vector<512x4xf32>
    %87 = tpu.matmul %85, %86, %cst_26 {dimension_numbers = #tpu.dot_dimension_numbers<[1], [0], [0], [1], [0, 0, 1, 1], [], []>} : vector<512x32xf32>, vector<32x4xf32>, vector<512x4xf32> -> vector<512x4xf32>
    %c0_27 = arith.constant 0 : index
    %c0_28 = arith.constant 0 : index
    %88 = vector.load %arg8[%c0_27, %c0_28] : memref<512x4xf32, #tpu.memory_space<vmem>>, vector<512x4xf32>
    tpu.vector_store %arg8[%c0_27, %c0_28], %87 {strides = array<i32>} : memref<512x4xf32, #tpu.memory_space<vmem>>, vector<512x4xf32>,
    return
  }
  func.func @transform_0(%arg0: i32) -> (i32, i32) {
    %c0_i32 = arith.constant 0 : i32
    %c0_i32_0 = arith.constant 0 : i32
    return %arg0, %c0_i32 : i32, i32
  }
  func.func @transform_1(%arg0: i32) -> (i32, i32) {
    %c0_i32 = arith.constant 0 : i32
    %c0_i32_0 = arith.constant 0 : i32
    %c0_i32_1 = arith.constant 0 : i32
    return %c0_i32, %c0_i32_0 : i32, i32
  }
  func.func @transform_2(%arg0: i32) -> (i32, i32) {
    %c0_i32 = arith.constant 0 : i32
    %c0_i32_0 = arith.constant 0 : i32
    %c0_i32_1 = arith.constant 0 : i32
    return %c0_i32, %c0_i32_0 : i32, i32
  }
  func.func @transform_3(%arg0: i32) -> (i32, i32) {
    %c0_i32 = arith.constant 0 : i32
    %c0_i32_0 = arith.constant 0 : i32
    %c0_i32_1 = arith.constant 0 : i32
    return %c0_i32, %c0_i32_0 : i32, i32
  }
  func.func @transform_4(%arg0: i32) -> (i32, i32) {
    %c0_i32 = arith.constant 0 : i32
    %c0_i32_0 = arith.constant 0 : i32
    %c0_i32_1 = arith.constant 0 : i32
    return %c0_i32, %c0_i32_0 : i32, i32
  }
  func.func @transform_5(%arg0: i32) -> (i32, i32) {
    %c0_i32 = arith.constant 0 : i32
    %c0_i32_0 = arith.constant 0 : i32
    %c0_i32_1 = arith.constant 0 : i32
    return %c0_i32, %c0_i32_0 : i32, i32
  }
  func.func @transform_6(%arg0: i32) -> (i32, i32) {
    %c0_i32 = arith.constant 0 : i32
    %c0_i32_0 = arith.constant 0 : i32
    %c0_i32_1 = arith.constant 0 : i32
    return %c0_i32, %c0_i32_0 : i32, i32
  }
  func.func @transform_7(%arg0: i32) -> (i32, i32) {
    %c0_i32 = arith.constant 0 : i32
    %c0_i32_0 = arith.constant 0 : i32
    return %arg0, %c0_i32 : i32, i32
  }
}

</mosaic_0001>

<llo_original>
// kernel: densegrid_mlp_forward.1
$region0: #{densegrid_mlp_forward.1}
  #allocation0 [shape = 'u32[]', space=smem, size = 0x4, offset = 0x4, fixed_abs, tag = 'smem constant byte address 0x4 - core index']
  #allocation1 [shape = 'u32[144,128]{1,0:T(1,128)}', space=vmem, size = 0x12000, scoped, tag = 'internal scratch']
  %s0 = inlined_call_operand.vmem [shape: f32[1024,3], index: 0, kind: input, shape index: {}]
  %s1 = inlined_call_operand.vmem [shape: f32[3,3], index: 1, kind: input, shape index: {}]
  %s2 = inlined_call_operand.vmem [shape: s32[1,128], index: 2, kind: input, shape index: {}]
  %s3 = inlined_call_operand.vmem [shape: f32[64,128], index: 3, kind: input, shape index: {}]
  %s4 = inlined_call_operand.vmem [shape: f32[128,32], index: 4, kind: input, shape index: {}]
  %s5 = inlined_call_operand.vmem [shape: f32[32,32], index: 5, kind: input, shape index: {}]
  %s6 = inlined_call_operand.vmem [shape: f32[32,4], index: 6, kind: input, shape index: {}]
  %s7 = inlined_call_operand.vmem [shape: f32[1024,4], index: 7, kind: output, shape index: {}]
  %s8 = sld [smem:[#allocation0]]
  $region61: #{densegrid_mlp_forward.1} parent=0
    _
  %s10 = ssub.s32 1, %s8
  %s11 = scalar_select 0, %s10, %s8
  loop: start=0, step=1, limit=4
  $region2: #{densegrid_mlp_forward.1} parent=0 // loop_pre_header
    _
  $region3: #{densegrid_mlp_forward.1} parent=0 // loop_header
    %s13 = sphi 0, %s17
    %p14 = scmp.ge.s32.totalorder %s13, 4
    %s23 = sphi 0, %s25
    %s26 = sphi 0, %s23
    %s27 = sphi 0, %s26
    %s43 = sphi 0, %s27
    %s47 = sphi 0, %s47
    %s49 = sphi 0, %s47
    %s50 = sphi 0, %s49
    %s64 = sphi 0, %s50
    %s68 = sphi 0, %s68
    %s70 = sphi 0, %s68
    %s71 = sphi 0, %s70
    %s85 = sphi 0, %s71
    %s89 = sphi 0, %s89
    %s91 = sphi 0, %s89
    %s92 = sphi 0, %s91
    %s106 = sphi 0, %s92
    %s110 = sphi 0, %s110
    %s112 = sphi 0, %s110
    %s113 = sphi 0, %s112
    %s127 = sphi 0, %s113
    %s131 = sphi 0, %s131
    %s133 = sphi 0, %s131
    %s134 = sphi 0, %s133
    %s148 = sphi 0, %s134
    %s152 = sphi 0, %s152
    %s154 = sphi 0, %s152
    %s155 = sphi 0, %s154
    %s169 = sphi 0, %s155
    %s175 = sphi 0, %s177
    %s178 = sphi 0, %s175
    %s179 = sphi 0, %s178
    %s195 = sphi 0, %s179
  $region4: #{densegrid_mlp_forward.1} parent=0 // loop_header_branch
    %16 = sbr.rel (%p14) target = $region8
  $region5: #{densegrid_mlp_forward.1} parent=0 // loop_body
    %s18 = ssub.s32 %s13, 1
    %s19 = ssub.s32 %s13, 2
    %s20 = sadd.s32 %s13, 1
    %s21 = ssub.s32 %s13, %s20
    %p22 = scmp.eq.s32.totalorder %s21, 0
    %s24 = sadd.s32 %s23, 1
    %s25 = scalar_select %p22, %s23, %s24
    %p28 = pneg %p22
    %p29 = scmp.eq.s32.totalorder %s13, 1
    %p30 = por %p28, %p29
    %p31 = scmp.ne.s32.totalorder %s23, %s26
    %p32 = scmp.eq.s32.totalorder %s13, 0
    %p33 = por %p31, %p32
    %p34 = scmp.ne.s32.totalorder %s23, %s26
    %p35 = scmp.eq.s32.totalorder %s18, 1
    %p36 = por %p34, %p35
    %p37 = scmp.ne.s32.totalorder %s26, %s27
    %p38 = scmp.eq.s32.totalorder %s18, 0
    %p39 = por %p37, %p38
    %p40 = scmp.ne.s32.totalorder %s26, %s27
    %p41 = scmp.eq.s32.totalorder %s19, 1
    %p42 = por %p40, %p41
    %p44 = scmp.ne.s32.totalorder %s27, %s43
    %p45 = scmp.eq.s32.totalorder %s19, 0
    %p46 = por %p44, %p45
    %s48 = sadd.s32 %s47, 1
    %p51 = scmp.eq.s32.totalorder %s13, 1
    %p52 = scmp.ne.s32.totalorder %s47, %s49
    %p53 = scmp.eq.s32.totalorder %s13, 0
    %p54 = por %p52, %p53
    %p55 = scmp.ne.s32.totalorder %s47, %s49
    %p56 = scmp.eq.s32.totalorder %s18, 1
    %p57 = por %p55, %p56
    %p58 = scmp.ne.s32.totalorder %s49, %s50
    %p59 = scmp.eq.s32.totalorder %s18, 0
    %p60 = por %p58, %p59
    %p61 = scmp.ne.s32.totalorder %s49, %s50
    %p62 = scmp.eq.s32.totalorder %s19, 1
    %p63 = por %p61, %p62
    %p65 = scmp.ne.s32.totalorder %s50, %s64
    %p66 = scmp.eq.s32.totalorder %s19, 0
    %p67 = por %p65, %p66
    %s69 = sadd.s32 %s68, 1
    %p72 = scmp.eq.s32.totalorder %s13, 1
    %p73 = scmp.ne.s32.totalorder %s68, %s70
    %p74 = scmp.eq.s32.totalorder %s13, 0
    %p75 = por %p73, %p74
    %p76 = scmp.ne.s32.totalorder %s68, %s70
    %p77 = scmp.eq.s32.totalorder %s18, 1
    %p78 = por %p76, %p77
    %p79 = scmp.ne.s32.totalorder %s70, %s71
    %p80 = scmp.eq.s32.totalorder %s18, 0
    %p81 = por %p79, %p80
    %p82 = scmp.ne.s32.totalorder %s70, %s71
    %p83 = scmp.eq.s32.totalorder %s19, 1
    %p84 = por %p82, %p83
    %p86 = scmp.ne.s32.totalorder %s71, %s85
    %p87 = scmp.eq.s32.totalorder %s19, 0
    %p88 = por %p86, %p87
    %s90 = sadd.s32 %s89, 1
    %p93 = scmp.eq.s32.totalorder %s13, 1
    %p94 = scmp.ne.s32.totalorder %s89, %s91
    %p95 = scmp.eq.s32.totalorder %s13, 0
    %p96 = por %p94, %p95
    %p97 = scmp.ne.s32.totalorder %s89, %s91
    %p98 = scmp.eq.s32.totalorder %s18, 1
    %p99 = por %p97, %p98
    %p100 = scmp.ne.s32.totalorder %s91, %s92
    %p101 = scmp.eq.s32.totalorder %s18, 0
    %p102 = por %p100, %p101
    %p103 = scmp.ne.s32.totalorder %s91, %s92
    %p104 = scmp.eq.s32.totalorder %s19, 1
    %p105 = por %p103, %p104
    %p107 = scmp.ne.s32.totalorder %s92, %s106
    %p108 = scmp.eq.s32.totalorder %s19, 0
    %p109 = por %p107, %p108
    %s111 = sadd.s32 %s110, 1
    %p114 = scmp.eq.s32.totalorder %s13, 1
    %p115 = scmp.ne.s32.totalorder %s110, %s112
    %p116 = scmp.eq.s32.totalorder %s13, 0
    %p117 = por %p115, %p116
    %p118 = scmp.ne.s32.totalorder %s110, %s112
    %p119 = scmp.eq.s32.totalorder %s18, 1
    %p120 = por %p118, %p119
    %p121 = scmp.ne.s32.totalorder %s112, %s113
    %p122 = scmp.eq.s32.totalorder %s18, 0
    %p123 = por %p121, %p122
    %p124 = scmp.ne.s32.totalorder %s112, %s113
    %p125 = scmp.eq.s32.totalorder %s19, 1
    %p126 = por %p124, %p125
    %p128 = scmp.ne.s32.totalorder %s113, %s127
    %p129 = scmp.eq.s32.totalorder %s19, 0
    %p130 = por %p128, %p129
    %s132 = sadd.s32 %s131, 1
    %p135 = scmp.eq.s32.totalorder %s13, 1
    %p136 = scmp.ne.s32.totalorder %s131, %s133
    %p137 = scmp.eq.s32.totalorder %s13, 0
    %p138 = por %p136, %p137
    %p139 = scmp.ne.s32.totalorder %s131, %s133
    %p140 = scmp.eq.s32.totalorder %s18, 1
    %p141 = por %p139, %p140
    %p142 = scmp.ne.s32.totalorder %s133, %s134
    %p143 = scmp.eq.s32.totalorder %s18, 0
    %p144 = por %p142, %p143
    %p145 = scmp.ne.s32.totalorder %s133, %s134
    %p146 = scmp.eq.s32.totalorder %s19, 1
    %p147 = por %p145, %p146
    %p149 = scmp.ne.s32.totalorder %s134, %s148
    %p150 = scmp.eq.s32.totalorder %s19, 0
    %p151 = por %p149, %p150
    %s153 = sadd.s32 %s152, 1
    %p156 = scmp.eq.s32.totalorder %s13, 1
    %p157 = scmp.ne.s32.totalorder %s152, %s154
    %p158 = scmp.eq.s32.totalorder %s13, 0
    %p159 = por %p157, %p158
    %p160 = scmp.ne.s32.totalorder %s152, %s154
    %p161 = scmp.eq.s32.totalorder %s18, 1
    %p162 = por %p160, %p161
    %p163 = scmp.ne.s32.totalorder %s154, %s155
    %p164 = scmp.eq.s32.totalorder %s18, 0
    %p165 = por %p163, %p164
    %p166 = scmp.ne.s32.totalorder %s154, %s155
    %p167 = scmp.eq.s32.totalorder %s19, 1
    %p168 = por %p166, %p167
    %p170 = scmp.ne.s32.totalorder %s155, %s169
    %p171 = scmp.eq.s32.totalorder %s19, 0
    %p172 = por %p170, %p171
    %s173 = ssub.s32 %s13, %s20
    %p174 = scmp.eq.s32.totalorder %s173, 0
    %s176 = sadd.s32 %s175, 1
    %s177 = scalar_select %p174, %s175, %s176
    %p180 = pneg %p174
    %p181 = scmp.eq.s32.totalorder %s13, 1
    %p182 = por %p180, %p181
    %p183 = scmp.ne.s32.totalorder %s175, %s178
    %p184 = scmp.eq.s32.totalorder %s13, 0
    %p185 = por %p183, %p184
    %p186 = scmp.ne.s32.totalorder %s175, %s178
    %p187 = scmp.eq.s32.totalorder %s18, 1
    %p188 = por %p186, %p187
    %p189 = scmp.ne.s32.totalorder %s178, %s179
    %p190 = scmp.eq.s32.totalorder %s18, 0
    %p191 = por %p189, %p190
    %p192 = scmp.ne.s32.totalorder %s178, %s179
    %p193 = scmp.eq.s32.totalorder %s19, 1
    %p194 = por %p192, %p193
    %p196 = scmp.ne.s32.totalorder %s179, %s195
    %p197 = scmp.eq.s32.totalorder %s19, 0
    %p198 = por %p196, %p197
    %p199 = scmp.le.s32.totalorder 1, %s13
    %p200 = scmp.lt.s32.totalorder %s13, 3
    %p201 = pnand %p199, %p200
    %p202 = pneg %p201
    // Predicated region
    $region9: #{densegrid_mlp_forward.1} parent=5 // pred_check
      _
    $region10: #{densegrid_mlp_forward.1} parent=5 // pred_check_branch
      %204 = sbr.rel (%p201) target = $region12
    $region11: #{densegrid_mlp_forward.1} parent=5 // pred_region
      %s205 = ssub.s32 %s13, 1
      // Predicated region
      $region13: #{densegrid_mlp_forward.1} parent=11 // pred_check
        %p206 = pneg %p60
      $region14: #{densegrid_mlp_forward.1} parent=11 // pred_check_branch
        %208 = sbr.rel (%p206) target = $region16
      $region15: #{densegrid_mlp_forward.1} parent=11 // pred_region
        _
      $region16: #{densegrid_mlp_forward.1} parent=11 // pred_fallthru
        _
      // Predicated region
      $region17: #{densegrid_mlp_forward.1} parent=11 // pred_check
        %p209 = pneg %p81
      $region18: #{densegrid_mlp_forward.1} parent=11 // pred_check_branch
        %211 = sbr.rel (%p209) target = $region20
      $region19: #{densegrid_mlp_forward.1} parent=11 // pred_region
        _
      $region20: #{densegrid_mlp_forward.1} parent=11 // pred_fallthru
        _
      // Predicated region
      $region21: #{densegrid_mlp_forward.1} parent=11 // pred_check
        %p212 = pneg %p102
      $region22: #{densegrid_mlp_forward.1} parent=11 // pred_check_branch
        %214 = sbr.rel (%p212) target = $region24
      $region23: #{densegrid_mlp_forward.1} parent=11 // pred_region
        _
      $region24: #{densegrid_mlp_forward.1} parent=11 // pred_fallthru
        _
      // Predicated region
      $region25: #{densegrid_mlp_forward.1} parent=11 // pred_check
        %p215 = pneg %p123
      $region26: #{densegrid_mlp_forward.1} parent=11 // pred_check_branch
        %217 = sbr.rel (%p215) target = $region28
      $region27: #{densegrid_mlp_forward.1} parent=11 // pred_region
        _
      $region28: #{densegrid_mlp_forward.1} parent=11 // pred_fallthru
        _
      // Predicated region
      $region29: #{densegrid_mlp_forward.1} parent=11 // pred_check
        %p218 = pneg %p144
      $region30: #{densegrid_mlp_forward.1} parent=11 // pred_check_branch
        %220 = sbr.rel (%p218) target = $region32
      $region31: #{densegrid_mlp_forward.1} parent=11 // pred_region
        _
      $region32: #{densegrid_mlp_forward.1} parent=11 // pred_fallthru
        _
      // Predicated region
      $region33: #{densegrid_mlp_forward.1} parent=11 // pred_check
        %p221 = pneg %p165
      $region34: #{densegrid_mlp_forward.1} parent=11 // pred_check_branch
        %223 = sbr.rel (%p221) target = $region36
      $region35: #{densegrid_mlp_forward.1} parent=11 // pred_region
        _
      $region36: #{densegrid_mlp_forward.1} parent=11 // pred_fallthru
        _
    $region12: #{densegrid_mlp_forward.1} parent=5 // pred_fallthru
      _
    %p224 = scmp.lt.s32.totalorder %s13, 2
    // Predicated region
    $region37: #{densegrid_mlp_forward.1} parent=5 // pred_check
      %p225 = pneg %p224
    $region38: #{densegrid_mlp_forward.1} parent=5 // pred_check_branch
      %227 = sbr.rel (%p225) target = $region40
    $region39: #{densegrid_mlp_forward.1} parent=5 // pred_region
      // Predicated region
      $region41: #{densegrid_mlp_forward.1} parent=39 // pred_check
        %p228 = pneg %p33
      $region42: #{densegrid_mlp_forward.1} parent=39 // pred_check_branch
        %230 = sbr.rel (%p228) target = $region44
      $region43: #{densegrid_mlp_forward.1} parent=39 // pred_region
        %s231 = smul.u32 64, %s13
        %p232 = scmp.lt.s32.totalorder %s231, 127
        %s233 = scalar_select %p232, %s231, 127
        %s234 = smul.addr %s233, 8
        %s235 = scalar_lea.vmem %s0, %s234
        %s236 = smul.u32 64, %s13
      $region44: #{densegrid_mlp_forward.1} parent=39 // pred_fallthru
        _
    $region40: #{densegrid_mlp_forward.1} parent=5 // pred_fallthru
      _
    %p237 = scmp.le.s32.totalorder 1, %s13
    %p238 = scmp.lt.s32.totalorder %s13, 3
    %p239 = pnand %p237, %p238
    %p240 = pneg %p239
    // Predicated region
    $region45: #{densegrid_mlp_forward.1} parent=5 // pred_check
      _
    $region46: #{densegrid_mlp_forward.1} parent=5 // pred_check_branch
      %242 = sbr.rel (%p239) target = $region48
    $region47: #{densegrid_mlp_forward.1} parent=5 // pred_region
      %s243 = ssub.s32 %s13, 1
      %s244 = smul.u32 64, %s18
      %p245 = scmp.lt.s32.totalorder %s244, 127
      %s246 = scalar_select %p245, %s244, 127
      %s247 = smul.addr %s246, 8
      %s248 = scalar_lea.vmem %s0, %s247
      %p249 = pneg %p39
      %p250 = pneg %p36
      %p251 = pneg %p60
      %p252 = pneg %p57
      %p253 = pneg %p81
      %p254 = pneg %p78
      %p255 = pneg %p102
      %p256 = pneg %p99
      %p257 = pneg %p123
      %p258 = pneg %p120
      %p259 = pneg %p144
      %p260 = pneg %p141
      %p261 = pneg %p165
      %p262 = pneg %p162
      %p263 = pneg %p191
      %p264 = pneg %p188
      %s265 = smul.u32 64, %s18
      %p266 = scmp.lt.s32.totalorder %s265, 127
      %s267 = scalar_select %p266, %s265, 127
      %s268 = smul.addr %s267, 8
      %s269 = scalar_lea.vmem %s7, %s268
      %s270 = smul.u32 64, %s18
      %p271 = scmp.lt.s32.totalorder %s270, 127
      %s272 = scalar_select %p271, %s270, 127
      %s273 = smul.addr %s272, 8
      %s274 = scalar_lea.vmem %s0, %s273
      %s275 = smul.u32 64, %s18
      %s276 = smul.u32 64, %s18
      %p277 = scmp.lt.s32.totalorder %s276, 127
      %s278 = scalar_select %p277, %s276, 127
      %s279 = smul.addr %s278, 8
      %s280 = scalar_lea.vmem %s7, %s279
      %s281 = smul.u32 64, %s18
      %v282 = vld [vmem:[%s274] sm:$0xff]
      %v283 = vld [vmem:[%s274 + $0x8] sm:$0xff]
      %v284 = vld [vmem:[%s274 + $0x10] sm:$0xff]
      %v285 = vld [vmem:[%s274 + $0x18] sm:$0xff]
      %v286 = vld [vmem:[%s274 + $0x20] sm:$0xff]
      %v287 = vld [vmem:[%s274 + $0x28] sm:$0xff]
      %v288 = vld [vmem:[%s274 + $0x30] sm:$0xff]
      %v289 = vld [vmem:[%s274 + $0x38] sm:$0xff]
      %v290 = vld [vmem:[%s274 + $0x40] sm:$0xff]
      %v291 = vld [vmem:[%s274 + $0x48] sm:$0xff]
      %v292 = vld [vmem:[%s274 + $0x50] sm:$0xff]
      %v293 = vld [vmem:[%s274 + $0x58] sm:$0xff]
      %v294 = vld [vmem:[%s274 + $0x60] sm:$0xff]
      %v295 = vld [vmem:[%s274 + $0x68] sm:$0xff]
      %v296 = vld [vmem:[%s274 + $0x70] sm:$0xff]
      %v297 = vld [vmem:[%s274 + $0x78] sm:$0xff]
      %v298 = vld [vmem:[%s274 + $0x80] sm:$0xff]
      %v299 = vld [vmem:[%s274 + $0x88] sm:$0xff]
      %v300 = vld [vmem:[%s274 + $0x90] sm:$0xff]
      %v301 = vld [vmem:[%s274 + $0x98] sm:$0xff]
      %v302 = vld [vmem:[%s274 + $0xa0] sm:$0xff]
      %v303 = vld [vmem:[%s274 + $0xa8] sm:$0xff]
      %v304 = vld [vmem:[%s274 + $0xb0] sm:$0xff]
      %v305 = vld [vmem:[%s274 + $0xb8] sm:$0xff]
      %v306 = vld [vmem:[%s274 + $0xc0] sm:$0xff]
      %v307 = vld [vmem:[%s274 + $0xc8] sm:$0xff]
      %v308 = vld [vmem:[%s274 + $0xd0] sm:$0xff]
      %v309 = vld [vmem:[%s274 + $0xd8] sm:$0xff]
      %v310 = vld [vmem:[%s274 + $0xe0] sm:$0xff]
      %v311 = vld [vmem:[%s274 + $0xe8] sm:$0xff]
      %v312 = vld [vmem:[%s274 + $0xf0] sm:$0xff]
      %v313 = vld [vmem:[%s274 + $0xf8] sm:$0xff]
      %v314 = vld [vmem:[%s274 + $0x100] sm:$0xff]
      %v315 = vld [vmem:[%s274 + $0x108] sm:$0xff]
      %v316 = vld [vmem:[%s274 + $0x110] sm:$0xff]
      %v317 = vld [vmem:[%s274 + $0x118] sm:$0xff]
      %v318 = vld [vmem:[%s274 + $0x120] sm:$0xff]
      %v319 = vld [vmem:[%s274 + $0x128] sm:$0xff]
      %v320 = vld [vmem:[%s274 + $0x130] sm:$0xff]
      %v321 = vld [vmem:[%s274 + $0x138] sm:$0xff]
      %v322 = vld [vmem:[%s274 + $0x140] sm:$0xff]
      %v323 = vld [vmem:[%s274 + $0x148] sm:$0xff]
      %v324 = vld [vmem:[%s274 + $0x150] sm:$0xff]
      %v325 = vld [vmem:[%s274 + $0x158] sm:$0xff]
      %v326 = vld [vmem:[%s274 + $0x160] sm:$0xff]
      %v327 = vld [vmem:[%s274 + $0x168] sm:$0xff]
      %v328 = vld [vmem:[%s274 + $0x170] sm:$0xff]
      %v329 = vld [vmem:[%s274 + $0x178] sm:$0xff]
      %v330 = vld [vmem:[%s274 + $0x180] sm:$0xff]
      %v331 = vld [vmem:[%s274 + $0x188] sm:$0xff]
      %v332 = vld [vmem:[%s274 + $0x190] sm:$0xff]
      %v333 = vld [vmem:[%s274 + $0x198] sm:$0xff]
      %v334 = vld [vmem:[%s274 + $0x1a0] sm:$0xff]
      %v335 = vld [vmem:[%s274 + $0x1a8] sm:$0xff]
      %v336 = vld [vmem:[%s274 + $0x1b0] sm:$0xff]
      %v337 = vld [vmem:[%s274 + $0x1b8] sm:$0xff]
      %v338 = vld [vmem:[%s274 + $0x1c0] sm:$0xff]
      %v339 = vld [vmem:[%s274 + $0x1c8] sm:$0xff]
      %v340 = vld [vmem:[%s274 + $0x1d0] sm:$0xff]
      %v341 = vld [vmem:[%s274 + $0x1d8] sm:$0xff]
      %v342 = vld [vmem:[%s274 + $0x1e0] sm:$0xff]
      %v343 = vld [vmem:[%s274 + $0x1e8] sm:$0xff]
      %v344 = vld [vmem:[%s274 + $0x1f0] sm:$0xff]
      %v345 = vld [vmem:[%s274 + $0x1f8] sm:$0xff]
      %v346 = vld [vmem:[%s1] sm:$0x7]
      %v347 = vlaneseq
      %v348 = vshrl.u32 %v347, 7
      %v349 = vsub.s32 0, %v348
      %v350 = vrot.slane %v346, %v349
      %v351 = vsub.f32 %v282, %v350
      %v352 = vsub.f32 %v283, %v350
      %v353 = vsub.f32 %v284, %v350
      %v354 = vsub.f32 %v285, %v350
      %v355 = vsub.f32 %v286, %v350
      %v356 = vsub.f32 %v287, %v350
      %v357 = vsub.f32 %v288, %v350
      %v358 = vsub.f32 %v289, %v350
      %v359 = vsub.f32 %v290, %v350
      %v360 = vsub.f32 %v291, %v350
      %v361 = vsub.f32 %v292, %v350
      %v362 = vsub.f32 %v293, %v350
      %v363 = vsub.f32 %v294, %v350
      %v364 = vsub.f32 %v295, %v350
      %v365 = vsub.f32 %v296, %v350
      %v366 = vsub.f32 %v297, %v350
      %v367 = vsub.f32 %v298, %v350
      %v368 = vsub.f32 %v299, %v350
      %v369 = vsub.f32 %v300, %v350
      %v370 = vsub.f32 %v301, %v350
      %v371 = vsub.f32 %v302, %v350
      %v372 = vsub.f32 %v303, %v350
      %v373 = vsub.f32 %v304, %v350
      %v374 = vsub.f32 %v305, %v350
      %v375 = vsub.f32 %v306, %v350
      %v376 = vsub.f32 %v307, %v350
      %v377 = vsub.f32 %v308, %v350
      %v378 = vsub.f32 %v309, %v350
      %v379 = vsub.f32 %v310, %v350
      %v380 = vsub.f32 %v311, %v350
      %v381 = vsub.f32 %v312, %v350
      %v382 = vsub.f32 %v313, %v350
      %v383 = vsub.f32 %v314, %v350
      %v384 = vsub.f32 %v315, %v350
      %v385 = vsub.f32 %v316, %v350
      %v386 = vsub.f32 %v317, %v350
      %v387 = vsub.f32 %v318, %v350
      %v388 = vsub.f32 %v319, %v350
      %v389 = vsub.f32 %v320, %v350
      %v390 = vsub.f32 %v321, %v350
      %v391 = vsub.f32 %v322, %v350
      %v392 = vsub.f32 %v323, %v350
      %v393 = vsub.f32 %v324, %v350
      %v394 = vsub.f32 %v325, %v350
      %v395 = vsub.f32 %v326, %v350
      %v396 = vsub.f32 %v327, %v350
      %v397 = vsub.f32 %v328, %v350
      %v398 = vsub.f32 %v329, %v350
      %v399 = vsub.f32 %v330, %v350
      %v400 = vsub.f32 %v331, %v350
      %v401 = vsub.f32 %v332, %v350
      %v402 = vsub.f32 %v333, %v350
      %v403 = vsub.f32 %v334, %v350
      %v404 = vsub.f32 %v335, %v350
      %v405 = vsub.f32 %v336, %v350
      %v406 = vsub.f32 %v337, %v350
      %v407 = vsub.f32 %v338, %v350
      %v408 = vsub.f32 %v339, %v350
      %v409 = vsub.f32 %v340, %v350
      %v410 = vsub.f32 %v341, %v350
      %v411 = vsub.f32 %v342, %v350
      %v412 = vsub.f32 %v343, %v350
      %v413 = vsub.f32 %v344, %v350
      %v414 = vsub.f32 %v345, %v350
      %v415 = vlaneseq
      %v416 = vshrl.u32 %v415, 7
      %v417 = vsub.s32 1, %v416
      %v418 = vrot.slane %v346, %v417
      %v419 = vmul.f32 %v351, %v418
      %v420 = vmul.f32 %v352, %v418
      %v421 = vmul.f32 %v353, %v418
      %v422 = vmul.f32 %v354, %v418
      %v423 = vmul.f32 %v355, %v418
      %v424 = vmul.f32 %v356, %v418
      %v425 = vmul.f32 %v357, %v418
      %v426 = vmul.f32 %v358, %v418
      %v427 = vmul.f32 %v359, %v418
      %v428 = vmul.f32 %v360, %v418
      %v429 = vmul.f32 %v361, %v418
      %v430 = vmul.f32 %v362, %v418
      %v431 = vmul.f32 %v363, %v418
      %v432 = vmul.f32 %v364, %v418
      %v433 = vmul.f32 %v365, %v418
      %v434 = vmul.f32 %v366, %v418
      %v435 = vmul.f32 %v367, %v418
      %v436 = vmul.f32 %v368, %v418
      %v437 = vmul.f32 %v369, %v418
      %v438 = vmul.f32 %v370, %v418
      %v439 = vmul.f32 %v371, %v418
      %v440 = vmul.f32 %v372, %v418
      %v441 = vmul.f32 %v373, %v418
      %v442 = vmul.f32 %v374, %v418
      %v443 = vmul.f32 %v375, %v418
      %v444 = vmul.f32 %v376, %v418
      %v445 = vmul.f32 %v377, %v418
      %v446 = vmul.f32 %v378, %v418
      %v447 = vmul.f32 %v379, %v418
      %v448 = vmul.f32 %v380, %v418
      %v449 = vmul.f32 %v381, %v418
      %v450 = vmul.f32 %v382, %v418
      %v451 = vmul.f32 %v383, %v418
      %v452 = vmul.f32 %v384, %v418
      %v453 = vmul.f32 %v385, %v418
      %v454 = vmul.f32 %v386, %v418
      %v455 = vmul.f32 %v387, %v418
      %v456 = vmul.f32 %v388, %v418
      %v457 = vmul.f32 %v389, %v418
      %v458 = vmul.f32 %v390, %v418
      %v459 = vmul.f32 %v391, %v418
      %v460 = vmul.f32 %v392, %v418
      %v461 = vmul.f32 %v393, %v418
      %v462 = vmul.f32 %v394, %v418
      %v463 = vmul.f32 %v395, %v418
      %v464 = vmul.f32 %v396, %v418
      %v465 = vmul.f32 %v397, %v418
      %v466 = vmul.f32 %v398, %v418
      %v467 = vmul.f32 %v399, %v418
      %v468 = vmul.f32 %v400, %v418
      %v469 = vmul.f32 %v401, %v418
      %v470 = vmul.f32 %v402, %v418
      %v471 = vmul.f32 %v403, %v418
      %v472 = vmul.f32 %v404, %v418
      %v473 = vmul.f32 %v405, %v418
      %v474 = vmul.f32 %v406, %v418
      %v475 = vmul.f32 %v407, %v418
      %v476 = vmul.f32 %v408, %v418
      %v477 = vmul.f32 %v409, %v418
      %v478 = vmul.f32 %v410, %v418
      %v479 = vmul.f32 %v411, %v418
      %v480 = vmul.f32 %v412, %v418
      %v481 = vmul.f32 %v413, %v418
      %v482 = vmul.f32 %v414, %v418
      %v483 = vmax.f32 %v419, 0.0
      %v484 = vmax.f32 %v420, 0.0
      %v485 = vmax.f32 %v421, 0.0
      %v486 = vmax.f32 %v422, 0.0
      %v487 = vmax.f32 %v423, 0.0
      %v488 = vmax.f32 %v424, 0.0
      %v489 = vmax.f32 %v425, 0.0
      %v490 = vmax.f32 %v426, 0.0
      %v491 = vmax.f32 %v427, 0.0
      %v492 = vmax.f32 %v428, 0.0
      %v493 = vmax.f32 %v429, 0.0
      %v494 = vmax.f32 %v430, 0.0
      %v495 = vmax.f32 %v431, 0.0
      %v496 = vmax.f32 %v432, 0.0
      %v497 = vmax.f32 %v433, 0.0
      %v498 = vmax.f32 %v434, 0.0
      %v499 = vmax.f32 %v435, 0.0
      %v500 = vmax.f32 %v436, 0.0
      %v501 = vmax.f32 %v437, 0.0
      %v502 = vmax.f32 %v438, 0.0
      %v503 = vmax.f32 %v439, 0.0
      %v504 = vmax.f32 %v440, 0.0
      %v505 = vmax.f32 %v441, 0.0
      %v506 = vmax.f32 %v442, 0.0
      %v507 = vmax.f32 %v443, 0.0
      %v508 = vmax.f32 %v444, 0.0
      %v509 = vmax.f32 %v445, 0.0
      %v510 = vmax.f32 %v446, 0.0
      %v511 = vmax.f32 %v447, 0.0
      %v512 = vmax.f32 %v448, 0.0
      %v513 = vmax.f32 %v449, 0.0
      %v514 = vmax.f32 %v450, 0.0
      %v515 = vmax.f32 %v451, 0.0
      %v516 = vmax.f32 %v452, 0.0
      %v517 = vmax.f32 %v453, 0.0
      %v518 = vmax.f32 %v454, 0.0
      %v519 = vmax.f32 %v455, 0.0
      %v520 = vmax.f32 %v456, 0.0
      %v521 = vmax.f32 %v457, 0.0
      %v522 = vmax.f32 %v458, 0.0
      %v523 = vmax.f32 %v459, 0.0
      %v524 = vmax.f32 %v460, 0.0
      %v525 = vmax.f32 %v461, 0.0
      %v526 = vmax.f32 %v462, 0.0
      %v527 = vmax.f32 %v463, 0.0
      %v528 = vmax.f32 %v464, 0.0
      %v529 = vmax.f32 %v465, 0.0
      %v530 = vmax.f32 %v466, 0.0
      %v531 = vmax.f32 %v467, 0.0
      %v532 = vmax.f32 %v468, 0.0
      %v533 = vmax.f32 %v469, 0.0
      %v534 = vmax.f32 %v470, 0.0
      %v535 = vmax.f32 %v471, 0.0
      %v536 = vmax.f32 %v472, 0.0
      %v537 = vmax.f32 %v473, 0.0
      %v538 = vmax.f32 %v474, 0.0
      %v539 = vmax.f32 %v475, 0.0
      %v540 = vmax.f32 %v476, 0.0
      %v541 = vmax.f32 %v477, 0.0
      %v542 = vmax.f32 %v478, 0.0
      %v543 = vmax.f32 %v479, 0.0
      %v544 = vmax.f32 %v480, 0.0
      %v545 = vmax.f32 %v481, 0.0
      %v546 = vmax.f32 %v482, 0.0
      %v547 = vlaneseq
      %v548 = vshrl.u32 %v547, 7
      %v549 = vsub.s32 2, %v548
      %v550 = vrot.slane %v346, %v549
      %v551 = vmin.f32 %v550, %v483
      %v552 = vmin.f32 %v550, %v484
      %v553 = vmin.f32 %v550, %v485
      %v554 = vmin.f32 %v550, %v486
      %v555 = vmin.f32 %v550, %v487
      %v556 = vmin.f32 %v550, %v488
      %v557 = vmin.f32 %v550, %v489
      %v558 = vmin.f32 %v550, %v490
      %v559 = vmin.f32 %v550, %v491
      %v560 = vmin.f32 %v550, %v492
      %v561 = vmin.f32 %v550, %v493
      %v562 = vmin.f32 %v550, %v494
      %v563 = vmin.f32 %v550, %v495
      %v564 = vmin.f32 %v550, %v496
      %v565 = vmin.f32 %v550, %v497
      %v566 = vmin.f32 %v550, %v498
      %v567 = vmin.f32 %v550, %v499
      %v568 = vmin.f32 %v550, %v500
      %v569 = vmin.f32 %v550, %v501
      %v570 = vmin.f32 %v550, %v502
      %v571 = vmin.f32 %v550, %v503
      %v572 = vmin.f32 %v550, %v504
      %v573 = vmin.f32 %v550, %v505
      %v574 = vmin.f32 %v550, %v506
      %v575 = vmin.f32 %v550, %v507
      %v576 = vmin.f32 %v550, %v508
      %v577 = vmin.f32 %v550, %v509
      %v578 = vmin.f32 %v550, %v510
      %v579 = vmin.f32 %v550, %v511
      %v580 = vmin.f32 %v550, %v512
      %v581 = vmin.f32 %v550, %v513
      %v582 = vmin.f32 %v550, %v514
      %v583 = vmin.f32 %v550, %v515
      %v584 = vmin.f32 %v550, %v516
      %v585 = vmin.f32 %v550, %v517
      %v586 = vmin.f32 %v550, %v518
      %v587 = vmin.f32 %v550, %v519
      %v588 = vmin.f32 %v550, %v520
      %v589 = vmin.f32 %v550, %v521
      %v590 = vmin.f32 %v550, %v522
      %v591 = vmin.f32 %v550, %v523
      %v592 = vmin.f32 %v550, %v524
      %v593 = vmin.f32 %v550, %v525
      %v594 = vmin.f32 %v550, %v526
      %v595 = vmin.f32 %v550, %v527
      %v596 = vmin.f32 %v550, %v528
      %v597 = vmin.f32 %v550, %v529
      %v598 = vmin.f32 %v550, %v530
      %v599 = vmin.f32 %v550, %v531
      %v600 = vmin.f32 %v550, %v532
      %v601 = vmin.f32 %v550, %v533
      %v602 = vmin.f32 %v550, %v534
      %v603 = vmin.f32 %v550, %v535
      %v604 = vmin.f32 %v550, %v536
      %v605 = vmin.f32 %v550, %v537
      %v606 = vmin.f32 %v550, %v538
      %v607 = vmin.f32 %v550, %v539
      %v608 = vmin.f32 %v550, %v540
      %v609 = vmin.f32 %v550, %v541
      %v610 = vmin.f32 %v550, %v542
      %v611 = vmin.f32 %v550, %v543
      %v612 = vmin.f32 %v550, %v544
      %v613 = vmin.f32 %v550, %v545
      %v614 = vmin.f32 %v550, %v546
      %v615 = vfloor.f32 %v551
      %v616 = vfloor.f32 %v552
      %v617 = vfloor.f32 %v553
      %v618 = vfloor.f32 %v554
      %v619 = vfloor.f32 %v555
      %v620 = vfloor.f32 %v556
      %v621 = vfloor.f32 %v557
      %v622 = vfloor.f32 %v558
      %v623 = vfloor.f32 %v559
      %v624 = vfloor.f32 %v560
      %v625 = vfloor.f32 %v561
      %v626 = vfloor.f32 %v562
      %v627 = vfloor.f32 %v563
      %v628 = vfloor.f32 %v564
      %v629 = vfloor.f32 %v565
      %v630 = vfloor.f32 %v566
      %v631 = vfloor.f32 %v567
      %v632 = vfloor.f32 %v568
      %v633 = vfloor.f32 %v569
      %v634 = vfloor.f32 %v570
      %v635 = vfloor.f32 %v571
      %v636 = vfloor.f32 %v572
      %v637 = vfloor.f32 %v573
      %v638 = vfloor.f32 %v574
      %v639 = vfloor.f32 %v575
      %v640 = vfloor.f32 %v576
      %v641 = vfloor.f32 %v577
      %v642 = vfloor.f32 %v578
      %v643 = vfloor.f32 %v579
      %v644 = vfloor.f32 %v580
      %v645 = vfloor.f32 %v581
      %v646 = vfloor.f32 %v582
      %v647 = vfloor.f32 %v583
      %v648 = vfloor.f32 %v584
      %v649 = vfloor.f32 %v585
      %v650 = vfloor.f32 %v586
      %v651 = vfloor.f32 %v587
      %v652 = vfloor.f32 %v588
      %v653 = vfloor.f32 %v589
      %v654 = vfloor.f32 %v590
      %v655 = vfloor.f32 %v591
      %v656 = vfloor.f32 %v592
      %v657 = vfloor.f32 %v593
      %v658 = vfloor.f32 %v594
      %v659 = vfloor.f32 %v595
      %v660 = vfloor.f32 %v596
      %v661 = vfloor.f32 %v597
      %v662 = vfloor.f32 %v598
      %v663 = vfloor.f32 %v599
      %v664 = vfloor.f32 %v600
      %v665 = vfloor.f32 %v601
      %v666 = vfloor.f32 %v602
      %v667 = vfloor.f32 %v603
      %v668 = vfloor.f32 %v604
      %v669 = vfloor.f32 %v605
      %v670 = vfloor.f32 %v606
      %v671 = vfloor.f32 %v607
      %v672 = vfloor.f32 %v608
      %v673 = vfloor.f32 %v609
      %v674 = vfloor.f32 %v610
      %v675 = vfloor.f32 %v611
      %v676 = vfloor.f32 %v612
      %v677 = vfloor.f32 %v613
      %v678 = vfloor.f32 %v614
      %v679 = vsub.f32 %v551, %v615
      %v680 = vsub.f32 %v552, %v616
      %v681 = vsub.f32 %v553, %v617
      %v682 = vsub.f32 %v554, %v618
      %v683 = vsub.f32 %v555, %v619
      %v684 = vsub.f32 %v556, %v620
      %v685 = vsub.f32 %v557, %v621
      %v686 = vsub.f32 %v558, %v622
      %v687 = vsub.f32 %v559, %v623
      %v688 = vsub.f32 %v560, %v624
      %v689 = vsub.f32 %v561, %v625
      %v690 = vsub.f32 %v562, %v626
      %v691 = vsub.f32 %v563, %v627
      %v692 = vsub.f32 %v564, %v628
      %v693 = vsub.f32 %v565, %v629
      %v694 = vsub.f32 %v566, %v630
      %v695 = vsub.f32 %v567, %v631
      %v696 = vsub.f32 %v568, %v632
      %v697 = vsub.f32 %v569, %v633
      %v698 = vsub.f32 %v570, %v634
      %v699 = vsub.f32 %v571, %v635
      %v700 = vsub.f32 %v572, %v636
      %v701 = vsub.f32 %v573, %v637
      %v702 = vsub.f32 %v574, %v638
      %v703 = vsub.f32 %v575, %v639
      %v704 = vsub.f32 %v576, %v640
      %v705 = vsub.f32 %v577, %v641
      %v706 = vsub.f32 %v578, %v642
      %v707 = vsub.f32 %v579, %v643
      %v708 = vsub.f32 %v580, %v644
      %v709 = vsub.f32 %v581, %v645
      %v710 = vsub.f32 %v582, %v646
      %v711 = vsub.f32 %v583, %v647
      %v712 = vsub.f32 %v584, %v648
      %v713 = vsub.f32 %v585, %v649
      %v714 = vsub.f32 %v586, %v650
      %v715 = vsub.f32 %v587, %v651
      %v716 = vsub.f32 %v588, %v652
      %v717 = vsub.f32 %v589, %v653
      %v718 = vsub.f32 %v590, %v654
      %v719 = vsub.f32 %v591, %v655
      %v720 = vsub.f32 %v592, %v656
      %v721 = vsub.f32 %v593, %v657
      %v722 = vsub.f32 %v594, %v658
      %v723 = vsub.f32 %v595, %v659
      %v724 = vsub.f32 %v596, %v660
      %v725 = vsub.f32 %v597, %v661
      %v726 = vsub.f32 %v598, %v662
      %v727 = vsub.f32 %v599, %v663
      %v728 = vsub.f32 %v600, %v664
      %v729 = vsub.f32 %v601, %v665
      %v730 = vsub.f32 %v602, %v666
      %v731 = vsub.f32 %v603, %v667
      %v732 = vsub.f32 %v604, %v668
      %v733 = vsub.f32 %v605, %v669
      %v734 = vsub.f32 %v606, %v670
      %v735 = vsub.f32 %v607, %v671
      %v736 = vsub.f32 %v608, %v672
      %v737 = vsub.f32 %v609, %v673
      %v738 = vsub.f32 %v610, %v674
      %v739 = vsub.f32 %v611, %v675
      %v740 = vsub.f32 %v612, %v676
      %v741 = vsub.f32 %v613, %v677
      %v742 = vsub.f32 %v614, %v678
      %v743 = vcvt.f32.s32.to.zero.pseudo %v615
      %v744 = vcvt.f32.s32.to.zero.pseudo %v616
      %v745 = vcvt.f32.s32.to.zero.pseudo %v617
      %v746 = vcvt.f32.s32.to.zero.pseudo %v618
      %v747 = vcvt.f32.s32.to.zero.pseudo %v619
      %v748 = vcvt.f32.s32.to.zero.pseudo %v620
      %v749 = vcvt.f32.s32.to.zero.pseudo %v621
      %v750 = vcvt.f32.s32.to.zero.pseudo %v622
      %v751 = vcvt.f32.s32.to.zero.pseudo %v623
      %v752 = vcvt.f32.s32.to.zero.pseudo %v624
      %v753 = vcvt.f32.s32.to.zero.pseudo %v625
      %v754 = vcvt.f32.s32.to.zero.pseudo %v626
      %v755 = vcvt.f32.s32.to.zero.pseudo %v627
      %v756 = vcvt.f32.s32.to.zero.pseudo %v628
      %v757 = vcvt.f32.s32.to.zero.pseudo %v629
      %v758 = vcvt.f32.s32.to.zero.pseudo %v630
      %v759 = vcvt.f32.s32.to.zero.pseudo %v631
      %v760 = vcvt.f32.s32.to.zero.pseudo %v632
      %v761 = vcvt.f32.s32.to.zero.pseudo %v633
      %v762 = vcvt.f32.s32.to.zero.pseudo %v634
      %v763 = vcvt.f32.s32.to.zero.pseudo %v635
      %v764 = vcvt.f32.s32.to.zero.pseudo %v636
      %v765 = vcvt.f32.s32.to.zero.pseudo %v637
      %v766 = vcvt.f32.s32.to.zero.pseudo %v638
      %v767 = vcvt.f32.s32.to.zero.pseudo %v639
      %v768 = vcvt.f32.s32.to.zero.pseudo %v640
      %v769 = vcvt.f32.s32.to.zero.pseudo %v641
      %v770 = vcvt.f32.s32.to.zero.pseudo %v642
      %v771 = vcvt.f32.s32.to.zero.pseudo %v643
      %v772 = vcvt.f32.s32.to.zero.pseudo %v644
      %v773 = vcvt.f32.s32.to.zero.pseudo %v645
      %v774 = vcvt.f32.s32.to.zero.pseudo %v646
      %v775 = vcvt.f32.s32.to.zero.pseudo %v647
      %v776 = vcvt.f32.s32.to.zero.pseudo %v648
      %v777 = vcvt.f32.s32.to.zero.pseudo %v649
      %v778 = vcvt.f32.s32.to.zero.pseudo %v650
      %v779 = vcvt.f32.s32.to.zero.pseudo %v651
      %v780 = vcvt.f32.s32.to.zero.pseudo %v652
      %v781 = vcvt.f32.s32.to.zero.pseudo %v653
      %v782 = vcvt.f32.s32.to.zero.pseudo %v654
      %v783 = vcvt.f32.s32.to.zero.pseudo %v655
      %v784 = vcvt.f32.s32.to.zero.pseudo %v656
      %v785 = vcvt.f32.s32.to.zero.pseudo %v657
      %v786 = vcvt.f32.s32.to.zero.pseudo %v658
      %v787 = vcvt.f32.s32.to.zero.pseudo %v659
      %v788 = vcvt.f32.s32.to.zero.pseudo %v660
      %v789 = vcvt.f32.s32.to.zero.pseudo %v661
      %v790 = vcvt.f32.s32.to.zero.pseudo %v662
      %v791 = vcvt.f32.s32.to.zero.pseudo %v663
      %v792 = vcvt.f32.s32.to.zero.pseudo %v664
      %v793 = vcvt.f32.s32.to.zero.pseudo %v665
      %v794 = vcvt.f32.s32.to.zero.pseudo %v666
      %v795 = vcvt.f32.s32.to.zero.pseudo %v667
      %v796 = vcvt.f32.s32.to.zero.pseudo %v668
      %v797 = vcvt.f32.s32.to.zero.pseudo %v669
      %v798 = vcvt.f32.s32.to.zero.pseudo %v670
      %v799 = vcvt.f32.s32.to.zero.pseudo %v671
      %v800 = vcvt.f32.s32.to.zero.pseudo %v672
      %v801 = vcvt.f32.s32.to.zero.pseudo %v673
      %v802 = vcvt.f32.s32.to.zero.pseudo %v674
      %v803 = vcvt.f32.s32.to.zero.pseudo %v675
      %v804 = vcvt.f32.s32.to.zero.pseudo %v676
      %v805 = vcvt.f32.s32.to.zero.pseudo %v677
      %v806 = vcvt.f32.s32.to.zero.pseudo %v678
      %v807 = vsub.f32 1.0, %v679
      %v808 = vsub.f32 1.0, %v680
      %v809 = vsub.f32 1.0, %v681
      %v810 = vsub.f32 1.0, %v682
      %v811 = vsub.f32 1.0, %v683
      %v812 = vsub.f32 1.0, %v684
      %v813 = vsub.f32 1.0, %v685
      %v814 = vsub.f32 1.0, %v686
      %v815 = vsub.f32 1.0, %v687
      %v816 = vsub.f32 1.0, %v688
      %v817 = vsub.f32 1.0, %v689
      %v818 = vsub.f32 1.0, %v690
      %v819 = vsub.f32 1.0, %v691
      %v820 = vsub.f32 1.0, %v692
      %v821 = vsub.f32 1.0, %v693
      %v822 = vsub.f32 1.0, %v694
      %v823 = vsub.f32 1.0, %v695
      %v824 = vsub.f32 1.0, %v696
      %v825 = vsub.f32 1.0, %v697
      %v826 = vsub.f32 1.0, %v698
      %v827 = vsub.f32 1.0, %v699
      %v828 = vsub.f32 1.0, %v700
      %v829 = vsub.f32 1.0, %v701
      %v830 = vsub.f32 1.0, %v702
      %v831 = vsub.f32 1.0, %v703
      %v832 = vsub.f32 1.0, %v704
      %v833 = vsub.f32 1.0, %v705
      %v834 = vsub.f32 1.0, %v706
      %v835 = vsub.f32 1.0, %v707
      %v836 = vsub.f32 1.0, %v708
      %v837 = vsub.f32 1.0, %v709
      %v838 = vsub.f32 1.0, %v710
      %v839 = vsub.f32 1.0, %v711
      %v840 = vsub.f32 1.0, %v712
      %v841 = vsub.f32 1.0, %v713
      %v842 = vsub.f32 1.0, %v714
      %v843 = vsub.f32 1.0, %v715
      %v844 = vsub.f32 1.0, %v716
      %v845 = vsub.f32 1.0, %v717
      %v846 = vsub.f32 1.0, %v718
      %v847 = vsub.f32 1.0, %v719
      %v848 = vsub.f32 1.0, %v720
      %v849 = vsub.f32 1.0, %v721
      %v850 = vsub.f32 1.0, %v722
      %v851 = vsub.f32 1.0, %v723
      %v852 = vsub.f32 1.0, %v724
      %v853 = vsub.f32 1.0, %v725
      %v854 = vsub.f32 1.0, %v726
      %v855 = vsub.f32 1.0, %v727
      %v856 = vsub.f32 1.0, %v728
      %v857 = vsub.f32 1.0, %v729
      %v858 = vsub.f32 1.0, %v730
      %v859 = vsub.f32 1.0, %v731
      %v860 = vsub.f32 1.0, %v732
      %v861 = vsub.f32 1.0, %v733
      %v862 = vsub.f32 1.0, %v734
      %v863 = vsub.f32 1.0, %v735
      %v864 = vsub.f32 1.0, %v736
      %v865 = vsub.f32 1.0, %v737
      %v866 = vsub.f32 1.0, %v738
      %v867 = vsub.f32 1.0, %v739
      %v868 = vsub.f32 1.0, %v740
      %v869 = vsub.f32 1.0, %v741
      %v870 = vsub.f32 1.0, %v742
      %v871 = vmul.u32 %v743, 8
      %v872 = vmul.u32 %v744, 8
      %v873 = vmul.u32 %v745, 8
      %v874 = vmul.u32 %v746, 8
      %v875 = vmul.u32 %v747, 8
      %v876 = vmul.u32 %v748, 8
      %v877 = vmul.u32 %v749, 8
      %v878 = vmul.u32 %v750, 8
      %v879 = vmul.u32 %v751, 8
      %v880 = vmul.u32 %v752, 8
      %v881 = vmul.u32 %v753, 8
      %v882 = vmul.u32 %v754, 8
      %v883 = vmul.u32 %v755, 8
      %v884 = vmul.u32 %v756, 8
      %v885 = vmul.u32 %v757, 8
      %v886 = vmul.u32 %v758, 8
      %v887 = vmul.u32 %v759, 8
      %v888 = vmul.u32 %v760, 8
      %v889 = vmul.u32 %v761, 8
      %v890 = vmul.u32 %v762, 8
      %v891 = vmul.u32 %v763, 8
      %v892 = vmul.u32 %v764, 8
      %v893 = vmul.u32 %v765, 8
      %v894 = vmul.u32 %v766, 8
      %v895 = vmul.u32 %v767, 8
      %v896 = vmul.u32 %v768, 8
      %v897 = vmul.u32 %v769, 8
      %v898 = vmul.u32 %v770, 8
      %v899 = vmul.u32 %v771, 8
      %v900 = vmul.u32 %v772, 8
      %v901 = vmul.u32 %v773, 8
      %v902 = vmul.u32 %v774, 8
      %v903 = vmul.u32 %v775, 8
      %v904 = vmul.u32 %v776, 8
      %v905 = vmul.u32 %v777, 8
      %v906 = vmul.u32 %v778, 8
      %v907 = vmul.u32 %v779, 8
      %v908 = vmul.u32 %v780, 8
      %v909 = vmul.u32 %v781, 8
      %v910 = vmul.u32 %v782, 8
      %v911 = vmul.u32 %v783, 8
      %v912 = vmul.u32 %v784, 8
      %v913 = vmul.u32 %v785, 8
      %v914 = vmul.u32 %v786, 8
      %v915 = vmul.u32 %v787, 8
      %v916 = vmul.u32 %v788, 8
      %v917 = vmul.u32 %v789, 8
      %v918 = vmul.u32 %v790, 8
      %v919 = vmul.u32 %v791, 8
      %v920 = vmul.u32 %v792, 8
      %v921 = vmul.u32 %v793, 8
      %v922 = vmul.u32 %v794, 8
      %v923 = vmul.u32 %v795, 8
      %v924 = vmul.u32 %v796, 8
      %v925 = vmul.u32 %v797, 8
      %v926 = vmul.u32 %v798, 8
      %v927 = vmul.u32 %v799, 8
      %v928 = vmul.u32 %v800, 8
      %v929 = vmul.u32 %v801, 8
      %v930 = vmul.u32 %v802, 8
      %v931 = vmul.u32 %v803, 8
      %v932 = vmul.u32 %v804, 8
      %v933 = vmul.u32 %v805, 8
      %v934 = vmul.u32 %v806, 8
      %935 = vrot.lane.b32.xlu0 %v743, 127
      %v936 = vpop.permute.xlu0 %935
      %937 = vrot.lane.b32.xlu0 %v744, 127
      %v938 = vpop.permute.xlu0 %937
      %939 = vrot.lane.b32.xlu0 %v745, 127
      %v940 = vpop.permute.xlu0 %939
      %941 = vrot.lane.b32.xlu0 %v746, 127
      %v942 = vpop.permute.xlu0 %941
      %943 = vrot.lane.b32.xlu0 %v747, 127
      %v944 = vpop.permute.xlu0 %943
      %945 = vrot.lane.b32.xlu0 %v748, 127
      %v946 = vpop.permute.xlu0 %945
      %947 = vrot.lane.b32.xlu0 %v749, 127
      %v948 = vpop.permute.xlu0 %947
      %949 = vrot.lane.b32.xlu0 %v750, 127
      %v950 = vpop.permute.xlu0 %949
      %951 = vrot.lane.b32.xlu0 %v751, 127
      %v952 = vpop.permute.xlu0 %951
      %953 = vrot.lane.b32.xlu0 %v752, 127
      %v954 = vpop.permute.xlu0 %953
      %955 = vrot.lane.b32.xlu0 %v753, 127
      %v956 = vpop.permute.xlu0 %955
      %957 = vrot.lane.b32.xlu0 %v754, 127
      %v958 = vpop.permute.xlu0 %957
      %959 = vrot.lane.b32.xlu0 %v755, 127
      %v960 = vpop.permute.xlu0 %959
      %961 = vrot.lane.b32.xlu0 %v756, 127
      %v962 = vpop.permute.xlu0 %961
      %963 = vrot.lane.b32.xlu0 %v757, 127
      %v964 = vpop.permute.xlu0 %963
      %965 = vrot.lane.b32.xlu0 %v758, 127
      %v966 = vpop.permute.xlu0 %965
      %967 = vrot.lane.b32.xlu0 %v759, 127
      %v968 = vpop.permute.xlu0 %967
      %969 = vrot.lane.b32.xlu0 %v760, 127
      %v970 = vpop.permute.xlu0 %969
      %971 = vrot.lane.b32.xlu0 %v761, 127
      %v972 = vpop.permute.xlu0 %971
      %973 = vrot.lane.b32.xlu0 %v762, 127
      %v974 = vpop.permute.xlu0 %973
      %975 = vrot.lane.b32.xlu0 %v763, 127
      %v976 = vpop.permute.xlu0 %975
      %977 = vrot.lane.b32.xlu0 %v764, 127
      %v978 = vpop.permute.xlu0 %977
      %979 = vrot.lane.b32.xlu0 %v765, 127
      %v980 = vpop.permute.xlu0 %979
      %981 = vrot.lane.b32.xlu0 %v766, 127
      %v982 = vpop.permute.xlu0 %981
      %983 = vrot.lane.b32.xlu0 %v767, 127
      %v984 = vpop.permute.xlu0 %983
      %985 = vrot.lane.b32.xlu0 %v768, 127
      %v986 = vpop.permute.xlu0 %985
      %987 = vrot.lane.b32.xlu0 %v769, 127
      %v988 = vpop.permute.xlu0 %987
      %989 = vrot.lane.b32.xlu0 %v770, 127
      %v990 = vpop.permute.xlu0 %989
      %991 = vrot.lane.b32.xlu0 %v771, 127
      %v992 = vpop.permute.xlu0 %991
      %993 = vrot.lane.b32.xlu0 %v772, 127
      %v994 = vpop.permute.xlu0 %993
      %995 = vrot.lane.b32.xlu0 %v773, 127
      %v996 = vpop.permute.xlu0 %995
      %997 = vrot.lane.b32.xlu0 %v774, 127
      %v998 = vpop.permute.xlu0 %997
      %999 = vrot.lane.b32.xlu0 %v775, 127
      %v1000 = vpop.permute.xlu0 %999
      %1001 = vrot.lane.b32.xlu0 %v776, 127
      %v1002 = vpop.permute.xlu0 %1001
      %1003 = vrot.lane.b32.xlu0 %v777, 127
      %v1004 = vpop.permute.xlu0 %1003
      %1005 = vrot.lane.b32.xlu0 %v778, 127
      %v1006 = vpop.permute.xlu0 %1005
      %1007 = vrot.lane.b32.xlu0 %v779, 127
      %v1008 = vpop.permute.xlu0 %1007
      %1009 = vrot.lane.b32.xlu0 %v780, 127
      %v1010 = vpop.permute.xlu0 %1009
      %1011 = vrot.lane.b32.xlu0 %v781, 127
      %v1012 = vpop.permute.xlu0 %1011
      %1013 = vrot.lane.b32.xlu0 %v782, 127
      %v1014 = vpop.permute.xlu0 %1013
      %1015 = vrot.lane.b32.xlu0 %v783, 127
      %v1016 = vpop.permute.xlu0 %1015
      %1017 = vrot.lane.b32.xlu0 %v784, 127
      %v1018 = vpop.permute.xlu0 %1017
      %1019 = vrot.lane.b32.xlu0 %v785, 127
      %v1020 = vpop.permute.xlu0 %1019
      %1021 = vrot.lane.b32.xlu0 %v786, 127
      %v1022 = vpop.permute.xlu0 %1021
      %1023 = vrot.lane.b32.xlu0 %v787, 127
      %v1024 = vpop.permute.xlu0 %1023
      %1025 = vrot.lane.b32.xlu0 %v788, 127
      %v1026 = vpop.permute.xlu0 %1025
      %1027 = vrot.lane.b32.xlu0 %v789, 127
      %v1028 = vpop.permute.xlu0 %1027
      %1029 = vrot.lane.b32.xlu0 %v790, 127
      %v1030 = vpop.permute.xlu0 %1029
      %1031 = vrot.lane.b32.xlu0 %v791, 127
      %v1032 = vpop.permute.xlu0 %1031
      %1033 = vrot.lane.b32.xlu0 %v792, 127
      %v1034 = vpop.permute.xlu0 %1033
      %1035 = vrot.lane.b32.xlu0 %v793, 127
      %v1036 = vpop.permute.xlu0 %1035
      %1037 = vrot.lane.b32.xlu0 %v794, 127
      %v1038 = vpop.permute.xlu0 %1037
      %1039 = vrot.lane.b32.xlu0 %v795, 127
      %v1040 = vpop.permute.xlu0 %1039
      %1041 = vrot.lane.b32.xlu0 %v796, 127
      %v1042 = vpop.permute.xlu0 %1041
      %1043 = vrot.lane.b32.xlu0 %v797, 127
      %v1044 = vpop.permute.xlu0 %1043
      %1045 = vrot.lane.b32.xlu0 %v798, 127
      %v1046 = vpop.permute.xlu0 %1045
      %1047 = vrot.lane.b32.xlu0 %v799, 127
      %v1048 = vpop.permute.xlu0 %1047
      %1049 = vrot.lane.b32.xlu0 %v800, 127
      %v1050 = vpop.permute.xlu0 %1049
      %1051 = vrot.lane.b32.xlu0 %v801, 127
      %v1052 = vpop.permute.xlu0 %1051
      %1053 = vrot.lane.b32.xlu0 %v802, 127
      %v1054 = vpop.permute.xlu0 %1053
      %1055 = vrot.lane.b32.xlu0 %v803, 127
      %v1056 = vpop.permute.xlu0 %1055
      %1057 = vrot.lane.b32.xlu0 %v804, 127
      %v1058 = vpop.permute.xlu0 %1057
      %1059 = vrot.lane.b32.xlu0 %v805, 127
      %v1060 = vpop.permute.xlu0 %1059
      %1061 = vrot.lane.b32.xlu0 %v806, 127
      %v1062 = vpop.permute.xlu0 %1061
      %v1063 = vadd.s32 %v871, %v936
      %v1064 = vadd.s32 %v872, %v938
      %v1065 = vadd.s32 %v873, %v940
      %v1066 = vadd.s32 %v874, %v942
      %v1067 = vadd.s32 %v875, %v944
      %v1068 = vadd.s32 %v876, %v946
      %v1069 = vadd.s32 %v877, %v948
      %v1070 = vadd.s32 %v878, %v950
      %v1071 = vadd.s32 %v879, %v952
      %v1072 = vadd.s32 %v880, %v954
      %v1073 = vadd.s32 %v881, %v956
      %v1074 = vadd.s32 %v882, %v958
      %v1075 = vadd.s32 %v883, %v960
      %v1076 = vadd.s32 %v884, %v962
      %v1077 = vadd.s32 %v885, %v964
      %v1078 = vadd.s32 %v886, %v966
      %v1079 = vadd.s32 %v887, %v968
      %v1080 = vadd.s32 %v888, %v970
      %v1081 = vadd.s32 %v889, %v972
      %v1082 = vadd.s32 %v890, %v974
      %v1083 = vadd.s32 %v891, %v976
      %v1084 = vadd.s32 %v892, %v978
      %v1085 = vadd.s32 %v893, %v980
      %v1086 = vadd.s32 %v894, %v982
      %v1087 = vadd.s32 %v895, %v984
      %v1088 = vadd.s32 %v896, %v986
      %v1089 = vadd.s32 %v897, %v988
      %v1090 = vadd.s32 %v898, %v990
      %v1091 = vadd.s32 %v899, %v992
      %v1092 = vadd.s32 %v900, %v994
      %v1093 = vadd.s32 %v901, %v996
      %v1094 = vadd.s32 %v902, %v998
      %v1095 = vadd.s32 %v903, %v1000
      %v1096 = vadd.s32 %v904, %v1002
      %v1097 = vadd.s32 %v905, %v1004
      %v1098 = vadd.s32 %v906, %v1006
      %v1099 = vadd.s32 %v907, %v1008
      %v1100 = vadd.s32 %v908, %v1010
      %v1101 = vadd.s32 %v909, %v1012
      %v1102 = vadd.s32 %v910, %v1014
      %v1103 = vadd.s32 %v911, %v1016
      %v1104 = vadd.s32 %v912, %v1018
      %v1105 = vadd.s32 %v913, %v1020
      %v1106 = vadd.s32 %v914, %v1022
      %v1107 = vadd.s32 %v915, %v1024
      %v1108 = vadd.s32 %v916, %v1026
      %v1109 = vadd.s32 %v917, %v1028
      %v1110 = vadd.s32 %v918, %v1030
      %v1111 = vadd.s32 %v919, %v1032
      %v1112 = vadd.s32 %v920, %v1034
      %v1113 = vadd.s32 %v921, %v1036
      %v1114 = vadd.s32 %v922, %v1038
      %v1115 = vadd.s32 %v923, %v1040
      %v1116 = vadd.s32 %v924, %v1042
      %v1117 = vadd.s32 %v925, %v1044
      %v1118 = vadd.s32 %v926, %v1046
      %v1119 = vadd.s32 %v927, %v1048
      %v1120 = vadd.s32 %v928, %v1050
      %v1121 = vadd.s32 %v929, %v1052
      %v1122 = vadd.s32 %v930, %v1054
      %v1123 = vadd.s32 %v931, %v1056
      %v1124 = vadd.s32 %v932, %v1058
      %v1125 = vadd.s32 %v933, %v1060
      %v1126 = vadd.s32 %v934, %v1062
      %v1127 = vlaneseq
      %v1128 = vand.u32 %v1127, 127
      %1129 = vset.pattern.permute.xlu0 0
      %1130 = vperm.xlu0 %1129, %v1063
      %v1131 = vpop.permute.xlu0 %1130
      %1132 = vset.pattern.permute.xlu0 0
      %1133 = vperm.xlu0 %1132, %v1064
      %v1134 = vpop.permute.xlu0 %1133
      %1135 = vset.pattern.permute.xlu0 0
      %1136 = vperm.xlu0 %1135, %v1065
      %v1137 = vpop.permute.xlu0 %1136
      %1138 = vset.pattern.permute.xlu0 0
      %1139 = vperm.xlu0 %1138, %v1066
      %v1140 = vpop.permute.xlu0 %1139
      %1141 = vset.pattern.permute.xlu0 0
      %1142 = vperm.xlu0 %1141, %v1067
      %v1143 = vpop.permute.xlu0 %1142
      %1144 = vset.pattern.permute.xlu0 0
      %1145 = vperm.xlu0 %1144, %v1068
      %v1146 = vpop.permute.xlu0 %1145
      %1147 = vset.pattern.permute.xlu0 0
      %1148 = vperm.xlu0 %1147, %v1069
      %v1149 = vpop.permute.xlu0 %1148
      %1150 = vset.pattern.permute.xlu0 0
      %1151 = vperm.xlu0 %1150, %v1070
      %v1152 = vpop.permute.xlu0 %1151
      %1153 = vset.pattern.permute.xlu0 0
      %1154 = vperm.xlu0 %1153, %v1071
      %v1155 = vpop.permute.xlu0 %1154
      %1156 = vset.pattern.permute.xlu0 0
      %1157 = vperm.xlu0 %1156, %v1072
      %v1158 = vpop.permute.xlu0 %1157
      %1159 = vset.pattern.permute.xlu0 0
      %1160 = vperm.xlu0 %1159, %v1073
      %v1161 = vpop.permute.xlu0 %1160
      %1162 = vset.pattern.permute.xlu0 0
      %1163 = vperm.xlu0 %1162, %v1074
      %v1164 = vpop.permute.xlu0 %1163
      %1165 = vset.pattern.permute.xlu0 0
      %1166 = vperm.xlu0 %1165, %v1075
      %v1167 = vpop.permute.xlu0 %1166
      %1168 = vset.pattern.permute.xlu0 0
      %1169 = vperm.xlu0 %1168, %v1076
      %v1170 = vpop.permute.xlu0 %1169
      %1171 = vset.pattern.permute.xlu0 0
      %1172 = vperm.xlu0 %1171, %v1077
      %v1173 = vpop.permute.xlu0 %1172
      %1174 = vset.pattern.permute.xlu0 0
      %1175 = vperm.xlu0 %1174, %v1078
      %v1176 = vpop.permute.xlu0 %1175
      %1177 = vset.pattern.permute.xlu0 0
      %1178 = vperm.xlu0 %1177, %v1079
      %v1179 = vpop.permute.xlu0 %1178
      %1180 = vset.pattern.permute.xlu0 0
      %1181 = vperm.xlu0 %1180, %v1080
      %v1182 = vpop.permute.xlu0 %1181
      %1183 = vset.pattern.permute.xlu0 0
      %1184 = vperm.xlu0 %1183, %v1081
      %v1185 = vpop.permute.xlu0 %1184
      %1186 = vset.pattern.permute.xlu0 0
      %1187 = vperm.xlu0 %1186, %v1082
      %v1188 = vpop.permute.xlu0 %1187
      %1189 = vset.pattern.permute.xlu0 0
      %1190 = vperm.xlu0 %1189, %v1083
      %v1191 = vpop.permute.xlu0 %1190
      %1192 = vset.pattern.permute.xlu0 0
      %1193 = vperm.xlu0 %1192, %v1084
      %v1194 = vpop.permute.xlu0 %1193
      %1195 = vset.pattern.permute.xlu0 0
      %1196 = vperm.xlu0 %1195, %v1085
      %v1197 = vpop.permute.xlu0 %1196
      %1198 = vset.pattern.permute.xlu0 0
      %1199 = vperm.xlu0 %1198, %v1086
      %v1200 = vpop.permute.xlu0 %1199
      %1201 = vset.pattern.permute.xlu0 0
      %1202 = vperm.xlu0 %1201, %v1087
      %v1203 = vpop.permute.xlu0 %1202
      %1204 = vset.pattern.permute.xlu0 0
      %1205 = vperm.xlu0 %1204, %v1088
      %v1206 = vpop.permute.xlu0 %1205
      %1207 = vset.pattern.permute.xlu0 0
      %1208 = vperm.xlu0 %1207, %v1089
      %v1209 = vpop.permute.xlu0 %1208
      %1210 = vset.pattern.permute.xlu0 0
      %1211 = vperm.xlu0 %1210, %v1090
      %v1212 = vpop.permute.xlu0 %1211
      %1213 = vset.pattern.permute.xlu0 0
      %1214 = vperm.xlu0 %1213, %v1091
      %v1215 = vpop.permute.xlu0 %1214
      %1216 = vset.pattern.permute.xlu0 0
      %1217 = vperm.xlu0 %1216, %v1092
      %v1218 = vpop.permute.xlu0 %1217
      %1219 = vset.pattern.permute.xlu0 0
      %1220 = vperm.xlu0 %1219, %v1093
      %v1221 = vpop.permute.xlu0 %1220
      %1222 = vset.pattern.permute.xlu0 0
      %1223 = vperm.xlu0 %1222, %v1094
      %v1224 = vpop.permute.xlu0 %1223
      %1225 = vset.pattern.permute.xlu0 0
      %1226 = vperm.xlu0 %1225, %v1095
      %v1227 = vpop.permute.xlu0 %1226
      %1228 = vset.pattern.permute.xlu0 0
      %1229 = vperm.xlu0 %1228, %v1096
      %v1230 = vpop.permute.xlu0 %1229
      %1231 = vset.pattern.permute.xlu0 0
      %1232 = vperm.xlu0 %1231, %v1097
      %v1233 = vpop.permute.xlu0 %1232
      %1234 = vset.pattern.permute.xlu0 0
      %1235 = vperm.xlu0 %1234, %v1098
      %v1236 = vpop.permute.xlu0 %1235
      %1237 = vset.pattern.permute.xlu0 0
      %1238 = vperm.xlu0 %1237, %v1099
      %v1239 = vpop.permute.xlu0 %1238
      %1240 = vset.pattern.permute.xlu0 0
      %1241 = vperm.xlu0 %1240, %v1100
      %v1242 = vpop.permute.xlu0 %1241
      %1243 = vset.pattern.permute.xlu0 0
      %1244 = vperm.xlu0 %1243, %v1101
      %v1245 = vpop.permute.xlu0 %1244
      %1246 = vset.pattern.permute.xlu0 0
      %1247 = vperm.xlu0 %1246, %v1102
      %v1248 = vpop.permute.xlu0 %1247
      %1249 = vset.pattern.permute.xlu0 0
      %1250 = vperm.xlu0 %1249, %v1103
      %v1251 = vpop.permute.xlu0 %1250
      %1252 = vset.pattern.permute.xlu0 0
      %1253 = vperm.xlu0 %1252, %v1104
      %v1254 = vpop.permute.xlu0 %1253
      %1255 = vset.pattern.permute.xlu0 0
      %1256 = vperm.xlu0 %1255, %v1105
      %v1257 = vpop.permute.xlu0 %1256
      %1258 = vset.pattern.permute.xlu0 0
      %1259 = vperm.xlu0 %1258, %v1106
      %v1260 = vpop.permute.xlu0 %1259
      %1261 = vset.pattern.permute.xlu0 0
      %1262 = vperm.xlu0 %1261, %v1107
      %v1263 = vpop.permute.xlu0 %1262
      %1264 = vset.pattern.permute.xlu0 0
      %1265 = vperm.xlu0 %1264, %v1108
      %v1266 = vpop.permute.xlu0 %1265
      %1267 = vset.pattern.permute.xlu0 0
      %1268 = vperm.xlu0 %1267, %v1109
      %v1269 = vpop.permute.xlu0 %1268
      %1270 = vset.pattern.permute.xlu0 0
      %1271 = vperm.xlu0 %1270, %v1110
      %v1272 = vpop.permute.xlu0 %1271
      %1273 = vset.pattern.permute.xlu0 0
      %1274 = vperm.xlu0 %1273, %v1111
      %v1275 = vpop.permute.xlu0 %1274
      %1276 = vset.pattern.permute.xlu0 0
      %1277 = vperm.xlu0 %1276, %v1112
      %v1278 = vpop.permute.xlu0 %1277
      %1279 = vset.pattern.permute.xlu0 0
      %1280 = vperm.xlu0 %1279, %v1113
      %v1281 = vpop.permute.xlu0 %1280
      %1282 = vset.pattern.permute.xlu0 0
      %1283 = vperm.xlu0 %1282, %v1114
      %v1284 = vpop.permute.xlu0 %1283
      %1285 = vset.pattern.permute.xlu0 0
      %1286 = vperm.xlu0 %1285, %v1115
      %v1287 = vpop.permute.xlu0 %1286
      %1288 = vset.pattern.permute.xlu0 0
      %1289 = vperm.xlu0 %1288, %v1116
      %v1290 = vpop.permute.xlu0 %1289
      %1291 = vset.pattern.permute.xlu0 0
      %1292 = vperm.xlu0 %1291, %v1117
      %v1293 = vpop.permute.xlu0 %1292
      %1294 = vset.pattern.permute.xlu0 0
      %1295 = vperm.xlu0 %1294, %v1118
      %v1296 = vpop.permute.xlu0 %1295
      %1297 = vset.pattern.permute.xlu0 0
      %1298 = vperm.xlu0 %1297, %v1119
      %v1299 = vpop.permute.xlu0 %1298
      %1300 = vset.pattern.permute.xlu0 0
      %1301 = vperm.xlu0 %1300, %v1120
      %v1302 = vpop.permute.xlu0 %1301
      %1303 = vset.pattern.permute.xlu0 0
      %1304 = vperm.xlu0 %1303, %v1121
      %v1305 = vpop.permute.xlu0 %1304
      %1306 = vset.pattern.permute.xlu0 0
      %1307 = vperm.xlu0 %1306, %v1122
      %v1308 = vpop.permute.xlu0 %1307
      %1309 = vset.pattern.permute.xlu0 0
      %1310 = vperm.xlu0 %1309, %v1123
      %v1311 = vpop.permute.xlu0 %1310
      %1312 = vset.pattern.permute.xlu0 0
      %1313 = vperm.xlu0 %1312, %v1124
      %v1314 = vpop.permute.xlu0 %1313
      %1315 = vset.pattern.permute.xlu0 0
      %1316 = vperm.xlu0 %1315, %v1125
      %v1317 = vpop.permute.xlu0 %1316
      %1318 = vset.pattern.permute.xlu0 0
      %1319 = vperm.xlu0 %1318, %v1126
      %v1320 = vpop.permute.xlu0 %1319
      %v1321 = vsub.s32 %v1128, %v1131
      %v1322 = vsub.s32 %v1128, %v1134
      %v1323 = vsub.s32 %v1128, %v1137
      %v1324 = vsub.s32 %v1128, %v1140
      %v1325 = vsub.s32 %v1128, %v1143
      %v1326 = vsub.s32 %v1128, %v1146
      %v1327 = vsub.s32 %v1128, %v1149
      %v1328 = vsub.s32 %v1128, %v1152
      %v1329 = vsub.s32 %v1128, %v1155
      %v1330 = vsub.s32 %v1128, %v1158
      %v1331 = vsub.s32 %v1128, %v1161
      %v1332 = vsub.s32 %v1128, %v1164
      %v1333 = vsub.s32 %v1128, %v1167
      %v1334 = vsub.s32 %v1128, %v1170
      %v1335 = vsub.s32 %v1128, %v1173
      %v1336 = vsub.s32 %v1128, %v1176
      %v1337 = vsub.s32 %v1128, %v1179
      %v1338 = vsub.s32 %v1128, %v1182
      %v1339 = vsub.s32 %v1128, %v1185
      %v1340 = vsub.s32 %v1128, %v1188
      %v1341 = vsub.s32 %v1128, %v1191
      %v1342 = vsub.s32 %v1128, %v1194
      %v1343 = vsub.s32 %v1128, %v1197
      %v1344 = vsub.s32 %v1128, %v1200
      %v1345 = vsub.s32 %v1128, %v1203
      %v1346 = vsub.s32 %v1128, %v1206
      %v1347 = vsub.s32 %v1128, %v1209
      %v1348 = vsub.s32 %v1128, %v1212
      %v1349 = vsub.s32 %v1128, %v1215
      %v1350 = vsub.s32 %v1128, %v1218
      %v1351 = vsub.s32 %v1128, %v1221
      %v1352 = vsub.s32 %v1128, %v1224
      %v1353 = vsub.s32 %v1128, %v1227
      %v1354 = vsub.s32 %v1128, %v1230
      %v1355 = vsub.s32 %v1128, %v1233
      %v1356 = vsub.s32 %v1128, %v1236
      %v1357 = vsub.s32 %v1128, %v1239
      %v1358 = vsub.s32 %v1128, %v1242
      %v1359 = vsub.s32 %v1128, %v1245
      %v1360 = vsub.s32 %v1128, %v1248
      %v1361 = vsub.s32 %v1128, %v1251
      %v1362 = vsub.s32 %v1128, %v1254
      %v1363 = vsub.s32 %v1128, %v1257
      %v1364 = vsub.s32 %v1128, %v1260
      %v1365 = vsub.s32 %v1128, %v1263
      %v1366 = vsub.s32 %v1128, %v1266
      %v1367 = vsub.s32 %v1128, %v1269
      %v1368 = vsub.s32 %v1128, %v1272
      %v1369 = vsub.s32 %v1128, %v1275
      %v1370 = vsub.s32 %v1128, %v1278
      %v1371 = vsub.s32 %v1128, %v1281
      %v1372 = vsub.s32 %v1128, %v1284
      %v1373 = vsub.s32 %v1128, %v1287
      %v1374 = vsub.s32 %v1128, %v1290
      %v1375 = vsub.s32 %v1128, %v1293
      %v1376 = vsub.s32 %v1128, %v1296
      %v1377 = vsub.s32 %v1128, %v1299
      %v1378 = vsub.s32 %v1128, %v1302
      %v1379 = vsub.s32 %v1128, %v1305
      %v1380 = vsub.s32 %v1128, %v1308
      %v1381 = vsub.s32 %v1128, %v1311
      %v1382 = vsub.s32 %v1128, %v1314
      %v1383 = vsub.s32 %v1128, %v1317
      %v1384 = vsub.s32 %v1128, %v1320
      %vm1385 = vcmp.eq.s32.totalorder %v1321, 0
      %vm1386 = vcmp.eq.s32.totalorder %v1322, 0
      %vm1387 = vcmp.eq.s32.totalorder %v1323, 0
      %vm1388 = vcmp.eq.s32.totalorder %v1324, 0
      %vm1389 = vcmp.eq.s32.totalorder %v1325, 0
      %vm1390 = vcmp.eq.s32.totalorder %v1326, 0
      %vm1391 = vcmp.eq.s32.totalorder %v1327, 0
      %vm1392 = vcmp.eq.s32.totalorder %v1328, 0
      %vm1393 = vcmp.eq.s32.totalorder %v1329, 0
      %vm1394 = vcmp.eq.s32.totalorder %v1330, 0
      %vm1395 = vcmp.eq.s32.totalorder %v1331, 0
      %vm1396 = vcmp.eq.s32.totalorder %v1332, 0
      %vm1397 = vcmp.eq.s32.totalorder %v1333, 0
      %vm1398 = vcmp.eq.s32.totalorder %v1334, 0
      %vm1399 = vcmp.eq.s32.totalorder %v1335, 0
      %vm1400 = vcmp.eq.s32.totalorder %v1336, 0
      %vm1401 = vcmp.eq.s32.totalorder %v1337, 0
      %vm1402 = vcmp.eq.s32.totalorder %v1338, 0
      %vm1403 = vcmp.eq.s32.totalorder %v1339, 0
      %vm1404 = vcmp.eq.s32.totalorder %v1340, 0
      %vm1405 = vcmp.eq.s32.totalorder %v1341, 0
      %vm1406 = vcmp.eq.s32.totalorder %v1342, 0
      %vm1407 = vcmp.eq.s32.totalorder %v1343, 0
      %vm1408 = vcmp.eq.s32.totalorder %v1344, 0
      %vm1409 = vcmp.eq.s32.totalorder %v1345, 0
      %vm1410 = vcmp.eq.s32.totalorder %v1346, 0
      %vm1411 = vcmp.eq.s32.totalorder %v1347, 0
      %vm1412 = vcmp.eq.s32.totalorder %v1348, 0
      %vm1413 = vcmp.eq.s32.totalorder %v1349, 0
      %vm1414 = vcmp.eq.s32.totalorder %v1350, 0
      %vm1415 = vcmp.eq.s32.totalorder %v1351, 0
      %vm1416 = vcmp.eq.s32.totalorder %v1352, 0
      %vm1417 = vcmp.eq.s32.totalorder %v1353, 0
      %vm1418 = vcmp.eq.s32.totalorder %v1354, 0
      %vm1419 = vcmp.eq.s32.totalorder %v1355, 0
      %vm1420 = vcmp.eq.s32.totalorder %v1356, 0
      %vm1421 = vcmp.eq.s32.totalorder %v1357, 0
      %vm1422 = vcmp.eq.s32.totalorder %v1358, 0
      %vm1423 = vcmp.eq.s32.totalorder %v1359, 0
      %vm1424 = vcmp.eq.s32.totalorder %v1360, 0
      %vm1425 = vcmp.eq.s32.totalorder %v1361, 0
      %vm1426 = vcmp.eq.s32.totalorder %v1362, 0
      %vm1427 = vcmp.eq.s32.totalorder %v1363, 0
      %vm1428 = vcmp.eq.s32.totalorder %v1364, 0
      %vm1429 = vcmp.eq.s32.totalorder %v1365, 0
      %vm1430 = vcmp.eq.s32.totalorder %v1366, 0
      %vm1431 = vcmp.eq.s32.totalorder %v1367, 0
      %vm1432 = vcmp.eq.s32.totalorder %v1368, 0
      %vm1433 = vcmp.eq.s32.totalorder %v1369, 0
      %vm1434 = vcmp.eq.s32.totalorder %v1370, 0
      %vm1435 = vcmp.eq.s32.totalorder %v1371, 0
      %vm1436 = vcmp.eq.s32.totalorder %v1372, 0
      %vm1437 = vcmp.eq.s32.totalorder %v1373, 0
      %vm1438 = vcmp.eq.s32.totalorder %v1374, 0
      %vm1439 = vcmp.eq.s32.totalorder %v1375, 0
      %vm1440 = vcmp.eq.s32.totalorder %v1376, 0
      %vm1441 = vcmp.eq.s32.totalorder %v1377, 0
      %vm1442 = vcmp.eq.s32.totalorder %v1378, 0
      %vm1443 = vcmp.eq.s32.totalorder %v1379, 0
      %vm1444 = vcmp.eq.s32.totalorder %v1380, 0
      %vm1445 = vcmp.eq.s32.totalorder %v1381, 0
      %vm1446 = vcmp.eq.s32.totalorder %v1382, 0
      %vm1447 = vcmp.eq.s32.totalorder %v1383, 0
      %vm1448 = vcmp.eq.s32.totalorder %v1384, 0
      %1513 = vrot.lane.b32.xlu0 %v807, 127
      %v1514 = vpop.permute.xlu0 %1513
      %1515 = vrot.lane.b32.xlu0 %v808, 127
      %v1516 = vpop.permute.xlu0 %1515
      %1517 = vrot.lane.b32.xlu0 %v809, 127
      %v1518 = vpop.permute.xlu0 %1517
      %1519 = vrot.lane.b32.xlu0 %v810, 127
      %v1520 = vpop.permute.xlu0 %1519
      %1521 = vrot.lane.b32.xlu0 %v811, 127
      %v1522 = vpop.permute.xlu0 %1521
      %1523 = vrot.lane.b32.xlu0 %v812, 127
      %v1524 = vpop.permute.xlu0 %1523
      %1525 = vrot.lane.b32.xlu0 %v813, 127
      %v1526 = vpop.permute.xlu0 %1525
      %1527 = vrot.lane.b32.xlu0 %v814, 127
      %v1528 = vpop.permute.xlu0 %1527
      %1529 = vrot.lane.b32.xlu0 %v815, 127
      %v1530 = vpop.permute.xlu0 %1529
      %1531 = vrot.lane.b32.xlu0 %v816, 127
      %v1532 = vpop.permute.xlu0 %1531
      %1533 = vrot.lane.b32.xlu0 %v817, 127
      %v1534 = vpop.permute.xlu0 %1533
      %1535 = vrot.lane.b32.xlu0 %v818, 127
      %v1536 = vpop.permute.xlu0 %1535
      %1537 = vrot.lane.b32.xlu0 %v819, 127
      %v1538 = vpop.permute.xlu0 %1537
      %1539 = vrot.lane.b32.xlu0 %v820, 127
      %v1540 = vpop.permute.xlu0 %1539
      %1541 = vrot.lane.b32.xlu0 %v821, 127
      %v1542 = vpop.permute.xlu0 %1541
      %1543 = vrot.lane.b32.xlu0 %v822, 127
      %v1544 = vpop.permute.xlu0 %1543
      %1545 = vrot.lane.b32.xlu0 %v823, 127
      %v1546 = vpop.permute.xlu0 %1545
      %1547 = vrot.lane.b32.xlu0 %v824, 127
      %v1548 = vpop.permute.xlu0 %1547
      %1549 = vrot.lane.b32.xlu0 %v825, 127
      %v1550 = vpop.permute.xlu0 %1549
      %1551 = vrot.lane.b32.xlu0 %v826, 127
      %v1552 = vpop.permute.xlu0 %1551
      %1553 = vrot.lane.b32.xlu0 %v827, 127
      %v1554 = vpop.permute.xlu0 %1553
      %1555 = vrot.lane.b32.xlu0 %v828, 127
      %v1556 = vpop.permute.xlu0 %1555
      %1557 = vrot.lane.b32.xlu0 %v829, 127
      %v1558 = vpop.permute.xlu0 %1557
      %1559 = vrot.lane.b32.xlu0 %v830, 127
      %v1560 = vpop.permute.xlu0 %1559
      %1561 = vrot.lane.b32.xlu0 %v831, 127
      %v1562 = vpop.permute.xlu0 %1561
      %1563 = vrot.lane.b32.xlu0 %v832, 127
      %v1564 = vpop.permute.xlu0 %1563
      %1565 = vrot.lane.b32.xlu0 %v833, 127
      %v1566 = vpop.permute.xlu0 %1565
      %1567 = vrot.lane.b32.xlu0 %v834, 127
      %v1568 = vpop.permute.xlu0 %1567
      %1569 = vrot.lane.b32.xlu0 %v835, 127
      %v1570 = vpop.permute.xlu0 %1569
      %1571 = vrot.lane.b32.xlu0 %v836, 127
      %v1572 = vpop.permute.xlu0 %1571
      %1573 = vrot.lane.b32.xlu0 %v837, 127
      %v1574 = vpop.permute.xlu0 %1573
      %1575 = vrot.lane.b32.xlu0 %v838, 127
      %v1576 = vpop.permute.xlu0 %1575
      %1577 = vrot.lane.b32.xlu0 %v839, 127
      %v1578 = vpop.permute.xlu0 %1577
      %1579 = vrot.lane.b32.xlu0 %v840, 127
      %v1580 = vpop.permute.xlu0 %1579
      %1581 = vrot.lane.b32.xlu0 %v841, 127
      %v1582 = vpop.permute.xlu0 %1581
      %1583 = vrot.lane.b32.xlu0 %v842, 127
      %v1584 = vpop.permute.xlu0 %1583
      %1585 = vrot.lane.b32.xlu0 %v843, 127
      %v1586 = vpop.permute.xlu0 %1585
      %1587 = vrot.lane.b32.xlu0 %v844, 127
      %v1588 = vpop.permute.xlu0 %1587
      %1589 = vrot.lane.b32.xlu0 %v845, 127
      %v1590 = vpop.permute.xlu0 %1589
      %1591 = vrot.lane.b32.xlu0 %v846, 127
      %v1592 = vpop.permute.xlu0 %1591
      %1593 = vrot.lane.b32.xlu0 %v847, 127
      %v1594 = vpop.permute.xlu0 %1593
      %1595 = vrot.lane.b32.xlu0 %v848, 127
      %v1596 = vpop.permute.xlu0 %1595
      %1597 = vrot.lane.b32.xlu0 %v849, 127
      %v1598 = vpop.permute.xlu0 %1597
      %1599 = vrot.lane.b32.xlu0 %v850, 127
      %v1600 = vpop.permute.xlu0 %1599
      %1601 = vrot.lane.b32.xlu0 %v851, 127
      %v1602 = vpop.permute.xlu0 %1601
      %1603 = vrot.lane.b32.xlu0 %v852, 127
      %v1604 = vpop.permute.xlu0 %1603
      %1605 = vrot.lane.b32.xlu0 %v853, 127
      %v1606 = vpop.permute.xlu0 %1605
      %1607 = vrot.lane.b32.xlu0 %v854, 127
      %v1608 = vpop.permute.xlu0 %1607
      %1609 = vrot.lane.b32.xlu0 %v855, 127
      %v1610 = vpop.permute.xlu0 %1609
      %1611 = vrot.lane.b32.xlu0 %v856, 127
      %v1612 = vpop.permute.xlu0 %1611
      %1613 = vrot.lane.b32.xlu0 %v857, 127
      %v1614 = vpop.permute.xlu0 %1613
      %1615 = vrot.lane.b32.xlu0 %v858, 127
      %v1616 = vpop.permute.xlu0 %1615
      %1617 = vrot.lane.b32.xlu0 %v859, 127
      %v1618 = vpop.permute.xlu0 %1617
      %1619 = vrot.lane.b32.xlu0 %v860, 127
      %v1620 = vpop.permute.xlu0 %1619
      %1621 = vrot.lane.b32.xlu0 %v861, 127
      %v1622 = vpop.permute.xlu0 %1621
      %1623 = vrot.lane.b32.xlu0 %v862, 127
      %v1624 = vpop.permute.xlu0 %1623
      %1625 = vrot.lane.b32.xlu0 %v863, 127
      %v1626 = vpop.permute.xlu0 %1625
      %1627 = vrot.lane.b32.xlu0 %v864, 127
      %v1628 = vpop.permute.xlu0 %1627
      %1629 = vrot.lane.b32.xlu0 %v865, 127
      %v1630 = vpop.permute.xlu0 %1629
      %1631 = vrot.lane.b32.xlu0 %v866, 127
      %v1632 = vpop.permute.xlu0 %1631
      %1633 = vrot.lane.b32.xlu0 %v867, 127
      %v1634 = vpop.permute.xlu0 %1633
      %1635 = vrot.lane.b32.xlu0 %v868, 127
      %v1636 = vpop.permute.xlu0 %1635
      %1637 = vrot.lane.b32.xlu0 %v869, 127
      %v1638 = vpop.permute.xlu0 %1637
      %1639 = vrot.lane.b32.xlu0 %v870, 127
      %v1640 = vpop.permute.xlu0 %1639
      %v1705 = vmul.f32 %v807, %v1514
      %v1706 = vmul.f32 %v808, %v1516
      %v1707 = vmul.f32 %v809, %v1518
      %v1708 = vmul.f32 %v810, %v1520
      %v1709 = vmul.f32 %v811, %v1522
      %v1710 = vmul.f32 %v812, %v1524
      %v1711 = vmul.f32 %v813, %v1526
      %v1712 = vmul.f32 %v814, %v1528
      %v1713 = vmul.f32 %v815, %v1530
      %v1714 = vmul.f32 %v816, %v1532
      %v1715 = vmul.f32 %v817, %v1534
      %v1716 = vmul.f32 %v818, %v1536
      %v1717 = vmul.f32 %v819, %v1538
      %v1718 = vmul.f32 %v820, %v1540
      %v1719 = vmul.f32 %v821, %v1542
      %v1720 = vmul.f32 %v822, %v1544
      %v1721 = vmul.f32 %v823, %v1546
      %v1722 = vmul.f32 %v824, %v1548
      %v1723 = vmul.f32 %v825, %v1550
      %v1724 = vmul.f32 %v826, %v1552
      %v1725 = vmul.f32 %v827, %v1554
      %v1726 = vmul.f32 %v828, %v1556
      %v1727 = vmul.f32 %v829, %v1558
      %v1728 = vmul.f32 %v830, %v1560
      %v1729 = vmul.f32 %v831, %v1562
      %v1730 = vmul.f32 %v832, %v1564
      %v1731 = vmul.f32 %v833, %v1566
      %v1732 = vmul.f32 %v834, %v1568
      %v1733 = vmul.f32 %v835, %v1570
      %v1734 = vmul.f32 %v836, %v1572
      %v1735 = vmul.f32 %v837, %v1574
      %v1736 = vmul.f32 %v838, %v1576
      %v1737 = vmul.f32 %v839, %v1578
      %v1738 = vmul.f32 %v840, %v1580
      %v1739 = vmul.f32 %v841, %v1582
      %v1740 = vmul.f32 %v842, %v1584
      %v1741 = vmul.f32 %v843, %v1586
      %v1742 = vmul.f32 %v844, %v1588
      %v1743 = vmul.f32 %v845, %v1590
      %v1744 = vmul.f32 %v846, %v1592
      %v1745 = vmul.f32 %v847, %v1594
      %v1746 = vmul.f32 %v848, %v1596
      %v1747 = vmul.f32 %v849, %v1598
      %v1748 = vmul.f32 %v850, %v1600
      %v1749 = vmul.f32 %v851, %v1602
      %v1750 = vmul.f32 %v852, %v1604
      %v1751 = vmul.f32 %v853, %v1606
      %v1752 = vmul.f32 %v854, %v1608
      %v1753 = vmul.f32 %v855, %v1610
      %v1754 = vmul.f32 %v856, %v1612
      %v1755 = vmul.f32 %v857, %v1614
      %v1756 = vmul.f32 %v858, %v1616
      %v1757 = vmul.f32 %v859, %v1618
      %v1758 = vmul.f32 %v860, %v1620
      %v1759 = vmul.f32 %v861, %v1622
      %v1760 = vmul.f32 %v862, %v1624
      %v1761 = vmul.f32 %v863, %v1626
      %v1762 = vmul.f32 %v864, %v1628
      %v1763 = vmul.f32 %v865, %v1630
      %v1764 = vmul.f32 %v866, %v1632
      %v1765 = vmul.f32 %v867, %v1634
      %v1766 = vmul.f32 %v868, %v1636
      %v1767 = vmul.f32 %v869, %v1638
      %v1768 = vmul.f32 %v870, %v1640
      %1770 = vset.pattern.permute.xlu0 0
      %1771 = vperm.xlu0 %1770, %v1705
      %v1772 = vpop.permute.xlu0 %1771
      %1775 = vset.pattern.permute.xlu0 0
      %1776 = vperm.xlu0 %1775, %v1706
      %v1777 = vpop.permute.xlu0 %1776
      %1780 = vset.pattern.permute.xlu0 0
      %1781 = vperm.xlu0 %1780, %v1707
      %v1782 = vpop.permute.xlu0 %1781
      %1785 = vset.pattern.permute.xlu0 0
      %1786 = vperm.xlu0 %1785, %v1708
      %v1787 = vpop.permute.xlu0 %1786
      %1790 = vset.pattern.permute.xlu0 0
      %1791 = vperm.xlu0 %1790, %v1709
      %v1792 = vpop.permute.xlu0 %1791
      %1795 = vset.pattern.permute.xlu0 0
      %1796 = vperm.xlu0 %1795, %v1710
      %v1797 = vpop.permute.xlu0 %1796
      %1800 = vset.pattern.permute.xlu0 0
      %1801 = vperm.xlu0 %1800, %v1711
      %v1802 = vpop.permute.xlu0 %1801
      %1805 = vset.pattern.permute.xlu0 0
      %1806 = vperm.xlu0 %1805, %v1712
      %v1807 = vpop.permute.xlu0 %1806
      %1810 = vset.pattern.permute.xlu0 0
      %1811 = vperm.xlu0 %1810, %v1713
      %v1812 = vpop.permute.xlu0 %1811
      %1815 = vset.pattern.permute.xlu0 0
      %1816 = vperm.xlu0 %1815, %v1714
      %v1817 = vpop.permute.xlu0 %1816
      %1820 = vset.pattern.permute.xlu0 0
      %1821 = vperm.xlu0 %1820, %v1715
      %v1822 = vpop.permute.xlu0 %1821
      %1825 = vset.pattern.permute.xlu0 0
      %1826 = vperm.xlu0 %1825, %v1716
      %v1827 = vpop.permute.xlu0 %1826
      %1830 = vset.pattern.permute.xlu0 0
      %1831 = vperm.xlu0 %1830, %v1717
      %v1832 = vpop.permute.xlu0 %1831
      %1835 = vset.pattern.permute.xlu0 0
      %1836 = vperm.xlu0 %1835, %v1718
      %v1837 = vpop.permute.xlu0 %1836
      %1840 = vset.pattern.permute.xlu0 0
      %1841 = vperm.xlu0 %1840, %v1719
      %v1842 = vpop.permute.xlu0 %1841
      %1845 = vset.pattern.permute.xlu0 0
      %1846 = vperm.xlu0 %1845, %v1720
      %v1847 = vpop.permute.xlu0 %1846
      %1850 = vset.pattern.permute.xlu0 0
      %1851 = vperm.xlu0 %1850, %v1721
      %v1852 = vpop.permute.xlu0 %1851
      %1855 = vset.pattern.permute.xlu0 0
      %1856 = vperm.xlu0 %1855, %v1722
      %v1857 = vpop.permute.xlu0 %1856
      %1860 = vset.pattern.permute.xlu0 0
      %1861 = vperm.xlu0 %1860, %v1723
      %v1862 = vpop.permute.xlu0 %1861
      %1865 = vset.pattern.permute.xlu0 0
      %1866 = vperm.xlu0 %1865, %v1724
      %v1867 = vpop.permute.xlu0 %1866
      %1870 = vset.pattern.permute.xlu0 0
      %1871 = vperm.xlu0 %1870, %v1725
      %v1872 = vpop.permute.xlu0 %1871
      %1875 = vset.pattern.permute.xlu0 0
      %1876 = vperm.xlu0 %1875, %v1726
      %v1877 = vpop.permute.xlu0 %1876
      %1880 = vset.pattern.permute.xlu0 0
      %1881 = vperm.xlu0 %1880, %v1727
      %v1882 = vpop.permute.xlu0 %1881
      %1885 = vset.pattern.permute.xlu0 0
      %1886 = vperm.xlu0 %1885, %v1728
      %v1887 = vpop.permute.xlu0 %1886
      %1890 = vset.pattern.permute.xlu0 0
      %1891 = vperm.xlu0 %1890, %v1729
      %v1892 = vpop.permute.xlu0 %1891
      %1895 = vset.pattern.permute.xlu0 0
      %1896 = vperm.xlu0 %1895, %v1730
      %v1897 = vpop.permute.xlu0 %1896
      %1900 = vset.pattern.permute.xlu0 0
      %1901 = vperm.xlu0 %1900, %v1731
      %v1902 = vpop.permute.xlu0 %1901
      %1905 = vset.pattern.permute.xlu0 0
      %1906 = vperm.xlu0 %1905, %v1732
      %v1907 = vpop.permute.xlu0 %1906
      %1910 = vset.pattern.permute.xlu0 0
      %1911 = vperm.xlu0 %1910, %v1733
      %v1912 = vpop.permute.xlu0 %1911
      %1915 = vset.pattern.permute.xlu0 0
      %1916 = vperm.xlu0 %1915, %v1734
      %v1917 = vpop.permute.xlu0 %1916
      %1920 = vset.pattern.permute.xlu0 0
      %1921 = vperm.xlu0 %1920, %v1735
      %v1922 = vpop.permute.xlu0 %1921
      %1925 = vset.pattern.permute.xlu0 0
      %1926 = vperm.xlu0 %1925, %v1736
      %v1927 = vpop.permute.xlu0 %1926
      %1930 = vset.pattern.permute.xlu0 0
      %1931 = vperm.xlu0 %1930, %v1737
      %v1932 = vpop.permute.xlu0 %1931
      %1935 = vset.pattern.permute.xlu0 0
      %1936 = vperm.xlu0 %1935, %v1738
      %v1937 = vpop.permute.xlu0 %1936
      %1940 = vset.pattern.permute.xlu0 0
      %1941 = vperm.xlu0 %1940, %v1739
      %v1942 = vpop.permute.xlu0 %1941
      %1945 = vset.pattern.permute.xlu0 0
      %1946 = vperm.xlu0 %1945, %v1740
      %v1947 = vpop.permute.xlu0 %1946
      %1950 = vset.pattern.permute.xlu0 0
      %1951 = vperm.xlu0 %1950, %v1741
      %v1952 = vpop.permute.xlu0 %1951
      %1955 = vset.pattern.permute.xlu0 0
      %1956 = vperm.xlu0 %1955, %v1742
      %v1957 = vpop.permute.xlu0 %1956
      %1960 = vset.pattern.permute.xlu0 0
      %1961 = vperm.xlu0 %1960, %v1743
      %v1962 = vpop.permute.xlu0 %1961
      %1965 = vset.pattern.permute.xlu0 0
      %1966 = vperm.xlu0 %1965, %v1744
      %v1967 = vpop.permute.xlu0 %1966
      %1970 = vset.pattern.permute.xlu0 0
      %1971 = vperm.xlu0 %1970, %v1745
      %v1972 = vpop.permute.xlu0 %1971
      %1975 = vset.pattern.permute.xlu0 0
      %1976 = vperm.xlu0 %1975, %v1746
      %v1977 = vpop.permute.xlu0 %1976
      %1980 = vset.pattern.permute.xlu0 0
      %1981 = vperm.xlu0 %1980, %v1747
      %v1982 = vpop.permute.xlu0 %1981
      %1985 = vset.pattern.permute.xlu0 0
      %1986 = vperm.xlu0 %1985, %v1748
      %v1987 = vpop.permute.xlu0 %1986
      %1990 = vset.pattern.permute.xlu0 0
      %1991 = vperm.xlu0 %1990, %v1749
      %v1992 = vpop.permute.xlu0 %1991
      %1995 = vset.pattern.permute.xlu0 0
      %1996 = vperm.xlu0 %1995, %v1750
      %v1997 = vpop.permute.xlu0 %1996
      %2000 = vset.pattern.permute.xlu0 0
      %2001 = vperm.xlu0 %2000, %v1751
      %v2002 = vpop.permute.xlu0 %2001
      %2005 = vset.pattern.permute.xlu0 0
      %2006 = vperm.xlu0 %2005, %v1752
      %v2007 = vpop.permute.xlu0 %2006
      %2010 = vset.pattern.permute.xlu0 0
      %2011 = vperm.xlu0 %2010, %v1753
      %v2012 = vpop.permute.xlu0 %2011
      %2015 = vset.pattern.permute.xlu0 0
      %2016 = vperm.xlu0 %2015, %v1754
      %v2017 = vpop.permute.xlu0 %2016
      %2020 = vset.pattern.permute.xlu0 0
      %2021 = vperm.xlu0 %2020, %v1755
      %v2022 = vpop.permute.xlu0 %2021
      %2025 = vset.pattern.permute.xlu0 0
      %2026 = vperm.xlu0 %2025, %v1756
      %v2027 = vpop.permute.xlu0 %2026
      %2030 = vset.pattern.permute.xlu0 0
      %2031 = vperm.xlu0 %2030, %v1757
      %v2032 = vpop.permute.xlu0 %2031
      %2035 = vset.pattern.permute.xlu0 0
      %2036 = vperm.xlu0 %2035, %v1758
      %v2037 = vpop.permute.xlu0 %2036
      %2040 = vset.pattern.permute.xlu0 0
      %2041 = vperm.xlu0 %2040, %v1759
      %v2042 = vpop.permute.xlu0 %2041
      %2045 = vset.pattern.permute.xlu0 0
      %2046 = vperm.xlu0 %2045, %v1760
      %v2047 = vpop.permute.xlu0 %2046
      %2050 = vset.pattern.permute.xlu0 0
      %2051 = vperm.xlu0 %2050, %v1761
      %v2052 = vpop.permute.xlu0 %2051
      %2055 = vset.pattern.permute.xlu0 0
      %2056 = vperm.xlu0 %2055, %v1762
      %v2057 = vpop.permute.xlu0 %2056
      %2060 = vset.pattern.permute.xlu0 0
      %2061 = vperm.xlu0 %2060, %v1763
      %v2062 = vpop.permute.xlu0 %2061
      %2065 = vset.pattern.permute.xlu0 0
      %2066 = vperm.xlu0 %2065, %v1764
      %v2067 = vpop.permute.xlu0 %2066
      %2070 = vset.pattern.permute.xlu0 0
      %2071 = vperm.xlu0 %2070, %v1765
      %v2072 = vpop.permute.xlu0 %2071
      %2075 = vset.pattern.permute.xlu0 0
      %2076 = vperm.xlu0 %2075, %v1766
      %v2077 = vpop.permute.xlu0 %2076
      %2080 = vset.pattern.permute.xlu0 0
      %2081 = vperm.xlu0 %2080, %v1767
      %v2082 = vpop.permute.xlu0 %2081
      %2085 = vset.pattern.permute.xlu0 0
      %2086 = vperm.xlu0 %2085, %v1768
      %v2087 = vpop.permute.xlu0 %2086
      %v2089 = vsel %vm1385, %v1772, 0.0
      %v2090 = vsel %vm1386, %v1777, 0.0
      %v2091 = vsel %vm1387, %v1782, 0.0
      %v2092 = vsel %vm1388, %v1787, 0.0
      %v2093 = vsel %vm1389, %v1792, 0.0
      %v2094 = vsel %vm1390, %v1797, 0.0
      %v2095 = vsel %vm1391, %v1802, 0.0
      %v2096 = vsel %vm1392, %v1807, 0.0
      %v2097 = vsel %vm1393, %v1812, 0.0
      %v2098 = vsel %vm1394, %v1817, 0.0
      %v2099 = vsel %vm1395, %v1822, 0.0
      %v2100 = vsel %vm1396, %v1827, 0.0
      %v2101 = vsel %vm1397, %v1832, 0.0
      %v2102 = vsel %vm1398, %v1837, 0.0
      %v2103 = vsel %vm1399, %v1842, 0.0
      %v2104 = vsel %vm1400, %v1847, 0.0
      %v2105 = vsel %vm1401, %v1852, 0.0
      %v2106 = vsel %vm1402, %v1857, 0.0
      %v2107 = vsel %vm1403, %v1862, 0.0
      %v2108 = vsel %vm1404, %v1867, 0.0
      %v2109 = vsel %vm1405, %v1872, 0.0
      %v2110 = vsel %vm1406, %v1877, 0.0
      %v2111 = vsel %vm1407, %v1882, 0.0
      %v2112 = vsel %vm1408, %v1887, 0.0
      %v2113 = vsel %vm1409, %v1892, 0.0
      %v2114 = vsel %vm1410, %v1897, 0.0
      %v2115 = vsel %vm1411, %v1902, 0.0
      %v2116 = vsel %vm1412, %v1907, 0.0
      %v2117 = vsel %vm1413, %v1912, 0.0
      %v2118 = vsel %vm1414, %v1917, 0.0
      %v2119 = vsel %vm1415, %v1922, 0.0
      %v2120 = vsel %vm1416, %v1927, 0.0
      %v2121 = vsel %vm1417, %v1932, 0.0
      %v2122 = vsel %vm1418, %v1937, 0.0
      %v2123 = vsel %vm1419, %v1942, 0.0
      %v2124 = vsel %vm1420, %v1947, 0.0
      %v2125 = vsel %vm1421, %v1952, 0.0
      %v2126 = vsel %vm1422, %v1957, 0.0
      %v2127 = vsel %vm1423, %v1962, 0.0
      %v2128 = vsel %vm1424, %v1967, 0.0
      %v2129 = vsel %vm1425, %v1972, 0.0
      %v2130 = vsel %vm1426, %v1977, 0.0
      %v2131 = vsel %vm1427, %v1982, 0.0
      %v2132 = vsel %vm1428, %v1987, 0.0
      %v2133 = vsel %vm1429, %v1992, 0.0
      %v2134 = vsel %vm1430, %v1997, 0.0
      %v2135 = vsel %vm1431, %v2002, 0.0
      %v2136 = vsel %vm1432, %v2007, 0.0
      %v2137 = vsel %vm1433, %v2012, 0.0
      %v2138 = vsel %vm1434, %v2017, 0.0
      %v2139 = vsel %vm1435, %v2022, 0.0
      %v2140 = vsel %vm1436, %v2027, 0.0
      %v2141 = vsel %vm1437, %v2032, 0.0
      %v2142 = vsel %vm1438, %v2037, 0.0
      %v2143 = vsel %vm1439, %v2042, 0.0
      %v2144 = vsel %vm1440, %v2047, 0.0
      %v2145 = vsel %vm1441, %v2052, 0.0
      %v2146 = vsel %vm1442, %v2057, 0.0
      %v2147 = vsel %vm1443, %v2062, 0.0
      %v2148 = vsel %vm1444, %v2067, 0.0
      %v2149 = vsel %vm1445, %v2072, 0.0
      %v2150 = vsel %vm1446, %v2077, 0.0
      %v2151 = vsel %vm1447, %v2082, 0.0
      %v2152 = vsel %vm1448, %v2087, 0.0
      %vm2153 = vcmp.eq.s32.totalorder %v1321, 1
      %vm2154 = vcmp.eq.s32.totalorder %v1322, 1
      %vm2155 = vcmp.eq.s32.totalorder %v1323, 1
      %vm2156 = vcmp.eq.s32.totalorder %v1324, 1
      %vm2157 = vcmp.eq.s32.totalorder %v1325, 1
      %vm2158 = vcmp.eq.s32.totalorder %v1326, 1
      %vm2159 = vcmp.eq.s32.totalorder %v1327, 1
      %vm2160 = vcmp.eq.s32.totalorder %v1328, 1
      %vm2161 = vcmp.eq.s32.totalorder %v1329, 1
      %vm2162 = vcmp.eq.s32.totalorder %v1330, 1
      %vm2163 = vcmp.eq.s32.totalorder %v1331, 1
      %vm2164 = vcmp.eq.s32.totalorder %v1332, 1
      %vm2165 = vcmp.eq.s32.totalorder %v1333, 1
      %vm2166 = vcmp.eq.s32.totalorder %v1334, 1
      %vm2167 = vcmp.eq.s32.totalorder %v1335, 1
      %vm2168 = vcmp.eq.s32.totalorder %v1336, 1
      %vm2169 = vcmp.eq.s32.totalorder %v1337, 1
      %vm2170 = vcmp.eq.s32.totalorder %v1338, 1
      %vm2171 = vcmp.eq.s32.totalorder %v1339, 1
      %vm2172 = vcmp.eq.s32.totalorder %v1340, 1
      %vm2173 = vcmp.eq.s32.totalorder %v1341, 1
      %vm2174 = vcmp.eq.s32.totalorder %v1342, 1
      %vm2175 = vcmp.eq.s32.totalorder %v1343, 1
      %vm2176 = vcmp.eq.s32.totalorder %v1344, 1
      %vm2177 = vcmp.eq.s32.totalorder %v1345, 1
      %vm2178 = vcmp.eq.s32.totalorder %v1346, 1
      %vm2179 = vcmp.eq.s32.totalorder %v1347, 1
      %vm2180 = vcmp.eq.s32.totalorder %v1348, 1
      %vm2181 = vcmp.eq.s32.totalorder %v1349, 1
      %vm2182 = vcmp.eq.s32.totalorder %v1350, 1
      %vm2183 = vcmp.eq.s32.totalorder %v1351, 1
      %vm2184 = vcmp.eq.s32.totalorder %v1352, 1
      %vm2185 = vcmp.eq.s32.totalorder %v1353, 1
      %vm2186 = vcmp.eq.s32.totalorder %v1354, 1
      %vm2187 = vcmp.eq.s32.totalorder %v1355, 1
      %vm2188 = vcmp.eq.s32.totalorder %v1356, 1
      %vm2189 = vcmp.eq.s32.totalorder %v1357, 1
      %vm2190 = vcmp.eq.s32.totalorder %v1358, 1
      %vm2191 = vcmp.eq.s32.totalorder %v1359, 1
      %vm2192 = vcmp.eq.s32.totalorder %v1360, 1
      %vm2193 = vcmp.eq.s32.totalorder %v1361, 1
      %vm2194 = vcmp.eq.s32.totalorder %v1362, 1
      %vm2195 = vcmp.eq.s32.totalorder %v1363, 1
      %vm2196 = vcmp.eq.s32.totalorder %v1364, 1
      %vm2197 = vcmp.eq.s32.totalorder %v1365, 1
      %vm2198 = vcmp.eq.s32.totalorder %v1366, 1
      %vm2199 = vcmp.eq.s32.totalorder %v1367, 1
      %vm2200 = vcmp.eq.s32.totalorder %v1368, 1
      %vm2201 = vcmp.eq.s32.totalorder %v1369, 1
      %vm2202 = vcmp.eq.s32.totalorder %v1370, 1
      %vm2203 = vcmp.eq.s32.totalorder %v1371, 1
      %vm2204 = vcmp.eq.s32.totalorder %v1372, 1
      %vm2205 = vcmp.eq.s32.totalorder %v1373, 1
      %vm2206 = vcmp.eq.s32.totalorder %v1374, 1
      %vm2207 = vcmp.eq.s32.totalorder %v1375, 1
      %vm2208 = vcmp.eq.s32.totalorder %v1376, 1
      %vm2209 = vcmp.eq.s32.totalorder %v1377, 1
      %vm2210 = vcmp.eq.s32.totalorder %v1378, 1
      %vm2211 = vcmp.eq.s32.totalorder %v1379, 1
      %vm2212 = vcmp.eq.s32.totalorder %v1380, 1
      %vm2213 = vcmp.eq.s32.totalorder %v1381, 1
      %vm2214 = vcmp.eq.s32.totalorder %v1382, 1
      %vm2215 = vcmp.eq.s32.totalorder %v1383, 1
      %vm2216 = vcmp.eq.s32.totalorder %v1384, 1
      %2281 = vrot.lane.b32.xlu0 %v679, 127
      %v2282 = vpop.permute.xlu0 %2281
      %2283 = vrot.lane.b32.xlu0 %v680, 127
      %v2284 = vpop.permute.xlu0 %2283
      %2285 = vrot.lane.b32.xlu0 %v681, 127
      %v2286 = vpop.permute.xlu0 %2285
      %2287 = vrot.lane.b32.xlu0 %v682, 127
      %v2288 = vpop.permute.xlu0 %2287
      %2289 = vrot.lane.b32.xlu0 %v683, 127
      %v2290 = vpop.permute.xlu0 %2289
      %2291 = vrot.lane.b32.xlu0 %v684, 127
      %v2292 = vpop.permute.xlu0 %2291
      %2293 = vrot.lane.b32.xlu0 %v685, 127
      %v2294 = vpop.permute.xlu0 %2293
      %2295 = vrot.lane.b32.xlu0 %v686, 127
      %v2296 = vpop.permute.xlu0 %2295
      %2297 = vrot.lane.b32.xlu0 %v687, 127
      %v2298 = vpop.permute.xlu0 %2297
      %2299 = vrot.lane.b32.xlu0 %v688, 127
      %v2300 = vpop.permute.xlu0 %2299
      %2301 = vrot.lane.b32.xlu0 %v689, 127
      %v2302 = vpop.permute.xlu0 %2301
      %2303 = vrot.lane.b32.xlu0 %v690, 127
      %v2304 = vpop.permute.xlu0 %2303
      %2305 = vrot.lane.b32.xlu0 %v691, 127
      %v2306 = vpop.permute.xlu0 %2305
      %2307 = vrot.lane.b32.xlu0 %v692, 127
      %v2308 = vpop.permute.xlu0 %2307
      %2309 = vrot.lane.b32.xlu0 %v693, 127
      %v2310 = vpop.permute.xlu0 %2309
      %2311 = vrot.lane.b32.xlu0 %v694, 127
      %v2312 = vpop.permute.xlu0 %2311
      %2313 = vrot.lane.b32.xlu0 %v695, 127
      %v2314 = vpop.permute.xlu0 %2313
      %2315 = vrot.lane.b32.xlu0 %v696, 127
      %v2316 = vpop.permute.xlu0 %2315
      %2317 = vrot.lane.b32.xlu0 %v697, 127
      %v2318 = vpop.permute.xlu0 %2317
      %2319 = vrot.lane.b32.xlu0 %v698, 127
      %v2320 = vpop.permute.xlu0 %2319
      %2321 = vrot.lane.b32.xlu0 %v699, 127
      %v2322 = vpop.permute.xlu0 %2321
      %2323 = vrot.lane.b32.xlu0 %v700, 127
      %v2324 = vpop.permute.xlu0 %2323
      %2325 = vrot.lane.b32.xlu0 %v701, 127
      %v2326 = vpop.permute.xlu0 %2325
      %2327 = vrot.lane.b32.xlu0 %v702, 127
      %v2328 = vpop.permute.xlu0 %2327
      %2329 = vrot.lane.b32.xlu0 %v703, 127
      %v2330 = vpop.permute.xlu0 %2329
      %2331 = vrot.lane.b32.xlu0 %v704, 127
      %v2332 = vpop.permute.xlu0 %2331
      %2333 = vrot.lane.b32.xlu0 %v705, 127
      %v2334 = vpop.permute.xlu0 %2333
      %2335 = vrot.lane.b32.xlu0 %v706, 127
      %v2336 = vpop.permute.xlu0 %2335
      %2337 = vrot.lane.b32.xlu0 %v707, 127
      %v2338 = vpop.permute.xlu0 %2337
      %2339 = vrot.lane.b32.xlu0 %v708, 127
      %v2340 = vpop.permute.xlu0 %2339
      %2341 = vrot.lane.b32.xlu0 %v709, 127
      %v2342 = vpop.permute.xlu0 %2341
      %2343 = vrot.lane.b32.xlu0 %v710, 127
      %v2344 = vpop.permute.xlu0 %2343
      %2345 = vrot.lane.b32.xlu0 %v711, 127
      %v2346 = vpop.permute.xlu0 %2345
      %2347 = vrot.lane.b32.xlu0 %v712, 127
      %v2348 = vpop.permute.xlu0 %2347
      %2349 = vrot.lane.b32.xlu0 %v713, 127
      %v2350 = vpop.permute.xlu0 %2349
      %2351 = vrot.lane.b32.xlu0 %v714, 127
      %v2352 = vpop.permute.xlu0 %2351
      %2353 = vrot.lane.b32.xlu0 %v715, 127
      %v2354 = vpop.permute.xlu0 %2353
      %2355 = vrot.lane.b32.xlu0 %v716, 127
      %v2356 = vpop.permute.xlu0 %2355
      %2357 = vrot.lane.b32.xlu0 %v717, 127
      %v2358 = vpop.permute.xlu0 %2357
      %2359 = vrot.lane.b32.xlu0 %v718, 127
      %v2360 = vpop.permute.xlu0 %2359
      %2361 = vrot.lane.b32.xlu0 %v719, 127
      %v2362 = vpop.permute.xlu0 %2361
      %2363 = vrot.lane.b32.xlu0 %v720, 127
      %v2364 = vpop.permute.xlu0 %2363
      %2365 = vrot.lane.b32.xlu0 %v721, 127
      %v2366 = vpop.permute.xlu0 %2365
      %2367 = vrot.lane.b32.xlu0 %v722, 127
      %v2368 = vpop.permute.xlu0 %2367
      %2369 = vrot.lane.b32.xlu0 %v723, 127
      %v2370 = vpop.permute.xlu0 %2369
      %2371 = vrot.lane.b32.xlu0 %v724, 127
      %v2372 = vpop.permute.xlu0 %2371
      %2373 = vrot.lane.b32.xlu0 %v725, 127
      %v2374 = vpop.permute.xlu0 %2373
      %2375 = vrot.lane.b32.xlu0 %v726, 127
      %v2376 = vpop.permute.xlu0 %2375
      %2377 = vrot.lane.b32.xlu0 %v727, 127
      %v2378 = vpop.permute.xlu0 %2377
      %2379 = vrot.lane.b32.xlu0 %v728, 127
      %v2380 = vpop.permute.xlu0 %2379
      %2381 = vrot.lane.b32.xlu0 %v729, 127
      %v2382 = vpop.permute.xlu0 %2381
      %2383 = vrot.lane.b32.xlu0 %v730, 127
      %v2384 = vpop.permute.xlu0 %2383
      %2385 = vrot.lane.b32.xlu0 %v731, 127
      %v2386 = vpop.permute.xlu0 %2385
      %2387 = vrot.lane.b32.xlu0 %v732, 127
      %v2388 = vpop.permute.xlu0 %2387
      %2389 = vrot.lane.b32.xlu0 %v733, 127
      %v2390 = vpop.permute.xlu0 %2389
      %2391 = vrot.lane.b32.xlu0 %v734, 127
      %v2392 = vpop.permute.xlu0 %2391
      %2393 = vrot.lane.b32.xlu0 %v735, 127
      %v2394 = vpop.permute.xlu0 %2393
      %2395 = vrot.lane.b32.xlu0 %v736, 127
      %v2396 = vpop.permute.xlu0 %2395
      %2397 = vrot.lane.b32.xlu0 %v737, 127
      %v2398 = vpop.permute.xlu0 %2397
      %2399 = vrot.lane.b32.xlu0 %v738, 127
      %v2400 = vpop.permute.xlu0 %2399
      %2401 = vrot.lane.b32.xlu0 %v739, 127
      %v2402 = vpop.permute.xlu0 %2401
      %2403 = vrot.lane.b32.xlu0 %v740, 127
      %v2404 = vpop.permute.xlu0 %2403
      %2405 = vrot.lane.b32.xlu0 %v741, 127
      %v2406 = vpop.permute.xlu0 %2405
      %2407 = vrot.lane.b32.xlu0 %v742, 127
      %v2408 = vpop.permute.xlu0 %2407
      %v2473 = vmul.f32 %v807, %v2282
      %v2474 = vmul.f32 %v808, %v2284
      %v2475 = vmul.f32 %v809, %v2286
      %v2476 = vmul.f32 %v810, %v2288
      %v2477 = vmul.f32 %v811, %v2290
      %v2478 = vmul.f32 %v812, %v2292
      %v2479 = vmul.f32 %v813, %v2294
      %v2480 = vmul.f32 %v814, %v2296
      %v2481 = vmul.f32 %v815, %v2298
      %v2482 = vmul.f32 %v816, %v2300
      %v2483 = vmul.f32 %v817, %v2302
      %v2484 = vmul.f32 %v818, %v2304
      %v2485 = vmul.f32 %v819, %v2306
      %v2486 = vmul.f32 %v820, %v2308
      %v2487 = vmul.f32 %v821, %v2310
      %v2488 = vmul.f32 %v822, %v2312
      %v2489 = vmul.f32 %v823, %v2314
      %v2490 = vmul.f32 %v824, %v2316
      %v2491 = vmul.f32 %v825, %v2318
      %v2492 = vmul.f32 %v826, %v2320
      %v2493 = vmul.f32 %v827, %v2322
      %v2494 = vmul.f32 %v828, %v2324
      %v2495 = vmul.f32 %v829, %v2326
      %v2496 = vmul.f32 %v830, %v2328
      %v2497 = vmul.f32 %v831, %v2330
      %v2498 = vmul.f32 %v832, %v2332
      %v2499 = vmul.f32 %v833, %v2334
      %v2500 = vmul.f32 %v834, %v2336
      %v2501 = vmul.f32 %v835, %v2338
      %v2502 = vmul.f32 %v836, %v2340
      %v2503 = vmul.f32 %v837, %v2342
      %v2504 = vmul.f32 %v838, %v2344
      %v2505 = vmul.f32 %v839, %v2346
      %v2506 = vmul.f32 %v840, %v2348
      %v2507 = vmul.f32 %v841, %v2350
      %v2508 = vmul.f32 %v842, %v2352
      %v2509 = vmul.f32 %v843, %v2354
      %v2510 = vmul.f32 %v844, %v2356
      %v2511 = vmul.f32 %v845, %v2358
      %v2512 = vmul.f32 %v846, %v2360
      %v2513 = vmul.f32 %v847, %v2362
      %v2514 = vmul.f32 %v848, %v2364
      %v2515 = vmul.f32 %v849, %v2366
      %v2516 = vmul.f32 %v850, %v2368
      %v2517 = vmul.f32 %v851, %v2370
      %v2518 = vmul.f32 %v852, %v2372
      %v2519 = vmul.f32 %v853, %v2374
      %v2520 = vmul.f32 %v854, %v2376
      %v2521 = vmul.f32 %v855, %v2378
      %v2522 = vmul.f32 %v856, %v2380
      %v2523 = vmul.f32 %v857, %v2382
      %v2524 = vmul.f32 %v858, %v2384
      %v2525 = vmul.f32 %v859, %v2386
      %v2526 = vmul.f32 %v860, %v2388
      %v2527 = vmul.f32 %v861, %v2390
      %v2528 = vmul.f32 %v862, %v2392
      %v2529 = vmul.f32 %v863, %v2394
      %v2530 = vmul.f32 %v864, %v2396
      %v2531 = vmul.f32 %v865, %v2398
      %v2532 = vmul.f32 %v866, %v2400
      %v2533 = vmul.f32 %v867, %v2402
      %v2534 = vmul.f32 %v868, %v2404
      %v2535 = vmul.f32 %v869, %v2406
      %v2536 = vmul.f32 %v870, %v2408
      %2538 = vset.pattern.permute.xlu0 0
      %2539 = vperm.xlu0 %2538, %v2473
      %v2540 = vpop.permute.xlu0 %2539
      %2543 = vset.pattern.permute.xlu0 0
      %2544 = vperm.xlu0 %2543, %v2474
      %v2545 = vpop.permute.xlu0 %2544
      %2548 = vset.pattern.permute.xlu0 0
      %2549 = vperm.xlu0 %2548, %v2475
      %v2550 = vpop.permute.xlu0 %2549
      %2553 = vset.pattern.permute.xlu0 0
      %2554 = vperm.xlu0 %2553, %v2476
      %v2555 = vpop.permute.xlu0 %2554
      %2558 = vset.pattern.permute.xlu0 0
      %2559 = vperm.xlu0 %2558, %v2477
      %v2560 = vpop.permute.xlu0 %2559
      %2563 = vset.pattern.permute.xlu0 0
      %2564 = vperm.xlu0 %2563, %v2478
      %v2565 = vpop.permute.xlu0 %2564
      %2568 = vset.pattern.permute.xlu0 0
      %2569 = vperm.xlu0 %2568, %v2479
      %v2570 = vpop.permute.xlu0 %2569
      %2573 = vset.pattern.permute.xlu0 0
      %2574 = vperm.xlu0 %2573, %v2480
      %v2575 = vpop.permute.xlu0 %2574
      %2578 = vset.pattern.permute.xlu0 0
      %2579 = vperm.xlu0 %2578, %v2481
      %v2580 = vpop.permute.xlu0 %2579
      %2583 = vset.pattern.permute.xlu0 0
      %2584 = vperm.xlu0 %2583, %v2482
      %v2585 = vpop.permute.xlu0 %2584
      %2588 = vset.pattern.permute.xlu0 0
      %2589 = vperm.xlu0 %2588, %v2483
      %v2590 = vpop.permute.xlu0 %2589
      %2593 = vset.pattern.permute.xlu0 0
      %2594 = vperm.xlu0 %2593, %v2484
      %v2595 = vpop.permute.xlu0 %2594
      %2598 = vset.pattern.permute.xlu0 0
      %2599 = vperm.xlu0 %2598, %v2485
      %v2600 = vpop.permute.xlu0 %2599
      %2603 = vset.pattern.permute.xlu0 0
      %2604 = vperm.xlu0 %2603, %v2486
      %v2605 = vpop.permute.xlu0 %2604
      %2608 = vset.pattern.permute.xlu0 0
      %2609 = vperm.xlu0 %2608, %v2487
      %v2610 = vpop.permute.xlu0 %2609
      %2613 = vset.pattern.permute.xlu0 0
      %2614 = vperm.xlu0 %2613, %v2488
      %v2615 = vpop.permute.xlu0 %2614
      %2618 = vset.pattern.permute.xlu0 0
      %2619 = vperm.xlu0 %2618, %v2489
      %v2620 = vpop.permute.xlu0 %2619
      %2623 = vset.pattern.permute.xlu0 0
      %2624 = vperm.xlu0 %2623, %v2490
      %v2625 = vpop.permute.xlu0 %2624
      %2628 = vset.pattern.permute.xlu0 0
      %2629 = vperm.xlu0 %2628, %v2491
      %v2630 = vpop.permute.xlu0 %2629
      %2633 = vset.pattern.permute.xlu0 0
      %2634 = vperm.xlu0 %2633, %v2492
      %v2635 = vpop.permute.xlu0 %2634
      %2638 = vset.pattern.permute.xlu0 0
      %2639 = vperm.xlu0 %2638, %v2493
      %v2640 = vpop.permute.xlu0 %2639
      %2643 = vset.pattern.permute.xlu0 0
      %2644 = vperm.xlu0 %2643, %v2494
      %v2645 = vpop.permute.xlu0 %2644
      %2648 = vset.pattern.permute.xlu0 0
      %2649 = vperm.xlu0 %2648, %v2495
      %v2650 = vpop.permute.xlu0 %2649
      %2653 = vset.pattern.permute.xlu0 0
      %2654 = vperm.xlu0 %2653, %v2496
      %v2655 = vpop.permute.xlu0 %2654
      %2658 = vset.pattern.permute.xlu0 0
      %2659 = vperm.xlu0 %2658, %v2497
      %v2660 = vpop.permute.xlu0 %2659
      %2663 = vset.pattern.permute.xlu0 0
      %2664 = vperm.xlu0 %2663, %v2498
      %v2665 = vpop.permute.xlu0 %2664
      %2668 = vset.pattern.permute.xlu0 0
      %2669 = vperm.xlu0 %2668, %v2499
      %v2670 = vpop.permute.xlu0 %2669
      %2673 = vset.pattern.permute.xlu0 0
      %2674 = vperm.xlu0 %2673, %v2500
      %v2675 = vpop.permute.xlu0 %2674
      %2678 = vset.pattern.permute.xlu0 0
      %2679 = vperm.xlu0 %2678, %v2501
      %v2680 = vpop.permute.xlu0 %2679
      %2683 = vset.pattern.permute.xlu0 0
      %2684 = vperm.xlu0 %2683, %v2502
      %v2685 = vpop.permute.xlu0 %2684
      %2688 = vset.pattern.permute.xlu0 0
      %2689 = vperm.xlu0 %2688, %v2503
      %v2690 = vpop.permute.xlu0 %2689
      %2693 = vset.pattern.permute.xlu0 0
      %2694 = vperm.xlu0 %2693, %v2504
      %v2695 = vpop.permute.xlu0 %2694
      %2698 = vset.pattern.permute.xlu0 0
      %2699 = vperm.xlu0 %2698, %v2505
      %v2700 = vpop.permute.xlu0 %2699
      %2703 = vset.pattern.permute.xlu0 0
      %2704 = vperm.xlu0 %2703, %v2506
      %v2705 = vpop.permute.xlu0 %2704
      %2708 = vset.pattern.permute.xlu0 0
      %2709 = vperm.xlu0 %2708, %v2507
      %v2710 = vpop.permute.xlu0 %2709
      %2713 = vset.pattern.permute.xlu0 0
      %2714 = vperm.xlu0 %2713, %v2508
      %v2715 = vpop.permute.xlu0 %2714
      %2718 = vset.pattern.permute.xlu0 0
      %2719 = vperm.xlu0 %2718, %v2509
      %v2720 = vpop.permute.xlu0 %2719
      %2723 = vset.pattern.permute.xlu0 0
      %2724 = vperm.xlu0 %2723, %v2510
      %v2725 = vpop.permute.xlu0 %2724
      %2728 = vset.pattern.permute.xlu0 0
      %2729 = vperm.xlu0 %2728, %v2511
      %v2730 = vpop.permute.xlu0 %2729
      %2733 = vset.pattern.permute.xlu0 0
      %2734 = vperm.xlu0 %2733, %v2512
      %v2735 = vpop.permute.xlu0 %2734
      %2738 = vset.pattern.permute.xlu0 0
      %2739 = vperm.xlu0 %2738, %v2513
      %v2740 = vpop.permute.xlu0 %2739
      %2743 = vset.pattern.permute.xlu0 0
      %2744 = vperm.xlu0 %2743, %v2514
      %v2745 = vpop.permute.xlu0 %2744
      %2748 = vset.pattern.permute.xlu0 0
      %2749 = vperm.xlu0 %2748, %v2515
      %v2750 = vpop.permute.xlu0 %2749
      %2753 = vset.pattern.permute.xlu0 0
      %2754 = vperm.xlu0 %2753, %v2516
      %v2755 = vpop.permute.xlu0 %2754
      %2758 = vset.pattern.permute.xlu0 0
      %2759 = vperm.xlu0 %2758, %v2517
      %v2760 = vpop.permute.xlu0 %2759
      %2763 = vset.pattern.permute.xlu0 0
      %2764 = vperm.xlu0 %2763, %v2518
      %v2765 = vpop.permute.xlu0 %2764
      %2768 = vset.pattern.permute.xlu0 0
      %2769 = vperm.xlu0 %2768, %v2519
      %v2770 = vpop.permute.xlu0 %2769
      %2773 = vset.pattern.permute.xlu0 0
      %2774 = vperm.xlu0 %2773, %v2520
      %v2775 = vpop.permute.xlu0 %2774
      %2778 = vset.pattern.permute.xlu0 0
      %2779 = vperm.xlu0 %2778, %v2521
      %v2780 = vpop.permute.xlu0 %2779
      %2783 = vset.pattern.permute.xlu0 0
      %2784 = vperm.xlu0 %2783, %v2522
      %v2785 = vpop.permute.xlu0 %2784
      %2788 = vset.pattern.permute.xlu0 0
      %2789 = vperm.xlu0 %2788, %v2523
      %v2790 = vpop.permute.xlu0 %2789
      %2793 = vset.pattern.permute.xlu0 0
      %2794 = vperm.xlu0 %2793, %v2524
      %v2795 = vpop.permute.xlu0 %2794
      %2798 = vset.pattern.permute.xlu0 0
      %2799 = vperm.xlu0 %2798, %v2525
      %v2800 = vpop.permute.xlu0 %2799
      %2803 = vset.pattern.permute.xlu0 0
      %2804 = vperm.xlu0 %2803, %v2526
      %v2805 = vpop.permute.xlu0 %2804
      %2808 = vset.pattern.permute.xlu0 0
      %2809 = vperm.xlu0 %2808, %v2527
      %v2810 = vpop.permute.xlu0 %2809
      %2813 = vset.pattern.permute.xlu0 0
      %2814 = vperm.xlu0 %2813, %v2528
      %v2815 = vpop.permute.xlu0 %2814
      %2818 = vset.pattern.permute.xlu0 0
      %2819 = vperm.xlu0 %2818, %v2529
      %v2820 = vpop.permute.xlu0 %2819
      %2823 = vset.pattern.permute.xlu0 0
      %2824 = vperm.xlu0 %2823, %v2530
      %v2825 = vpop.permute.xlu0 %2824
      %2828 = vset.pattern.permute.xlu0 0
      %2829 = vperm.xlu0 %2828, %v2531
      %v2830 = vpop.permute.xlu0 %2829
      %2833 = vset.pattern.permute.xlu0 0
      %2834 = vperm.xlu0 %2833, %v2532
      %v2835 = vpop.permute.xlu0 %2834
      %2838 = vset.pattern.permute.xlu0 0
      %2839 = vperm.xlu0 %2838, %v2533
      %v2840 = vpop.permute.xlu0 %2839
      %2843 = vset.pattern.permute.xlu0 0
      %2844 = vperm.xlu0 %2843, %v2534
      %v2845 = vpop.permute.xlu0 %2844
      %2848 = vset.pattern.permute.xlu0 0
      %2849 = vperm.xlu0 %2848, %v2535
      %v2850 = vpop.permute.xlu0 %2849
      %2853 = vset.pattern.permute.xlu0 0
      %2854 = vperm.xlu0 %2853, %v2536
      %v2855 = vpop.permute.xlu0 %2854
      %v2857 = vsel %vm2153, %v2540, %v2089
      %v2858 = vsel %vm2154, %v2545, %v2090
      %v2859 = vsel %vm2155, %v2550, %v2091
      %v2860 = vsel %vm2156, %v2555, %v2092
      %v2861 = vsel %vm2157, %v2560, %v2093
      %v2862 = vsel %vm2158, %v2565, %v2094
      %v2863 = vsel %vm2159, %v2570, %v2095
      %v2864 = vsel %vm2160, %v2575, %v2096
      %v2865 = vsel %vm2161, %v2580, %v2097
      %v2866 = vsel %vm2162, %v2585, %v2098
      %v2867 = vsel %vm2163, %v2590, %v2099
      %v2868 = vsel %vm2164, %v2595, %v2100
      %v2869 = vsel %vm2165, %v2600, %v2101
      %v2870 = vsel %vm2166, %v2605, %v2102
      %v2871 = vsel %vm2167, %v2610, %v2103
      %v2872 = vsel %vm2168, %v2615, %v2104
      %v2873 = vsel %vm2169, %v2620, %v2105
      %v2874 = vsel %vm2170, %v2625, %v2106
      %v2875 = vsel %vm2171, %v2630, %v2107
      %v2876 = vsel %vm2172, %v2635, %v2108
      %v2877 = vsel %vm2173, %v2640, %v2109
      %v2878 = vsel %vm2174, %v2645, %v2110
      %v2879 = vsel %vm2175, %v2650, %v2111
      %v2880 = vsel %vm2176, %v2655, %v2112
      %v2881 = vsel %vm2177, %v2660, %v2113
      %v2882 = vsel %vm2178, %v2665, %v2114
      %v2883 = vsel %vm2179, %v2670, %v2115
      %v2884 = vsel %vm2180, %v2675, %v2116
      %v2885 = vsel %vm2181, %v2680, %v2117
      %v2886 = vsel %vm2182, %v2685, %v2118
      %v2887 = vsel %vm2183, %v2690, %v2119
      %v2888 = vsel %vm2184, %v2695, %v2120
      %v2889 = vsel %vm2185, %v2700, %v2121
      %v2890 = vsel %vm2186, %v2705, %v2122
      %v2891 = vsel %vm2187, %v2710, %v2123
      %v2892 = vsel %vm2188, %v2715, %v2124
      %v2893 = vsel %vm2189, %v2720, %v2125
      %v2894 = vsel %vm2190, %v2725, %v2126
      %v2895 = vsel %vm2191, %v2730, %v2127
      %v2896 = vsel %vm2192, %v2735, %v2128
      %v2897 = vsel %vm2193, %v2740, %v2129
      %v2898 = vsel %vm2194, %v2745, %v2130
      %v2899 = vsel %vm2195, %v2750, %v2131
      %v2900 = vsel %vm2196, %v2755, %v2132
      %v2901 = vsel %vm2197, %v2760, %v2133
      %v2902 = vsel %vm2198, %v2765, %v2134
      %v2903 = vsel %vm2199, %v2770, %v2135
      %v2904 = vsel %vm2200, %v2775, %v2136
      %v2905 = vsel %vm2201, %v2780, %v2137
      %v2906 = vsel %vm2202, %v2785, %v2138
      %v2907 = vsel %vm2203, %v2790, %v2139
      %v2908 = vsel %vm2204, %v2795, %v2140
      %v2909 = vsel %vm2205, %v2800, %v2141
      %v2910 = vsel %vm2206, %v2805, %v2142
      %v2911 = vsel %vm2207, %v2810, %v2143
      %v2912 = vsel %vm2208, %v2815, %v2144
      %v2913 = vsel %vm2209, %v2820, %v2145
      %v2914 = vsel %vm2210, %v2825, %v2146
      %v2915 = vsel %vm2211, %v2830, %v2147
      %v2916 = vsel %vm2212, %v2835, %v2148
      %v2917 = vsel %vm2213, %v2840, %v2149
      %v2918 = vsel %vm2214, %v2845, %v2150
      %v2919 = vsel %vm2215, %v2850, %v2151
      %v2920 = vsel %vm2216, %v2855, %v2152
      %vm2921 = vcmp.eq.s32.totalorder %v1321, 8
      %vm2922 = vcmp.eq.s32.totalorder %v1322, 8
      %vm2923 = vcmp.eq.s32.totalorder %v1323, 8
      %vm2924 = vcmp.eq.s32.totalorder %v1324, 8
      %vm2925 = vcmp.eq.s32.totalorder %v1325, 8
      %vm2926 = vcmp.eq.s32.totalorder %v1326, 8
      %vm2927 = vcmp.eq.s32.totalorder %v1327, 8
      %vm2928 = vcmp.eq.s32.totalorder %v1328, 8
      %vm2929 = vcmp.eq.s32.totalorder %v1329, 8
      %vm2930 = vcmp.eq.s32.totalorder %v1330, 8
      %vm2931 = vcmp.eq.s32.totalorder %v1331, 8
      %vm2932 = vcmp.eq.s32.totalorder %v1332, 8
      %vm2933 = vcmp.eq.s32.totalorder %v1333, 8
      %vm2934 = vcmp.eq.s32.totalorder %v1334, 8
      %vm2935 = vcmp.eq.s32.totalorder %v1335, 8
      %vm2936 = vcmp.eq.s32.totalorder %v1336, 8
      %vm2937 = vcmp.eq.s32.totalorder %v1337, 8
      %vm2938 = vcmp.eq.s32.totalorder %v1338, 8
      %vm2939 = vcmp.eq.s32.totalorder %v1339, 8
      %vm2940 = vcmp.eq.s32.totalorder %v1340, 8
      %vm2941 = vcmp.eq.s32.totalorder %v1341, 8
      %vm2942 = vcmp.eq.s32.totalorder %v1342, 8
      %vm2943 = vcmp.eq.s32.totalorder %v1343, 8
      %vm2944 = vcmp.eq.s32.totalorder %v1344, 8
      %vm2945 = vcmp.eq.s32.totalorder %v1345, 8
      %vm2946 = vcmp.eq.s32.totalorder %v1346, 8
      %vm2947 = vcmp.eq.s32.totalorder %v1347, 8
      %vm2948 = vcmp.eq.s32.totalorder %v1348, 8
      %vm2949 = vcmp.eq.s32.totalorder %v1349, 8
      %vm2950 = vcmp.eq.s32.totalorder %v1350, 8
      %vm2951 = vcmp.eq.s32.totalorder %v1351, 8
      %vm2952 = vcmp.eq.s32.totalorder %v1352, 8
      %vm2953 = vcmp.eq.s32.totalorder %v1353, 8
      %vm2954 = vcmp.eq.s32.totalorder %v1354, 8
      %vm2955 = vcmp.eq.s32.totalorder %v1355, 8
      %vm2956 = vcmp.eq.s32.totalorder %v1356, 8
      %vm2957 = vcmp.eq.s32.totalorder %v1357, 8
      %vm2958 = vcmp.eq.s32.totalorder %v1358, 8
      %vm2959 = vcmp.eq.s32.totalorder %v1359, 8
      %vm2960 = vcmp.eq.s32.totalorder %v1360, 8
      %vm2961 = vcmp.eq.s32.totalorder %v1361, 8
      %vm2962 = vcmp.eq.s32.totalorder %v1362, 8
      %vm2963 = vcmp.eq.s32.totalorder %v1363, 8
      %vm2964 = vcmp.eq.s32.totalorder %v1364, 8
      %vm2965 = vcmp.eq.s32.totalorder %v1365, 8
      %vm2966 = vcmp.eq.s32.totalorder %v1366, 8
      %vm2967 = vcmp.eq.s32.totalorder %v1367, 8
      %vm2968 = vcmp.eq.s32.totalorder %v1368, 8
      %vm2969 = vcmp.eq.s32.totalorder %v1369, 8
      %vm2970 = vcmp.eq.s32.totalorder %v1370, 8
      %vm2971 = vcmp.eq.s32.totalorder %v1371, 8
      %vm2972 = vcmp.eq.s32.totalorder %v1372, 8
      %vm2973 = vcmp.eq.s32.totalorder %v1373, 8
      %vm2974 = vcmp.eq.s32.totalorder %v1374, 8
      %vm2975 = vcmp.eq.s32.totalorder %v1375, 8
      %vm2976 = vcmp.eq.s32.totalorder %v1376, 8
      %vm2977 = vcmp.eq.s32.totalorder %v1377, 8
      %vm2978 = vcmp.eq.s32.totalorder %v1378, 8
      %vm2979 = vcmp.eq.s32.totalorder %v1379, 8
      %vm2980 = vcmp.eq.s32.totalorder %v1380, 8
      %vm2981 = vcmp.eq.s32.totalorder %v1381, 8
      %vm2982 = vcmp.eq.s32.totalorder %v1382, 8
      %vm2983 = vcmp.eq.s32.totalorder %v1383, 8
      %vm2984 = vcmp.eq.s32.totalorder %v1384, 8
      %v2985 = vmul.f32 %v679, %v1514
      %v2986 = vmul.f32 %v680, %v1516
      %v2987 = vmul.f32 %v681, %v1518
      %v2988 = vmul.f32 %v682, %v1520
      %v2989 = vmul.f32 %v683, %v1522
      %v2990 = vmul.f32 %v684, %v1524
      %v2991 = vmul.f32 %v685, %v1526
      %v2992 = vmul.f32 %v686, %v1528
      %v2993 = vmul.f32 %v687, %v1530
      %v2994 = vmul.f32 %v688, %v1532
      %v2995 = vmul.f32 %v689, %v1534
      %v2996 = vmul.f32 %v690, %v1536
      %v2997 = vmul.f32 %v691, %v1538
      %v2998 = vmul.f32 %v692, %v1540
      %v2999 = vmul.f32 %v693, %v1542
      %v3000 = vmul.f32 %v694, %v1544
      %v3001 = vmul.f32 %v695, %v1546
      %v3002 = vmul.f32 %v696, %v1548
      %v3003 = vmul.f32 %v697, %v1550
      %v3004 = vmul.f32 %v698, %v1552
      %v3005 = vmul.f32 %v699, %v1554
      %v3006 = vmul.f32 %v700, %v1556
      %v3007 = vmul.f32 %v701, %v1558
      %v3008 = vmul.f32 %v702, %v1560
      %v3009 = vmul.f32 %v703, %v1562
      %v3010 = vmul.f32 %v704, %v1564
      %v3011 = vmul.f32 %v705, %v1566
      %v3012 = vmul.f32 %v706, %v1568
      %v3013 = vmul.f32 %v707, %v1570
      %v3014 = vmul.f32 %v708, %v1572
      %v3015 = vmul.f32 %v709, %v1574
      %v3016 = vmul.f32 %v710, %v1576
      %v3017 = vmul.f32 %v711, %v1578
      %v3018 = vmul.f32 %v712, %v1580
      %v3019 = vmul.f32 %v713, %v1582
      %v3020 = vmul.f32 %v714, %v1584
      %v3021 = vmul.f32 %v715, %v1586
      %v3022 = vmul.f32 %v716, %v1588
      %v3023 = vmul.f32 %v717, %v1590
      %v3024 = vmul.f32 %v718, %v1592
      %v3025 = vmul.f32 %v719, %v1594
      %v3026 = vmul.f32 %v720, %v1596
      %v3027 = vmul.f32 %v721, %v1598
      %v3028 = vmul.f32 %v722, %v1600
      %v3029 = vmul.f32 %v723, %v1602
      %v3030 = vmul.f32 %v724, %v1604
      %v3031 = vmul.f32 %v725, %v1606
      %v3032 = vmul.f32 %v726, %v1608
      %v3033 = vmul.f32 %v727, %v1610
      %v3034 = vmul.f32 %v728, %v1612
      %v3035 = vmul.f32 %v729, %v1614
      %v3036 = vmul.f32 %v730, %v1616
      %v3037 = vmul.f32 %v731, %v1618
      %v3038 = vmul.f32 %v732, %v1620
      %v3039 = vmul.f32 %v733, %v1622
      %v3040 = vmul.f32 %v734, %v1624
      %v3041 = vmul.f32 %v735, %v1626
      %v3042 = vmul.f32 %v736, %v1628
      %v3043 = vmul.f32 %v737, %v1630
      %v3044 = vmul.f32 %v738, %v1632
      %v3045 = vmul.f32 %v739, %v1634
      %v3046 = vmul.f32 %v740, %v1636
      %v3047 = vmul.f32 %v741, %v1638
      %v3048 = vmul.f32 %v742, %v1640
      %3050 = vset.pattern.permute.xlu0 0
      %3051 = vperm.xlu0 %3050, %v2985
      %v3052 = vpop.permute.xlu0 %3051
      %3055 = vset.pattern.permute.xlu0 0
      %3056 = vperm.xlu0 %3055, %v2986
      %v3057 = vpop.permute.xlu0 %3056
      %3060 = vset.pattern.permute.xlu0 0
      %3061 = vperm.xlu0 %3060, %v2987
      %v3062 = vpop.permute.xlu0 %3061
      %3065 = vset.pattern.permute.xlu0 0
      %3066 = vperm.xlu0 %3065, %v2988
      %v3067 = vpop.permute.xlu0 %3066
      %3070 = vset.pattern.permute.xlu0 0
      %3071 = vperm.xlu0 %3070, %v2989
      %v3072 = vpop.permute.xlu0 %3071
      %3075 = vset.pattern.permute.xlu0 0
      %3076 = vperm.xlu0 %3075, %v2990
      %v3077 = vpop.permute.xlu0 %3076
      %3080 = vset.pattern.permute.xlu0 0
      %3081 = vperm.xlu0 %3080, %v2991
      %v3082 = vpop.permute.xlu0 %3081
      %3085 = vset.pattern.permute.xlu0 0
      %3086 = vperm.xlu0 %3085, %v2992
      %v3087 = vpop.permute.xlu0 %3086
      %3090 = vset.pattern.permute.xlu0 0
      %3091 = vperm.xlu0 %3090, %v2993
      %v3092 = vpop.permute.xlu0 %3091
      %3095 = vset.pattern.permute.xlu0 0
      %3096 = vperm.xlu0 %3095, %v2994
      %v3097 = vpop.permute.xlu0 %3096
      %3100 = vset.pattern.permute.xlu0 0
      %3101 = vperm.xlu0 %3100, %v2995
      %v3102 = vpop.permute.xlu0 %3101
      %3105 = vset.pattern.permute.xlu0 0
      %3106 = vperm.xlu0 %3105, %v2996
      %v3107 = vpop.permute.xlu0 %3106
      %3110 = vset.pattern.permute.xlu0 0
      %3111 = vperm.xlu0 %3110, %v2997
      %v3112 = vpop.permute.xlu0 %3111
      %3115 = vset.pattern.permute.xlu0 0
      %3116 = vperm.xlu0 %3115, %v2998
      %v3117 = vpop.permute.xlu0 %3116
      %3120 = vset.pattern.permute.xlu0 0
      %3121 = vperm.xlu0 %3120, %v2999
      %v3122 = vpop.permute.xlu0 %3121
      %3125 = vset.pattern.permute.xlu0 0
      %3126 = vperm.xlu0 %3125, %v3000
      %v3127 = vpop.permute.xlu0 %3126
      %3130 = vset.pattern.permute.xlu0 0
      %3131 = vperm.xlu0 %3130, %v3001
      %v3132 = vpop.permute.xlu0 %3131
      %3135 = vset.pattern.permute.xlu0 0
      %3136 = vperm.xlu0 %3135, %v3002
      %v3137 = vpop.permute.xlu0 %3136
      %3140 = vset.pattern.permute.xlu0 0
      %3141 = vperm.xlu0 %3140, %v3003
      %v3142 = vpop.permute.xlu0 %3141
      %3145 = vset.pattern.permute.xlu0 0
      %3146 = vperm.xlu0 %3145, %v3004
      %v3147 = vpop.permute.xlu0 %3146
      %3150 = vset.pattern.permute.xlu0 0
      %3151 = vperm.xlu0 %3150, %v3005
      %v3152 = vpop.permute.xlu0 %3151
      %3155 = vset.pattern.permute.xlu0 0
      %3156 = vperm.xlu0 %3155, %v3006
      %v3157 = vpop.permute.xlu0 %3156
      %3160 = vset.pattern.permute.xlu0 0
      %3161 = vperm.xlu0 %3160, %v3007
      %v3162 = vpop.permute.xlu0 %3161
      %3165 = vset.pattern.permute.xlu0 0
      %3166 = vperm.xlu0 %3165, %v3008
      %v3167 = vpop.permute.xlu0 %3166
      %3170 = vset.pattern.permute.xlu0 0
      %3171 = vperm.xlu0 %3170, %v3009
      %v3172 = vpop.permute.xlu0 %3171
      %3175 = vset.pattern.permute.xlu0 0
      %3176 = vperm.xlu0 %3175, %v3010
      %v3177 = vpop.permute.xlu0 %3176
      %3180 = vset.pattern.permute.xlu0 0
      %3181 = vperm.xlu0 %3180, %v3011
      %v3182 = vpop.permute.xlu0 %3181
      %3185 = vset.pattern.permute.xlu0 0
      %3186 = vperm.xlu0 %3185, %v3012
      %v3187 = vpop.permute.xlu0 %3186
      %3190 = vset.pattern.permute.xlu0 0
      %3191 = vperm.xlu0 %3190, %v3013
      %v3192 = vpop.permute.xlu0 %3191
      %3195 = vset.pattern.permute.xlu0 0
      %3196 = vperm.xlu0 %3195, %v3014
      %v3197 = vpop.permute.xlu0 %3196
      %3200 = vset.pattern.permute.xlu0 0
      %3201 = vperm.xlu0 %3200, %v3015
      %v3202 = vpop.permute.xlu0 %3201
      %3205 = vset.pattern.permute.xlu0 0
      %3206 = vperm.xlu0 %3205, %v3016
      %v3207 = vpop.permute.xlu0 %3206
      %3210 = vset.pattern.permute.xlu0 0
      %3211 = vperm.xlu0 %3210, %v3017
      %v3212 = vpop.permute.xlu0 %3211
      %3215 = vset.pattern.permute.xlu0 0
      %3216 = vperm.xlu0 %3215, %v3018
      %v3217 = vpop.permute.xlu0 %3216
      %3220 = vset.pattern.permute.xlu0 0
      %3221 = vperm.xlu0 %3220, %v3019
      %v3222 = vpop.permute.xlu0 %3221
      %3225 = vset.pattern.permute.xlu0 0
      %3226 = vperm.xlu0 %3225, %v3020
      %v3227 = vpop.permute.xlu0 %3226
      %3230 = vset.pattern.permute.xlu0 0
      %3231 = vperm.xlu0 %3230, %v3021
      %v3232 = vpop.permute.xlu0 %3231
      %3235 = vset.pattern.permute.xlu0 0
      %3236 = vperm.xlu0 %3235, %v3022
      %v3237 = vpop.permute.xlu0 %3236
      %3240 = vset.pattern.permute.xlu0 0
      %3241 = vperm.xlu0 %3240, %v3023
      %v3242 = vpop.permute.xlu0 %3241
      %3245 = vset.pattern.permute.xlu0 0
      %3246 = vperm.xlu0 %3245, %v3024
      %v3247 = vpop.permute.xlu0 %3246
      %3250 = vset.pattern.permute.xlu0 0
      %3251 = vperm.xlu0 %3250, %v3025
      %v3252 = vpop.permute.xlu0 %3251
      %3255 = vset.pattern.permute.xlu0 0
      %3256 = vperm.xlu0 %3255, %v3026
      %v3257 = vpop.permute.xlu0 %3256
      %3260 = vset.pattern.permute.xlu0 0
      %3261 = vperm.xlu0 %3260, %v3027
      %v3262 = vpop.permute.xlu0 %3261
      %3265 = vset.pattern.permute.xlu0 0
      %3266 = vperm.xlu0 %3265, %v3028
      %v3267 = vpop.permute.xlu0 %3266
      %3270 = vset.pattern.permute.xlu0 0
      %3271 = vperm.xlu0 %3270, %v3029
      %v3272 = vpop.permute.xlu0 %3271
      %3275 = vset.pattern.permute.xlu0 0
      %3276 = vperm.xlu0 %3275, %v3030
      %v3277 = vpop.permute.xlu0 %3276
      %3280 = vset.pattern.permute.xlu0 0
      %3281 = vperm.xlu0 %3280, %v3031
      %v3282 = vpop.permute.xlu0 %3281
      %3285 = vset.pattern.permute.xlu0 0
      %3286 = vperm.xlu0 %3285, %v3032
      %v3287 = vpop.permute.xlu0 %3286
      %3290 = vset.pattern.permute.xlu0 0
      %3291 = vperm.xlu0 %3290, %v3033
      %v3292 = vpop.permute.xlu0 %3291
      %3295 = vset.pattern.permute.xlu0 0
      %3296 = vperm.xlu0 %3295, %v3034
      %v3297 = vpop.permute.xlu0 %3296
      %3300 = vset.pattern.permute.xlu0 0
      %3301 = vperm.xlu0 %3300, %v3035
      %v3302 = vpop.permute.xlu0 %3301
      %3305 = vset.pattern.permute.xlu0 0
      %3306 = vperm.xlu0 %3305, %v3036
      %v3307 = vpop.permute.xlu0 %3306
      %3310 = vset.pattern.permute.xlu0 0
      %3311 = vperm.xlu0 %3310, %v3037
      %v3312 = vpop.permute.xlu0 %3311
      %3315 = vset.pattern.permute.xlu0 0
      %3316 = vperm.xlu0 %3315, %v3038
      %v3317 = vpop.permute.xlu0 %3316
      %3320 = vset.pattern.permute.xlu0 0
      %3321 = vperm.xlu0 %3320, %v3039
      %v3322 = vpop.permute.xlu0 %3321
      %3325 = vset.pattern.permute.xlu0 0
      %3326 = vperm.xlu0 %3325, %v3040
      %v3327 = vpop.permute.xlu0 %3326
      %3330 = vset.pattern.permute.xlu0 0
      %3331 = vperm.xlu0 %3330, %v3041
      %v3332 = vpop.permute.xlu0 %3331
      %3335 = vset.pattern.permute.xlu0 0
      %3336 = vperm.xlu0 %3335, %v3042
      %v3337 = vpop.permute.xlu0 %3336
      %3340 = vset.pattern.permute.xlu0 0
      %3341 = vperm.xlu0 %3340, %v3043
      %v3342 = vpop.permute.xlu0 %3341
      %3345 = vset.pattern.permute.xlu0 0
      %3346 = vperm.xlu0 %3345, %v3044
      %v3347 = vpop.permute.xlu0 %3346
      %3350 = vset.pattern.permute.xlu0 0
      %3351 = vperm.xlu0 %3350, %v3045
      %v3352 = vpop.permute.xlu0 %3351
      %3355 = vset.pattern.permute.xlu0 0
      %3356 = vperm.xlu0 %3355, %v3046
      %v3357 = vpop.permute.xlu0 %3356
      %3360 = vset.pattern.permute.xlu0 0
      %3361 = vperm.xlu0 %3360, %v3047
      %v3362 = vpop.permute.xlu0 %3361
      %3365 = vset.pattern.permute.xlu0 0
      %3366 = vperm.xlu0 %3365, %v3048
      %v3367 = vpop.permute.xlu0 %3366
      %v3369 = vsel %vm2921, %v3052, %v2857
      %v3370 = vsel %vm2922, %v3057, %v2858
      %v3371 = vsel %vm2923, %v3062, %v2859
      %v3372 = vsel %vm2924, %v3067, %v2860
      %v3373 = vsel %vm2925, %v3072, %v2861
      %v3374 = vsel %vm2926, %v3077, %v2862
      %v3375 = vsel %vm2927, %v3082, %v2863
      %v3376 = vsel %vm2928, %v3087, %v2864
      %v3377 = vsel %vm2929, %v3092, %v2865
      %v3378 = vsel %vm2930, %v3097, %v2866
      %v3379 = vsel %vm2931, %v3102, %v2867
      %v3380 = vsel %vm2932, %v3107, %v2868
      %v3381 = vsel %vm2933, %v3112, %v2869
      %v3382 = vsel %vm2934, %v3117, %v2870
      %v3383 = vsel %vm2935, %v3122, %v2871
      %v3384 = vsel %vm2936, %v3127, %v2872
      %v3385 = vsel %vm2937, %v3132, %v2873
      %v3386 = vsel %vm2938, %v3137, %v2874
      %v3387 = vsel %vm2939, %v3142, %v2875
      %v3388 = vsel %vm2940, %v3147, %v2876
      %v3389 = vsel %vm2941, %v3152, %v2877
      %v3390 = vsel %vm2942, %v3157, %v2878
      %v3391 = vsel %vm2943, %v3162, %v2879
      %v3392 = vsel %vm2944, %v3167, %v2880
      %v3393 = vsel %vm2945, %v3172, %v2881
      %v3394 = vsel %vm2946, %v3177, %v2882
      %v3395 = vsel %vm2947, %v3182, %v2883
      %v3396 = vsel %vm2948, %v3187, %v2884
      %v3397 = vsel %vm2949, %v3192, %v2885
      %v3398 = vsel %vm2950, %v3197, %v2886
      %v3399 = vsel %vm2951, %v3202, %v2887
      %v3400 = vsel %vm2952, %v3207, %v2888
      %v3401 = vsel %vm2953, %v3212, %v2889
      %v3402 = vsel %vm2954, %v3217, %v2890
      %v3403 = vsel %vm2955, %v3222, %v2891
      %v3404 = vsel %vm2956, %v3227, %v2892
      %v3405 = vsel %vm2957, %v3232, %v2893
      %v3406 = vsel %vm2958, %v3237, %v2894
      %v3407 = vsel %vm2959, %v3242, %v2895
      %v3408 = vsel %vm2960, %v3247, %v2896
      %v3409 = vsel %vm2961, %v3252, %v2897
      %v3410 = vsel %vm2962, %v3257, %v2898
      %v3411 = vsel %vm2963, %v3262, %v2899
      %v3412 = vsel %vm2964, %v3267, %v2900
      %v3413 = vsel %vm2965, %v3272, %v2901
      %v3414 = vsel %vm2966, %v3277, %v2902
      %v3415 = vsel %vm2967, %v3282, %v2903
      %v3416 = vsel %vm2968, %v3287, %v2904
      %v3417 = vsel %vm2969, %v3292, %v2905
      %v3418 = vsel %vm2970, %v3297, %v2906
      %v3419 = vsel %vm2971, %v3302, %v2907
      %v3420 = vsel %vm2972, %v3307, %v2908
      %v3421 = vsel %vm2973, %v3312, %v2909
      %v3422 = vsel %vm2974, %v3317, %v2910
      %v3423 = vsel %vm2975, %v3322, %v2911
      %v3424 = vsel %vm2976, %v3327, %v2912
      %v3425 = vsel %vm2977, %v3332, %v2913
      %v3426 = vsel %vm2978, %v3337, %v2914
      %v3427 = vsel %vm2979, %v3342, %v2915
      %v3428 = vsel %vm2980, %v3347, %v2916
      %v3429 = vsel %vm2981, %v3352, %v2917
      %v3430 = vsel %vm2982, %v3357, %v2918
      %v3431 = vsel %vm2983, %v3362, %v2919
      %v3432 = vsel %vm2984, %v3367, %v2920
      %vm3433 = vcmp.eq.s32.totalorder %v1321, 9
      %vm3434 = vcmp.eq.s32.totalorder %v1322, 9
      %vm3435 = vcmp.eq.s32.totalorder %v1323, 9
      %vm3436 = vcmp.eq.s32.totalorder %v1324, 9
      %vm3437 = vcmp.eq.s32.totalorder %v1325, 9
      %vm3438 = vcmp.eq.s32.totalorder %v1326, 9
      %vm3439 = vcmp.eq.s32.totalorder %v1327, 9
      %vm3440 = vcmp.eq.s32.totalorder %v1328, 9
      %vm3441 = vcmp.eq.s32.totalorder %v1329, 9
      %vm3442 = vcmp.eq.s32.totalorder %v1330, 9
      %vm3443 = vcmp.eq.s32.totalorder %v1331, 9
      %vm3444 = vcmp.eq.s32.totalorder %v1332, 9
      %vm3445 = vcmp.eq.s32.totalorder %v1333, 9
      %vm3446 = vcmp.eq.s32.totalorder %v1334, 9
      %vm3447 = vcmp.eq.s32.totalorder %v1335, 9
      %vm3448 = vcmp.eq.s32.totalorder %v1336, 9
      %vm3449 = vcmp.eq.s32.totalorder %v1337, 9
      %vm3450 = vcmp.eq.s32.totalorder %v1338, 9
      %vm3451 = vcmp.eq.s32.totalorder %v1339, 9
      %vm3452 = vcmp.eq.s32.totalorder %v1340, 9
      %vm3453 = vcmp.eq.s32.totalorder %v1341, 9
      %vm3454 = vcmp.eq.s32.totalorder %v1342, 9
      %vm3455 = vcmp.eq.s32.totalorder %v1343, 9
      %vm3456 = vcmp.eq.s32.totalorder %v1344, 9
      %vm3457 = vcmp.eq.s32.totalorder %v1345, 9
      %vm3458 = vcmp.eq.s32.totalorder %v1346, 9
      %vm3459 = vcmp.eq.s32.totalorder %v1347, 9
      %vm3460 = vcmp.eq.s32.totalorder %v1348, 9
      %vm3461 = vcmp.eq.s32.totalorder %v1349, 9
      %vm3462 = vcmp.eq.s32.totalorder %v1350, 9
      %vm3463 = vcmp.eq.s32.totalorder %v1351, 9
      %vm3464 = vcmp.eq.s32.totalorder %v1352, 9
      %vm3465 = vcmp.eq.s32.totalorder %v1353, 9
      %vm3466 = vcmp.eq.s32.totalorder %v1354, 9
      %vm3467 = vcmp.eq.s32.totalorder %v1355, 9
      %vm3468 = vcmp.eq.s32.totalorder %v1356, 9
      %vm3469 = vcmp.eq.s32.totalorder %v1357, 9
      %vm3470 = vcmp.eq.s32.totalorder %v1358, 9
      %vm3471 = vcmp.eq.s32.totalorder %v1359, 9
      %vm3472 = vcmp.eq.s32.totalorder %v1360, 9
      %vm3473 = vcmp.eq.s32.totalorder %v1361, 9
      %vm3474 = vcmp.eq.s32.totalorder %v1362, 9
      %vm3475 = vcmp.eq.s32.totalorder %v1363, 9
      %vm3476 = vcmp.eq.s32.totalorder %v1364, 9
      %vm3477 = vcmp.eq.s32.totalorder %v1365, 9
      %vm3478 = vcmp.eq.s32.totalorder %v1366, 9
      %vm3479 = vcmp.eq.s32.totalorder %v1367, 9
      %vm3480 = vcmp.eq.s32.totalorder %v1368, 9
      %vm3481 = vcmp.eq.s32.totalorder %v1369, 9
      %vm3482 = vcmp.eq.s32.totalorder %v1370, 9
      %vm3483 = vcmp.eq.s32.totalorder %v1371, 9
      %vm3484 = vcmp.eq.s32.totalorder %v1372, 9
      %vm3485 = vcmp.eq.s32.totalorder %v1373, 9
      %vm3486 = vcmp.eq.s32.totalorder %v1374, 9
      %vm3487 = vcmp.eq.s32.totalorder %v1375, 9
      %vm3488 = vcmp.eq.s32.totalorder %v1376, 9
      %vm3489 = vcmp.eq.s32.totalorder %v1377, 9
      %vm3490 = vcmp.eq.s32.totalorder %v1378, 9
      %vm3491 = vcmp.eq.s32.totalorder %v1379, 9
      %vm3492 = vcmp.eq.s32.totalorder %v1380, 9
      %vm3493 = vcmp.eq.s32.totalorder %v1381, 9
      %vm3494 = vcmp.eq.s32.totalorder %v1382, 9
      %vm3495 = vcmp.eq.s32.totalorder %v1383, 9
      %vm3496 = vcmp.eq.s32.totalorder %v1384, 9
      %v3497 = vmul.f32 %v679, %v2282
      %v3498 = vmul.f32 %v680, %v2284
      %v3499 = vmul.f32 %v681, %v2286
      %v3500 = vmul.f32 %v682, %v2288
      %v3501 = vmul.f32 %v683, %v2290
      %v3502 = vmul.f32 %v684, %v2292
      %v3503 = vmul.f32 %v685, %v2294
      %v3504 = vmul.f32 %v686, %v2296
      %v3505 = vmul.f32 %v687, %v2298
      %v3506 = vmul.f32 %v688, %v2300
      %v3507 = vmul.f32 %v689, %v2302
      %v3508 = vmul.f32 %v690, %v2304
      %v3509 = vmul.f32 %v691, %v2306
      %v3510 = vmul.f32 %v692, %v2308
      %v3511 = vmul.f32 %v693, %v2310
      %v3512 = vmul.f32 %v694, %v2312
      %v3513 = vmul.f32 %v695, %v2314
      %v3514 = vmul.f32 %v696, %v2316
      %v3515 = vmul.f32 %v697, %v2318
      %v3516 = vmul.f32 %v698, %v2320
      %v3517 = vmul.f32 %v699, %v2322
      %v3518 = vmul.f32 %v700, %v2324
      %v3519 = vmul.f32 %v701, %v2326
      %v3520 = vmul.f32 %v702, %v2328
      %v3521 = vmul.f32 %v703, %v2330
      %v3522 = vmul.f32 %v704, %v2332
      %v3523 = vmul.f32 %v705, %v2334
      %v3524 = vmul.f32 %v706, %v2336
      %v3525 = vmul.f32 %v707, %v2338
      %v3526 = vmul.f32 %v708, %v2340
      %v3527 = vmul.f32 %v709, %v2342
      %v3528 = vmul.f32 %v710, %v2344
      %v3529 = vmul.f32 %v711, %v2346
      %v3530 = vmul.f32 %v712, %v2348
      %v3531 = vmul.f32 %v713, %v2350
      %v3532 = vmul.f32 %v714, %v2352
      %v3533 = vmul.f32 %v715, %v2354
      %v3534 = vmul.f32 %v716, %v2356
      %v3535 = vmul.f32 %v717, %v2358
      %v3536 = vmul.f32 %v718, %v2360
      %v3537 = vmul.f32 %v719, %v2362
      %v3538 = vmul.f32 %v720, %v2364
      %v3539 = vmul.f32 %v721, %v2366
      %v3540 = vmul.f32 %v722, %v2368
      %v3541 = vmul.f32 %v723, %v2370
      %v3542 = vmul.f32 %v724, %v2372
      %v3543 = vmul.f32 %v725, %v2374
      %v3544 = vmul.f32 %v726, %v2376
      %v3545 = vmul.f32 %v727, %v2378
      %v3546 = vmul.f32 %v728, %v2380
      %v3547 = vmul.f32 %v729, %v2382
      %v3548 = vmul.f32 %v730, %v2384
      %v3549 = vmul.f32 %v731, %v2386
      %v3550 = vmul.f32 %v732, %v2388
      %v3551 = vmul.f32 %v733, %v2390
      %v3552 = vmul.f32 %v734, %v2392
      %v3553 = vmul.f32 %v735, %v2394
      %v3554 = vmul.f32 %v736, %v2396
      %v3555 = vmul.f32 %v737, %v2398
      %v3556 = vmul.f32 %v738, %v2400
      %v3557 = vmul.f32 %v739, %v2402
      %v3558 = vmul.f32 %v740, %v2404
      %v3559 = vmul.f32 %v741, %v2406
      %v3560 = vmul.f32 %v742, %v2408
      %3562 = vset.pattern.permute.xlu0 0
      %3563 = vperm.xlu0 %3562, %v3497
      %v3564 = vpop.permute.xlu0 %3563
      %3567 = vset.pattern.permute.xlu0 0
      %3568 = vperm.xlu0 %3567, %v3498
      %v3569 = vpop.permute.xlu0 %3568
      %3572 = vset.pattern.permute.xlu0 0
      %3573 = vperm.xlu0 %3572, %v3499
      %v3574 = vpop.permute.xlu0 %3573
      %3577 = vset.pattern.permute.xlu0 0
      %3578 = vperm.xlu0 %3577, %v3500
      %v3579 = vpop.permute.xlu0 %3578
      %3582 = vset.pattern.permute.xlu0 0
      %3583 = vperm.xlu0 %3582, %v3501
      %v3584 = vpop.permute.xlu0 %3583
      %3587 = vset.pattern.permute.xlu0 0
      %3588 = vperm.xlu0 %3587, %v3502
      %v3589 = vpop.permute.xlu0 %3588
      %3592 = vset.pattern.permute.xlu0 0
      %3593 = vperm.xlu0 %3592, %v3503
      %v3594 = vpop.permute.xlu0 %3593
      %3597 = vset.pattern.permute.xlu0 0
      %3598 = vperm.xlu0 %3597, %v3504
      %v3599 = vpop.permute.xlu0 %3598
      %3602 = vset.pattern.permute.xlu0 0
      %3603 = vperm.xlu0 %3602, %v3505
      %v3604 = vpop.permute.xlu0 %3603
      %3607 = vset.pattern.permute.xlu0 0
      %3608 = vperm.xlu0 %3607, %v3506
      %v3609 = vpop.permute.xlu0 %3608
      %3612 = vset.pattern.permute.xlu0 0
      %3613 = vperm.xlu0 %3612, %v3507
      %v3614 = vpop.permute.xlu0 %3613
      %3617 = vset.pattern.permute.xlu0 0
      %3618 = vperm.xlu0 %3617, %v3508
      %v3619 = vpop.permute.xlu0 %3618
      %3622 = vset.pattern.permute.xlu0 0
      %3623 = vperm.xlu0 %3622, %v3509
      %v3624 = vpop.permute.xlu0 %3623
      %3627 = vset.pattern.permute.xlu0 0
      %3628 = vperm.xlu0 %3627, %v3510
      %v3629 = vpop.permute.xlu0 %3628
      %3632 = vset.pattern.permute.xlu0 0
      %3633 = vperm.xlu0 %3632, %v3511
      %v3634 = vpop.permute.xlu0 %3633
      %3637 = vset.pattern.permute.xlu0 0
      %3638 = vperm.xlu0 %3637, %v3512
      %v3639 = vpop.permute.xlu0 %3638
      %3642 = vset.pattern.permute.xlu0 0
      %3643 = vperm.xlu0 %3642, %v3513
      %v3644 = vpop.permute.xlu0 %3643
      %3647 = vset.pattern.permute.xlu0 0
      %3648 = vperm.xlu0 %3647, %v3514
      %v3649 = vpop.permute.xlu0 %3648
      %3652 = vset.pattern.permute.xlu0 0
      %3653 = vperm.xlu0 %3652, %v3515
      %v3654 = vpop.permute.xlu0 %3653
      %3657 = vset.pattern.permute.xlu0 0
      %3658 = vperm.xlu0 %3657, %v3516
      %v3659 = vpop.permute.xlu0 %3658
      %3662 = vset.pattern.permute.xlu0 0
      %3663 = vperm.xlu0 %3662, %v3517
      %v3664 = vpop.permute.xlu0 %3663
      %3667 = vset.pattern.permute.xlu0 0
      %3668 = vperm.xlu0 %3667, %v3518
      %v3669 = vpop.permute.xlu0 %3668
      %3672 = vset.pattern.permute.xlu0 0
      %3673 = vperm.xlu0 %3672, %v3519
      %v3674 = vpop.permute.xlu0 %3673
      %3677 = vset.pattern.permute.xlu0 0
      %3678 = vperm.xlu0 %3677, %v3520
      %v3679 = vpop.permute.xlu0 %3678
      %3682 = vset.pattern.permute.xlu0 0
      %3683 = vperm.xlu0 %3682, %v3521
      %v3684 = vpop.permute.xlu0 %3683
      %3687 = vset.pattern.permute.xlu0 0
      %3688 = vperm.xlu0 %3687, %v3522
      %v3689 = vpop.permute.xlu0 %3688
      %3692 = vset.pattern.permute.xlu0 0
      %3693 = vperm.xlu0 %3692, %v3523
      %v3694 = vpop.permute.xlu0 %3693
      %3697 = vset.pattern.permute.xlu0 0
      %3698 = vperm.xlu0 %3697, %v3524
      %v3699 = vpop.permute.xlu0 %3698
      %3702 = vset.pattern.permute.xlu0 0
      %3703 = vperm.xlu0 %3702, %v3525
      %v3704 = vpop.permute.xlu0 %3703
      %3707 = vset.pattern.permute.xlu0 0
      %3708 = vperm.xlu0 %3707, %v3526
      %v3709 = vpop.permute.xlu0 %3708
      %3712 = vset.pattern.permute.xlu0 0
      %3713 = vperm.xlu0 %3712, %v3527
      %v3714 = vpop.permute.xlu0 %3713
      %3717 = vset.pattern.permute.xlu0 0
      %3718 = vperm.xlu0 %3717, %v3528
      %v3719 = vpop.permute.xlu0 %3718
      %3722 = vset.pattern.permute.xlu0 0
      %3723 = vperm.xlu0 %3722, %v3529
      %v3724 = vpop.permute.xlu0 %3723
      %3727 = vset.pattern.permute.xlu0 0
      %3728 = vperm.xlu0 %3727, %v3530
      %v3729 = vpop.permute.xlu0 %3728
      %3732 = vset.pattern.permute.xlu0 0
      %3733 = vperm.xlu0 %3732, %v3531
      %v3734 = vpop.permute.xlu0 %3733
      %3737 = vset.pattern.permute.xlu0 0
      %3738 = vperm.xlu0 %3737, %v3532
      %v3739 = vpop.permute.xlu0 %3738
      %3742 = vset.pattern.permute.xlu0 0
      %3743 = vperm.xlu0 %3742, %v3533
      %v3744 = vpop.permute.xlu0 %3743
      %3747 = vset.pattern.permute.xlu0 0
      %3748 = vperm.xlu0 %3747, %v3534
      %v3749 = vpop.permute.xlu0 %3748
      %3752 = vset.pattern.permute.xlu0 0
      %3753 = vperm.xlu0 %3752, %v3535
      %v3754 = vpop.permute.xlu0 %3753
      %3757 = vset.pattern.permute.xlu0 0
      %3758 = vperm.xlu0 %3757, %v3536
      %v3759 = vpop.permute.xlu0 %3758
      %3762 = vset.pattern.permute.xlu0 0
      %3763 = vperm.xlu0 %3762, %v3537
      %v3764 = vpop.permute.xlu0 %3763
      %3767 = vset.pattern.permute.xlu0 0
      %3768 = vperm.xlu0 %3767, %v3538
      %v3769 = vpop.permute.xlu0 %3768
      %3772 = vset.pattern.permute.xlu0 0
      %3773 = vperm.xlu0 %3772, %v3539
      %v3774 = vpop.permute.xlu0 %3773
      %3777 = vset.pattern.permute.xlu0 0
      %3778 = vperm.xlu0 %3777, %v3540
      %v3779 = vpop.permute.xlu0 %3778
      %3782 = vset.pattern.permute.xlu0 0
      %3783 = vperm.xlu0 %3782, %v3541
      %v3784 = vpop.permute.xlu0 %3783
      %3787 = vset.pattern.permute.xlu0 0
      %3788 = vperm.xlu0 %3787, %v3542
      %v3789 = vpop.permute.xlu0 %3788
      %3792 = vset.pattern.permute.xlu0 0
      %3793 = vperm.xlu0 %3792, %v3543
      %v3794 = vpop.permute.xlu0 %3793
      %3797 = vset.pattern.permute.xlu0 0
      %3798 = vperm.xlu0 %3797, %v3544
      %v3799 = vpop.permute.xlu0 %3798
      %3802 = vset.pattern.permute.xlu0 0
      %3803 = vperm.xlu0 %3802, %v3545
      %v3804 = vpop.permute.xlu0 %3803
      %3807 = vset.pattern.permute.xlu0 0
      %3808 = vperm.xlu0 %3807, %v3546
      %v3809 = vpop.permute.xlu0 %3808
      %3812 = vset.pattern.permute.xlu0 0
      %3813 = vperm.xlu0 %3812, %v3547
      %v3814 = vpop.permute.xlu0 %3813
      %3817 = vset.pattern.permute.xlu0 0
      %3818 = vperm.xlu0 %3817, %v3548
      %v3819 = vpop.permute.xlu0 %3818
      %3822 = vset.pattern.permute.xlu0 0
      %3823 = vperm.xlu0 %3822, %v3549
      %v3824 = vpop.permute.xlu0 %3823
      %3827 = vset.pattern.permute.xlu0 0
      %3828 = vperm.xlu0 %3827, %v3550
      %v3829 = vpop.permute.xlu0 %3828
      %3832 = vset.pattern.permute.xlu0 0
      %3833 = vperm.xlu0 %3832, %v3551
      %v3834 = vpop.permute.xlu0 %3833
      %3837 = vset.pattern.permute.xlu0 0
      %3838 = vperm.xlu0 %3837, %v3552
      %v3839 = vpop.permute.xlu0 %3838
      %3842 = vset.pattern.permute.xlu0 0
      %3843 = vperm.xlu0 %3842, %v3553
      %v3844 = vpop.permute.xlu0 %3843
      %3847 = vset.pattern.permute.xlu0 0
      %3848 = vperm.xlu0 %3847, %v3554
      %v3849 = vpop.permute.xlu0 %3848
      %3852 = vset.pattern.permute.xlu0 0
      %3853 = vperm.xlu0 %3852, %v3555
      %v3854 = vpop.permute.xlu0 %3853
      %3857 = vset.pattern.permute.xlu0 0
      %3858 = vperm.xlu0 %3857, %v3556
      %v3859 = vpop.permute.xlu0 %3858
      %3862 = vset.pattern.permute.xlu0 0
      %3863 = vperm.xlu0 %3862, %v3557
      %v3864 = vpop.permute.xlu0 %3863
      %3867 = vset.pattern.permute.xlu0 0
      %3868 = vperm.xlu0 %3867, %v3558
      %v3869 = vpop.permute.xlu0 %3868
      %3872 = vset.pattern.permute.xlu0 0
      %3873 = vperm.xlu0 %3872, %v3559
      %v3874 = vpop.permute.xlu0 %3873
      %3877 = vset.pattern.permute.xlu0 0
      %3878 = vperm.xlu0 %3877, %v3560
      %v3879 = vpop.permute.xlu0 %3878
      %v3881 = vsel %vm3433, %v3564, %v3369
      %v3882 = vsel %vm3434, %v3569, %v3370
      %v3883 = vsel %vm3435, %v3574, %v3371
      %v3884 = vsel %vm3436, %v3579, %v3372
      %v3885 = vsel %vm3437, %v3584, %v3373
      %v3886 = vsel %vm3438, %v3589, %v3374
      %v3887 = vsel %vm3439, %v3594, %v3375
      %v3888 = vsel %vm3440, %v3599, %v3376
      %v3889 = vsel %vm3441, %v3604, %v3377
      %v3890 = vsel %vm3442, %v3609, %v3378
      %v3891 = vsel %vm3443, %v3614, %v3379
      %v3892 = vsel %vm3444, %v3619, %v3380
      %v3893 = vsel %vm3445, %v3624, %v3381
      %v3894 = vsel %vm3446, %v3629, %v3382
      %v3895 = vsel %vm3447, %v3634, %v3383
      %v3896 = vsel %vm3448, %v3639, %v3384
      %v3897 = vsel %vm3449, %v3644, %v3385
      %v3898 = vsel %vm3450, %v3649, %v3386
      %v3899 = vsel %vm3451, %v3654, %v3387
      %v3900 = vsel %vm3452, %v3659, %v3388
      %v3901 = vsel %vm3453, %v3664, %v3389
      %v3902 = vsel %vm3454, %v3669, %v3390
      %v3903 = vsel %vm3455, %v3674, %v3391
      %v3904 = vsel %vm3456, %v3679, %v3392
      %v3905 = vsel %vm3457, %v3684, %v3393
      %v3906 = vsel %vm3458, %v3689, %v3394
      %v3907 = vsel %vm3459, %v3694, %v3395
      %v3908 = vsel %vm3460, %v3699, %v3396
      %v3909 = vsel %vm3461, %v3704, %v3397
      %v3910 = vsel %vm3462, %v3709, %v3398
      %v3911 = vsel %vm3463, %v3714, %v3399
      %v3912 = vsel %vm3464, %v3719, %v3400
      %v3913 = vsel %vm3465, %v3724, %v3401
      %v3914 = vsel %vm3466, %v3729, %v3402
      %v3915 = vsel %vm3467, %v3734, %v3403
      %v3916 = vsel %vm3468, %v3739, %v3404
      %v3917 = vsel %vm3469, %v3744, %v3405
      %v3918 = vsel %vm3470, %v3749, %v3406
      %v3919 = vsel %vm3471, %v3754, %v3407
      %v3920 = vsel %vm3472, %v3759, %v3408
      %v3921 = vsel %vm3473, %v3764, %v3409
      %v3922 = vsel %vm3474, %v3769, %v3410
      %v3923 = vsel %vm3475, %v3774, %v3411
      %v3924 = vsel %vm3476, %v3779, %v3412
      %v3925 = vsel %vm3477, %v3784, %v3413
      %v3926 = vsel %vm3478, %v3789, %v3414
      %v3927 = vsel %vm3479, %v3794, %v3415
      %v3928 = vsel %vm3480, %v3799, %v3416
      %v3929 = vsel %vm3481, %v3804, %v3417
      %v3930 = vsel %vm3482, %v3809, %v3418
      %v3931 = vsel %vm3483, %v3814, %v3419
      %v3932 = vsel %vm3484, %v3819, %v3420
      %v3933 = vsel %vm3485, %v3824, %v3421
      %v3934 = vsel %vm3486, %v3829, %v3422
      %v3935 = vsel %vm3487, %v3834, %v3423
      %v3936 = vsel %vm3488, %v3839, %v3424
      %v3937 = vsel %vm3489, %v3844, %v3425
      %v3938 = vsel %vm3490, %v3849, %v3426
      %v3939 = vsel %vm3491, %v3854, %v3427
      %v3940 = vsel %vm3492, %v3859, %v3428
      %v3941 = vsel %vm3493, %v3864, %v3429
      %v3942 = vsel %vm3494, %v3869, %v3430
      %v3943 = vsel %vm3495, %v3874, %v3431
      %v3944 = vsel %vm3496, %v3879, %v3432
      %v3945 = vld [vmem:[%s3] sm:$0xff]
      %v3946 = vld [vmem:[%s3 + $0x8] sm:$0xff]
      %v3947 = vld [vmem:[%s3 + $0x10] sm:$0xff]
      %v3948 = vld [vmem:[%s3 + $0x18] sm:$0xff]
      %v3949 = vld [vmem:[%s3 + $0x20] sm:$0xff]
      %v3950 = vld [vmem:[%s3 + $0x28] sm:$0xff]
      %v3951 = vld [vmem:[%s3 + $0x30] sm:$0xff]
      %v3952 = vld [vmem:[%s3 + $0x38] sm:$0xff]
      %vm3953 = vcmask 523264
      %v3955 = vsel %vm3953, %v3881, 0
      %v3958 = vsel %vm3953, %v3882, 0
      %v3961 = vsel %vm3953, %v3883, 0
      %v3964 = vsel %vm3953, %v3884, 0
      %v3967 = vsel %vm3953, %v3885, 0
      %v3970 = vsel %vm3953, %v3886, 0
      %v3973 = vsel %vm3953, %v3887, 0
      %v3976 = vsel %vm3953, %v3888, 0
      %v3979 = vsel %vm3953, %v3889, 0
      %v3982 = vsel %vm3953, %v3890, 0
      %v3985 = vsel %vm3953, %v3891, 0
      %v3988 = vsel %vm3953, %v3892, 0
      %v3991 = vsel %vm3953, %v3893, 0
      %v3994 = vsel %vm3953, %v3894, 0
      %v3997 = vsel %vm3953, %v3895, 0
      %v4000 = vsel %vm3953, %v3896, 0
      %v4003 = vsel %vm3953, %v3897, 0
      %v4006 = vsel %vm3953, %v3898, 0
      %v4009 = vsel %vm3953, %v3899, 0
      %v4012 = vsel %vm3953, %v3900, 0
      %v4015 = vsel %vm3953, %v3901, 0
      %v4018 = vsel %vm3953, %v3902, 0
      %v4021 = vsel %vm3953, %v3903, 0
      %v4024 = vsel %vm3953, %v3904, 0
      %v4027 = vsel %vm3953, %v3905, 0
      %v4030 = vsel %vm3953, %v3906, 0
      %v4033 = vsel %vm3953, %v3907, 0
      %v4036 = vsel %vm3953, %v3908, 0
      %v4039 = vsel %vm3953, %v3909, 0
      %v4042 = vsel %vm3953, %v3910, 0
      %v4045 = vsel %vm3953, %v3911, 0
      %v4048 = vsel %vm3953, %v3912, 0
      %v4051 = vsel %vm3953, %v3913, 0
      %v4054 = vsel %vm3953, %v3914, 0
      %v4057 = vsel %vm3953, %v3915, 0
      %v4060 = vsel %vm3953, %v3916, 0
      %v4063 = vsel %vm3953, %v3917, 0
      %v4066 = vsel %vm3953, %v3918, 0
      %v4069 = vsel %vm3953, %v3919, 0
      %v4072 = vsel %vm3953, %v3920, 0
      %v4075 = vsel %vm3953, %v3921, 0
      %v4078 = vsel %vm3953, %v3922, 0
      %v4081 = vsel %vm3953, %v3923, 0
      %v4084 = vsel %vm3953, %v3924, 0
      %v4087 = vsel %vm3953, %v3925, 0
      %v4090 = vsel %vm3953, %v3926, 0
      %v4093 = vsel %vm3953, %v3927, 0
      %v4096 = vsel %vm3953, %v3928, 0
      %v4099 = vsel %vm3953, %v3929, 0
      %v4102 = vsel %vm3953, %v3930, 0
      %v4105 = vsel %vm3953, %v3931, 0
      %v4108 = vsel %vm3953, %v3932, 0
      %v4111 = vsel %vm3953, %v3933, 0
      %v4114 = vsel %vm3953, %v3934, 0
      %v4117 = vsel %vm3953, %v3935, 0
      %v4120 = vsel %vm3953, %v3936, 0
      %v4123 = vsel %vm3953, %v3937, 0
      %v4126 = vsel %vm3953, %v3938, 0
      %v4129 = vsel %vm3953, %v3939, 0
      %v4132 = vsel %vm3953, %v3940, 0
      %v4135 = vsel %vm3953, %v3941, 0
      %v4138 = vsel %vm3953, %v3942, 0
      %v4141 = vsel %vm3953, %v3943, 0
      %v4144 = vsel %vm3953, %v3944, 0
      %4146 = vmatprep.subr.mxu0 0.0
      %4147 = vmatpush1.msra.mxu0 0.0
      %4148 = vmatprep.subr.mxu0 0.0
      %4149 = vmatpush1.msra.mxu0 0.0
      %4150 = vmatprep.subr.mxu0 0.0
      %4151 = vmatpush1.msra.mxu0 0.0
      %4152 = vmatprep.subr.mxu0 0.0
      %4153 = vmatpush1.msra.mxu0 0.0
      %4154 = vmatprep.subr.mxu0 0.0
      %4155 = vmatpush1.msra.mxu0 0.0
      %4156 = vmatprep.subr.mxu0 0.0
      %4157 = vmatpush1.msra.mxu0 0.0
      %4158 = vmatprep.subr.mxu0 0.0
      %4159 = vmatpush1.msra.mxu0 0.0
      %4160 = vmatprep.subr.mxu0 0.0
      %4161 = vmatpush1.msra.mxu0 0.0
      %4162 = vmatprep.subr.mxu0 0.0
      %4163 = vmatpush1.msra.mxu0 %v3952
      %4164 = vmatprep.subr.mxu0 0.0
      %4165 = vmatpush1.msra.mxu0 %v3951
      %4166 = vmatprep.subr.mxu0 0.0
      %4167 = vmatpush1.msra.mxu0 %v3950
      %4168 = vmatprep.subr.mxu0 0.0
      %4169 = vmatpush1.msra.mxu0 %v3949
      %4170 = vmatprep.subr.mxu0 0.0
      %4171 = vmatpush1.msra.mxu0 %v3948
      %4172 = vmatprep.subr.mxu0 0.0
      %4173 = vmatpush1.msra.mxu0 %v3947
      %4174 = vmatprep.subr.mxu0 0.0
      %4175 = vmatpush1.msra.mxu0 %v3946
      %4176 = vmatprep.subr.mxu0 0.0
      %4177 = vmatpush1.msra.mxu0 %v3945
      %4178 = vmatprep.subr.mxu0 0.0
      %4179 = vmatpush2.msra.mxu0 0.0
      %4180 = vmatprep.subr.mxu0 0.0
      %4181 = vmatpush2.msra.mxu0 0.0
      %4182 = vmatprep.subr.mxu0 0.0
      %4183 = vmatpush2.msra.mxu0 0.0
      %4184 = vmatprep.subr.mxu0 0.0
      %4185 = vmatpush2.msra.mxu0 0.0
      %4186 = vmatprep.subr.mxu0 0.0
      %4187 = vmatpush2.msra.mxu0 0.0
      %4188 = vmatprep.subr.mxu0 0.0
      %4189 = vmatpush2.msra.mxu0 0.0
      %4190 = vmatprep.subr.mxu0 0.0
      %4191 = vmatpush2.msra.mxu0 0.0
      %4192 = vmatprep.subr.mxu0 0.0
      %4193 = vmatpush2.msra.mxu0 0.0
      %4194 = vmatprep.subr.mxu0 0.0
      %4195 = vmatpush2.msra.mxu0 0.0
      %4196 = vmatprep.subr.mxu0 0.0
      %4197 = vmatpush2.msra.mxu0 0.0
      %4198 = vmatprep.subr.mxu0 0.0
      %4199 = vmatpush2.msra.mxu0 0.0
      %4200 = vmatprep.subr.mxu0 0.0
      %4201 = vmatpush2.msra.mxu0 0.0
      %4202 = vmatprep.subr.mxu0 0.0
      %4203 = vmatpush2.msra.mxu0 0.0
      %4204 = vmatprep.subr.mxu0 0.0
      %4205 = vmatpush2.msra.mxu0 0.0
      %4206 = vmatprep.subr.mxu0 0.0
      %4207 = vmatpush2.msra.mxu0 0.0
      %4208 = vmatprep.subr.mxu0 0.0
      %4209 = vmatpush2.msra.mxu0 0.0
      %4210 = vmatprep.mubr.f32.mxu0 0.0
      %4211 = vmatmul.mubr.f32.gmra.mxu0 %v3955
      %v4212 = vpop.f32.mrf.mxu0
      %v4213 = vadd.f32 0.0, %v4212
      %v4214 = vpop.f32.mrf.mxu0
      %4215 = vmatprep.mubr.f32.mxu0 0.0
      %4216 = vmatmul.mubr.f32.gmra.mxu0 %v3958
      %v4217 = vpop.f32.mrf.mxu0
      %v4218 = vadd.f32 0.0, %v4217
      %v4219 = vpop.f32.mrf.mxu0
      %4220 = vmatprep.mubr.f32.mxu0 0.0
      %4221 = vmatmul.mubr.f32.gmra.mxu0 %v3961
      %v4222 = vpop.f32.mrf.mxu0
      %v4223 = vadd.f32 0.0, %v4222
      %v4224 = vpop.f32.mrf.mxu0
      %4225 = vmatprep.mubr.f32.mxu0 0.0
      %4226 = vmatmul.mubr.f32.gmra.mxu0 %v3964
      %v4227 = vpop.f32.mrf.mxu0
      %v4228 = vadd.f32 0.0, %v4227
      %v4229 = vpop.f32.mrf.mxu0
      %4230 = vmatprep.mubr.f32.mxu0 0.0
      %4231 = vmatmul.mubr.f32.gmra.mxu0 %v3967
      %v4232 = vpop.f32.mrf.mxu0
      %v4233 = vadd.f32 0.0, %v4232
      %v4234 = vpop.f32.mrf.mxu0
      %4235 = vmatprep.mubr.f32.mxu0 0.0
      %4236 = vmatmul.mubr.f32.gmra.mxu0 %v3970
      %v4237 = vpop.f32.mrf.mxu0
      %v4238 = vadd.f32 0.0, %v4237
      %v4239 = vpop.f32.mrf.mxu0
      %4240 = vmatprep.mubr.f32.mxu0 0.0
      %4241 = vmatmul.mubr.f32.gmra.mxu0 %v3973
      %v4242 = vpop.f32.mrf.mxu0
      %v4243 = vadd.f32 0.0, %v4242
      %v4244 = vpop.f32.mrf.mxu0
      %4245 = vmatprep.mubr.f32.mxu0 0.0
      %4246 = vmatmul.mubr.f32.gmra.mxu0 %v3976
      %v4247 = vpop.f32.mrf.mxu0
      %v4248 = vadd.f32 0.0, %v4247
      %v4249 = vpop.f32.mrf.mxu0
      %4250 = vmatprep.mubr.f32.mxu0 0.0
      %4251 = vmatmul.mubr.f32.gmra.mxu0 %v3979
      %v4252 = vpop.f32.mrf.mxu0
      %v4253 = vadd.f32 0.0, %v4252
      %v4254 = vpop.f32.mrf.mxu0
      %4255 = vmatprep.mubr.f32.mxu0 0.0
      %4256 = vmatmul.mubr.f32.gmra.mxu0 %v3982
      %v4257 = vpop.f32.mrf.mxu0
      %v4258 = vadd.f32 0.0, %v4257
      %v4259 = vpop.f32.mrf.mxu0
      %4260 = vmatprep.mubr.f32.mxu0 0.0
      %4261 = vmatmul.mubr.f32.gmra.mxu0 %v3985
      %v4262 = vpop.f32.mrf.mxu0
      %v4263 = vadd.f32 0.0, %v4262
      %v4264 = vpop.f32.mrf.mxu0
      %4265 = vmatprep.mubr.f32.mxu0 0.0
      %4266 = vmatmul.mubr.f32.gmra.mxu0 %v3988
      %v4267 = vpop.f32.mrf.mxu0
      %v4268 = vadd.f32 0.0, %v4267
      %v4269 = vpop.f32.mrf.mxu0
      %4270 = vmatprep.mubr.f32.mxu0 0.0
      %4271 = vmatmul.mubr.f32.gmra.mxu0 %v3991
      %v4272 = vpop.f32.mrf.mxu0
      %v4273 = vadd.f32 0.0, %v4272
      %v4274 = vpop.f32.mrf.mxu0
      %4275 = vmatprep.mubr.f32.mxu0 0.0
      %4276 = vmatmul.mubr.f32.gmra.mxu0 %v3994
      %v4277 = vpop.f32.mrf.mxu0
      %v4278 = vadd.f32 0.0, %v4277
      %v4279 = vpop.f32.mrf.mxu0
      %4280 = vmatprep.mubr.f32.mxu0 0.0
      %4281 = vmatmul.mubr.f32.gmra.mxu0 %v3997
      %v4282 = vpop.f32.mrf.mxu0
      %v4283 = vadd.f32 0.0, %v4282
      %v4284 = vpop.f32.mrf.mxu0
      %4285 = vmatprep.mubr.f32.mxu0 0.0
      %4286 = vmatmul.mubr.f32.gmra.mxu0 %v4000
      %v4287 = vpop.f32.mrf.mxu0
      %v4288 = vadd.f32 0.0, %v4287
      %v4289 = vpop.f32.mrf.mxu0
      %4290 = vmatprep.mubr.f32.mxu0 0.0
      %4291 = vmatmul.mubr.f32.gmra.mxu0 %v4003
      %v4292 = vpop.f32.mrf.mxu0
      %v4293 = vadd.f32 0.0, %v4292
      %v4294 = vpop.f32.mrf.mxu0
      %4295 = vmatprep.mubr.f32.mxu0 0.0
      %4296 = vmatmul.mubr.f32.gmra.mxu0 %v4006
      %v4297 = vpop.f32.mrf.mxu0
      %v4298 = vadd.f32 0.0, %v4297
      %v4299 = vpop.f32.mrf.mxu0
      %4300 = vmatprep.mubr.f32.mxu0 0.0
      %4301 = vmatmul.mubr.f32.gmra.mxu0 %v4009
      %v4302 = vpop.f32.mrf.mxu0
      %v4303 = vadd.f32 0.0, %v4302
      %v4304 = vpop.f32.mrf.mxu0
      %4305 = vmatprep.mubr.f32.mxu0 0.0
      %4306 = vmatmul.mubr.f32.gmra.mxu0 %v4012
      %v4307 = vpop.f32.mrf.mxu0
      %v4308 = vadd.f32 0.0, %v4307
      %v4309 = vpop.f32.mrf.mxu0
      %4310 = vmatprep.mubr.f32.mxu0 0.0
      %4311 = vmatmul.mubr.f32.gmra.mxu0 %v4015
      %v4312 = vpop.f32.mrf.mxu0
      %v4313 = vadd.f32 0.0, %v4312
      %v4314 = vpop.f32.mrf.mxu0
      %4315 = vmatprep.mubr.f32.mxu0 0.0
      %4316 = vmatmul.mubr.f32.gmra.mxu0 %v4018
      %v4317 = vpop.f32.mrf.mxu0
      %v4318 = vadd.f32 0.0, %v4317
      %v4319 = vpop.f32.mrf.mxu0
      %4320 = vmatprep.mubr.f32.mxu0 0.0
      %4321 = vmatmul.mubr.f32.gmra.mxu0 %v4021
      %v4322 = vpop.f32.mrf.mxu0
      %v4323 = vadd.f32 0.0, %v4322
      %v4324 = vpop.f32.mrf.mxu0
      %4325 = vmatprep.mubr.f32.mxu0 0.0
      %4326 = vmatmul.mubr.f32.gmra.mxu0 %v4024
      %v4327 = vpop.f32.mrf.mxu0
      %v4328 = vadd.f32 0.0, %v4327
      %v4329 = vpop.f32.mrf.mxu0
      %4330 = vmatprep.mubr.f32.mxu0 0.0
      %4331 = vmatmul.mubr.f32.gmra.mxu0 %v4027
      %v4332 = vpop.f32.mrf.mxu0
      %v4333 = vadd.f32 0.0, %v4332
      %v4334 = vpop.f32.mrf.mxu0
      %4335 = vmatprep.mubr.f32.mxu0 0.0
      %4336 = vmatmul.mubr.f32.gmra.mxu0 %v4030
      %v4337 = vpop.f32.mrf.mxu0
      %v4338 = vadd.f32 0.0, %v4337
      %v4339 = vpop.f32.mrf.mxu0
      %4340 = vmatprep.mubr.f32.mxu0 0.0
      %4341 = vmatmul.mubr.f32.gmra.mxu0 %v4033
      %v4342 = vpop.f32.mrf.mxu0
      %v4343 = vadd.f32 0.0, %v4342
      %v4344 = vpop.f32.mrf.mxu0
      %4345 = vmatprep.mubr.f32.mxu0 0.0
      %4346 = vmatmul.mubr.f32.gmra.mxu0 %v4036
      %v4347 = vpop.f32.mrf.mxu0
      %v4348 = vadd.f32 0.0, %v4347
      %v4349 = vpop.f32.mrf.mxu0
      %4350 = vmatprep.mubr.f32.mxu0 0.0
      %4351 = vmatmul.mubr.f32.gmra.mxu0 %v4039
      %v4352 = vpop.f32.mrf.mxu0
      %v4353 = vadd.f32 0.0, %v4352
      %v4354 = vpop.f32.mrf.mxu0
      %4355 = vmatprep.mubr.f32.mxu0 0.0
      %4356 = vmatmul.mubr.f32.gmra.mxu0 %v4042
      %v4357 = vpop.f32.mrf.mxu0
      %v4358 = vadd.f32 0.0, %v4357
      %v4359 = vpop.f32.mrf.mxu0
      %4360 = vmatprep.mubr.f32.mxu0 0.0
      %4361 = vmatmul.mubr.f32.gmra.mxu0 %v4045
      %v4362 = vpop.f32.mrf.mxu0
      %v4363 = vadd.f32 0.0, %v4362
      %v4364 = vpop.f32.mrf.mxu0
      %4365 = vmatprep.mubr.f32.mxu0 0.0
      %4366 = vmatmul.mubr.f32.gmra.mxu0 %v4048
      %v4367 = vpop.f32.mrf.mxu0
      %v4368 = vadd.f32 0.0, %v4367
      %v4369 = vpop.f32.mrf.mxu0
      %4370 = vmatprep.mubr.f32.mxu0 0.0
      %4371 = vmatmul.mubr.f32.gmra.mxu0 %v4051
      %v4372 = vpop.f32.mrf.mxu0
      %v4373 = vadd.f32 0.0, %v4372
      %v4374 = vpop.f32.mrf.mxu0
      %4375 = vmatprep.mubr.f32.mxu0 0.0
      %4376 = vmatmul.mubr.f32.gmra.mxu0 %v4054
      %v4377 = vpop.f32.mrf.mxu0
      %v4378 = vadd.f32 0.0, %v4377
      %v4379 = vpop.f32.mrf.mxu0
      %4380 = vmatprep.mubr.f32.mxu0 0.0
      %4381 = vmatmul.mubr.f32.gmra.mxu0 %v4057
      %v4382 = vpop.f32.mrf.mxu0
      %v4383 = vadd.f32 0.0, %v4382
      %v4384 = vpop.f32.mrf.mxu0
      %4385 = vmatprep.mubr.f32.mxu0 0.0
      %4386 = vmatmul.mubr.f32.gmra.mxu0 %v4060
      %v4387 = vpop.f32.mrf.mxu0
      %v4388 = vadd.f32 0.0, %v4387
      %v4389 = vpop.f32.mrf.mxu0
      %4390 = vmatprep.mubr.f32.mxu0 0.0
      %4391 = vmatmul.mubr.f32.gmra.mxu0 %v4063
      %v4392 = vpop.f32.mrf.mxu0
      %v4393 = vadd.f32 0.0, %v4392
      %v4394 = vpop.f32.mrf.mxu0
      %4395 = vmatprep.mubr.f32.mxu0 0.0
      %4396 = vmatmul.mubr.f32.gmra.mxu0 %v4066
      %v4397 = vpop.f32.mrf.mxu0
      %v4398 = vadd.f32 0.0, %v4397
      %v4399 = vpop.f32.mrf.mxu0
      %4400 = vmatprep.mubr.f32.mxu0 0.0
      %4401 = vmatmul.mubr.f32.gmra.mxu0 %v4069
      %v4402 = vpop.f32.mrf.mxu0
      %v4403 = vadd.f32 0.0, %v4402
      %v4404 = vpop.f32.mrf.mxu0
      %4405 = vmatprep.mubr.f32.mxu0 0.0
      %4406 = vmatmul.mubr.f32.gmra.mxu0 %v4072
      %v4407 = vpop.f32.mrf.mxu0
      %v4408 = vadd.f32 0.0, %v4407
      %v4409 = vpop.f32.mrf.mxu0
      %4410 = vmatprep.mubr.f32.mxu0 0.0
      %4411 = vmatmul.mubr.f32.gmra.mxu0 %v4075
      %v4412 = vpop.f32.mrf.mxu0
      %v4413 = vadd.f32 0.0, %v4412
      %v4414 = vpop.f32.mrf.mxu0
      %4415 = vmatprep.mubr.f32.mxu0 0.0
      %4416 = vmatmul.mubr.f32.gmra.mxu0 %v4078
      %v4417 = vpop.f32.mrf.mxu0
      %v4418 = vadd.f32 0.0, %v4417
      %v4419 = vpop.f32.mrf.mxu0
      %4420 = vmatprep.mubr.f32.mxu0 0.0
      %4421 = vmatmul.mubr.f32.gmra.mxu0 %v4081
      %v4422 = vpop.f32.mrf.mxu0
      %v4423 = vadd.f32 0.0, %v4422
      %v4424 = vpop.f32.mrf.mxu0
      %4425 = vmatprep.mubr.f32.mxu0 0.0
      %4426 = vmatmul.mubr.f32.gmra.mxu0 %v4084
      %v4427 = vpop.f32.mrf.mxu0
      %v4428 = vadd.f32 0.0, %v4427
      %v4429 = vpop.f32.mrf.mxu0
      %4430 = vmatprep.mubr.f32.mxu0 0.0
      %4431 = vmatmul.mubr.f32.gmra.mxu0 %v4087
      %v4432 = vpop.f32.mrf.mxu0
      %v4433 = vadd.f32 0.0, %v4432
      %v4434 = vpop.f32.mrf.mxu0
      %4435 = vmatprep.mubr.f32.mxu0 0.0
      %4436 = vmatmul.mubr.f32.gmra.mxu0 %v4090
      %v4437 = vpop.f32.mrf.mxu0
      %v4438 = vadd.f32 0.0, %v4437
      %v4439 = vpop.f32.mrf.mxu0
      %4440 = vmatprep.mubr.f32.mxu0 0.0
      %4441 = vmatmul.mubr.f32.gmra.mxu0 %v4093
      %v4442 = vpop.f32.mrf.mxu0
      %v4443 = vadd.f32 0.0, %v4442
      %v4444 = vpop.f32.mrf.mxu0
      %4445 = vmatprep.mubr.f32.mxu0 0.0
      %4446 = vmatmul.mubr.f32.gmra.mxu0 %v4096
      %v4447 = vpop.f32.mrf.mxu0
      %v4448 = vadd.f32 0.0, %v4447
      %v4449 = vpop.f32.mrf.mxu0
      %4450 = vmatprep.mubr.f32.mxu0 0.0
      %4451 = vmatmul.mubr.f32.gmra.mxu0 %v4099
      %v4452 = vpop.f32.mrf.mxu0
      %v4453 = vadd.f32 0.0, %v4452
      %v4454 = vpop.f32.mrf.mxu0
      %4455 = vmatprep.mubr.f32.mxu0 0.0
      %4456 = vmatmul.mubr.f32.gmra.mxu0 %v4102
      %v4457 = vpop.f32.mrf.mxu0
      %v4458 = vadd.f32 0.0, %v4457
      %v4459 = vpop.f32.mrf.mxu0
      %4460 = vmatprep.mubr.f32.mxu0 0.0
      %4461 = vmatmul.mubr.f32.gmra.mxu0 %v4105
      %v4462 = vpop.f32.mrf.mxu0
      %v4463 = vadd.f32 0.0, %v4462
      %v4464 = vpop.f32.mrf.mxu0
      %4465 = vmatprep.mubr.f32.mxu0 0.0
      %4466 = vmatmul.mubr.f32.gmra.mxu0 %v4108
      %v4467 = vpop.f32.mrf.mxu0
      %v4468 = vadd.f32 0.0, %v4467
      %v4469 = vpop.f32.mrf.mxu0
      %4470 = vmatprep.mubr.f32.mxu0 0.0
      %4471 = vmatmul.mubr.f32.gmra.mxu0 %v4111
      %v4472 = vpop.f32.mrf.mxu0
      %v4473 = vadd.f32 0.0, %v4472
      %v4474 = vpop.f32.mrf.mxu0
      %4475 = vmatprep.mubr.f32.mxu0 0.0
      %4476 = vmatmul.mubr.f32.gmra.mxu0 %v4114
      %v4477 = vpop.f32.mrf.mxu0
      %v4478 = vadd.f32 0.0, %v4477
      %v4479 = vpop.f32.mrf.mxu0
      %4480 = vmatprep.mubr.f32.mxu0 0.0
      %4481 = vmatmul.mubr.f32.gmra.mxu0 %v4117
      %v4482 = vpop.f32.mrf.mxu0
      %v4483 = vadd.f32 0.0, %v4482
      %v4484 = vpop.f32.mrf.mxu0
      %4485 = vmatprep.mubr.f32.mxu0 0.0
      %4486 = vmatmul.mubr.f32.gmra.mxu0 %v4120
      %v4487 = vpop.f32.mrf.mxu0
      %v4488 = vadd.f32 0.0, %v4487
      %v4489 = vpop.f32.mrf.mxu0
      %4490 = vmatprep.mubr.f32.mxu0 0.0
      %4491 = vmatmul.mubr.f32.gmra.mxu0 %v4123
      %v4492 = vpop.f32.mrf.mxu0
      %v4493 = vadd.f32 0.0, %v4492
      %v4494 = vpop.f32.mrf.mxu0
      %4495 = vmatprep.mubr.f32.mxu0 0.0
      %4496 = vmatmul.mubr.f32.gmra.mxu0 %v4126
      %v4497 = vpop.f32.mrf.mxu0
      %v4498 = vadd.f32 0.0, %v4497
      %v4499 = vpop.f32.mrf.mxu0
      %4500 = vmatprep.mubr.f32.mxu0 0.0
      %4501 = vmatmul.mubr.f32.gmra.mxu0 %v4129
      %v4502 = vpop.f32.mrf.mxu0
      %v4503 = vadd.f32 0.0, %v4502
      %v4504 = vpop.f32.mrf.mxu0
      %4505 = vmatprep.mubr.f32.mxu0 0.0
      %4506 = vmatmul.mubr.f32.gmra.mxu0 %v4132
      %v4507 = vpop.f32.mrf.mxu0
      %v4508 = vadd.f32 0.0, %v4507
      %v4509 = vpop.f32.mrf.mxu0
      %4510 = vmatprep.mubr.f32.mxu0 0.0
      %4511 = vmatmul.mubr.f32.gmra.mxu0 %v4135
      %v4512 = vpop.f32.mrf.mxu0
      %v4513 = vadd.f32 0.0, %v4512
      %v4514 = vpop.f32.mrf.mxu0
      %4515 = vmatprep.mubr.f32.mxu0 0.0
      %4516 = vmatmul.mubr.f32.gmra.mxu0 %v4138
      %v4517 = vpop.f32.mrf.mxu0
      %v4518 = vadd.f32 0.0, %v4517
      %v4519 = vpop.f32.mrf.mxu0
      %4520 = vmatprep.mubr.f32.mxu0 0.0
      %4521 = vmatmul.mubr.f32.gmra.mxu0 %v4141
      %v4522 = vpop.f32.mrf.mxu0
      %v4523 = vadd.f32 0.0, %v4522
      %v4524 = vpop.f32.mrf.mxu0
      %4525 = vmatprep.mubr.f32.mxu0 0.0
      %4526 = vmatmul.mubr.f32.gmra.mxu0 %v4144
      %v4527 = vpop.f32.mrf.mxu0
      %v4528 = vadd.f32 0.0, %v4527
      %v4529 = vpop.f32.mrf.mxu0
      %4530 = vdwg.mxu0
      %v4531 = vld [vmem:[%s2] sm:$0x1]
      %v4532 = vlaneseq
      %v4533 = vshrl.u32 %v4532, 7
      %v4534 = vsub.s32 0, %v4533
      %v4535 = vrot.slane %v4531, %v4534
      %4536 = vset.pattern.permute.xlu0 2
      %4537 = vperm.xlu0 %4536, %v743
      %v4538 = vpop.permute.xlu0 %4537
      %4539 = vset.pattern.permute.xlu0 2
      %4540 = vperm.xlu0 %4539, %v744
      %v4541 = vpop.permute.xlu0 %4540
      %4542 = vset.pattern.permute.xlu0 2
      %4543 = vperm.xlu0 %4542, %v745
      %v4544 = vpop.permute.xlu0 %4543
      %4545 = vset.pattern.permute.xlu0 2
      %4546 = vperm.xlu0 %4545, %v746
      %v4547 = vpop.permute.xlu0 %4546
      %4548 = vset.pattern.permute.xlu0 2
      %4549 = vperm.xlu0 %4548, %v747
      %v4550 = vpop.permute.xlu0 %4549
      %4551 = vset.pattern.permute.xlu0 2
      %4552 = vperm.xlu0 %4551, %v748
      %v4553 = vpop.permute.xlu0 %4552
      %4554 = vset.pattern.permute.xlu0 2
      %4555 = vperm.xlu0 %4554, %v749
      %v4556 = vpop.permute.xlu0 %4555
      %4557 = vset.pattern.permute.xlu0 2
      %4558 = vperm.xlu0 %4557, %v750
      %v4559 = vpop.permute.xlu0 %4558
      %4560 = vset.pattern.permute.xlu0 2
      %4561 = vperm.xlu0 %4560, %v751
      %v4562 = vpop.permute.xlu0 %4561
      %4563 = vset.pattern.permute.xlu0 2
      %4564 = vperm.xlu0 %4563, %v752
      %v4565 = vpop.permute.xlu0 %4564
      %4566 = vset.pattern.permute.xlu0 2
      %4567 = vperm.xlu0 %4566, %v753
      %v4568 = vpop.permute.xlu0 %4567
      %4569 = vset.pattern.permute.xlu0 2
      %4570 = vperm.xlu0 %4569, %v754
      %v4571 = vpop.permute.xlu0 %4570
      %4572 = vset.pattern.permute.xlu0 2
      %4573 = vperm.xlu0 %4572, %v755
      %v4574 = vpop.permute.xlu0 %4573
      %4575 = vset.pattern.permute.xlu0 2
      %4576 = vperm.xlu0 %4575, %v756
      %v4577 = vpop.permute.xlu0 %4576
      %4578 = vset.pattern.permute.xlu0 2
      %4579 = vperm.xlu0 %4578, %v757
      %v4580 = vpop.permute.xlu0 %4579
      %4581 = vset.pattern.permute.xlu0 2
      %4582 = vperm.xlu0 %4581, %v758
      %v4583 = vpop.permute.xlu0 %4582
      %4584 = vset.pattern.permute.xlu0 2
      %4585 = vperm.xlu0 %4584, %v759
      %v4586 = vpop.permute.xlu0 %4585
      %4587 = vset.pattern.permute.xlu0 2
      %4588 = vperm.xlu0 %4587, %v760
      %v4589 = vpop.permute.xlu0 %4588
      %4590 = vset.pattern.permute.xlu0 2
      %4591 = vperm.xlu0 %4590, %v761
      %v4592 = vpop.permute.xlu0 %4591
      %4593 = vset.pattern.permute.xlu0 2
      %4594 = vperm.xlu0 %4593, %v762
      %v4595 = vpop.permute.xlu0 %4594
      %4596 = vset.pattern.permute.xlu0 2
      %4597 = vperm.xlu0 %4596, %v763
      %v4598 = vpop.permute.xlu0 %4597
      %4599 = vset.pattern.permute.xlu0 2
      %4600 = vperm.xlu0 %4599, %v764
      %v4601 = vpop.permute.xlu0 %4600
      %4602 = vset.pattern.permute.xlu0 2
      %4603 = vperm.xlu0 %4602, %v765
      %v4604 = vpop.permute.xlu0 %4603
      %4605 = vset.pattern.permute.xlu0 2
      %4606 = vperm.xlu0 %4605, %v766
      %v4607 = vpop.permute.xlu0 %4606
      %4608 = vset.pattern.permute.xlu0 2
      %4609 = vperm.xlu0 %4608, %v767
      %v4610 = vpop.permute.xlu0 %4609
      %4611 = vset.pattern.permute.xlu0 2
      %4612 = vperm.xlu0 %4611, %v768
      %v4613 = vpop.permute.xlu0 %4612
      %4614 = vset.pattern.permute.xlu0 2
      %4615 = vperm.xlu0 %4614, %v769
      %v4616 = vpop.permute.xlu0 %4615
      %4617 = vset.pattern.permute.xlu0 2
      %4618 = vperm.xlu0 %4617, %v770
      %v4619 = vpop.permute.xlu0 %4618
      %4620 = vset.pattern.permute.xlu0 2
      %4621 = vperm.xlu0 %4620, %v771
      %v4622 = vpop.permute.xlu0 %4621
      %4623 = vset.pattern.permute.xlu0 2
      %4624 = vperm.xlu0 %4623, %v772
      %v4625 = vpop.permute.xlu0 %4624
      %4626 = vset.pattern.permute.xlu0 2
      %4627 = vperm.xlu0 %4626, %v773
      %v4628 = vpop.permute.xlu0 %4627
      %4629 = vset.pattern.permute.xlu0 2
      %4630 = vperm.xlu0 %4629, %v774
      %v4631 = vpop.permute.xlu0 %4630
      %4632 = vset.pattern.permute.xlu0 2
      %4633 = vperm.xlu0 %4632, %v775
      %v4634 = vpop.permute.xlu0 %4633
      %4635 = vset.pattern.permute.xlu0 2
      %4636 = vperm.xlu0 %4635, %v776
      %v4637 = vpop.permute.xlu0 %4636
      %4638 = vset.pattern.permute.xlu0 2
      %4639 = vperm.xlu0 %4638, %v777
      %v4640 = vpop.permute.xlu0 %4639
      %4641 = vset.pattern.permute.xlu0 2
      %4642 = vperm.xlu0 %4641, %v778
      %v4643 = vpop.permute.xlu0 %4642
      %4644 = vset.pattern.permute.xlu0 2
      %4645 = vperm.xlu0 %4644, %v779
      %v4646 = vpop.permute.xlu0 %4645
      %4647 = vset.pattern.permute.xlu0 2
      %4648 = vperm.xlu0 %4647, %v780
      %v4649 = vpop.permute.xlu0 %4648
      %4650 = vset.pattern.permute.xlu0 2
      %4651 = vperm.xlu0 %4650, %v781
      %v4652 = vpop.permute.xlu0 %4651
      %4653 = vset.pattern.permute.xlu0 2
      %4654 = vperm.xlu0 %4653, %v782
      %v4655 = vpop.permute.xlu0 %4654
      %4656 = vset.pattern.permute.xlu0 2
      %4657 = vperm.xlu0 %4656, %v783
      %v4658 = vpop.permute.xlu0 %4657
      %4659 = vset.pattern.permute.xlu0 2
      %4660 = vperm.xlu0 %4659, %v784
      %v4661 = vpop.permute.xlu0 %4660
      %4662 = vset.pattern.permute.xlu0 2
      %4663 = vperm.xlu0 %4662, %v785
      %v4664 = vpop.permute.xlu0 %4663
      %4665 = vset.pattern.permute.xlu0 2
      %4666 = vperm.xlu0 %4665, %v786
      %v4667 = vpop.permute.xlu0 %4666
      %4668 = vset.pattern.permute.xlu0 2
      %4669 = vperm.xlu0 %4668, %v787
      %v4670 = vpop.permute.xlu0 %4669
      %4671 = vset.pattern.permute.xlu0 2
      %4672 = vperm.xlu0 %4671, %v788
      %v4673 = vpop.permute.xlu0 %4672
      %4674 = vset.pattern.permute.xlu0 2
      %4675 = vperm.xlu0 %4674, %v789
      %v4676 = vpop.permute.xlu0 %4675
      %4677 = vset.pattern.permute.xlu0 2
      %4678 = vperm.xlu0 %4677, %v790
      %v4679 = vpop.permute.xlu0 %4678
      %4680 = vset.pattern.permute.xlu0 2
      %4681 = vperm.xlu0 %4680, %v791
      %v4682 = vpop.permute.xlu0 %4681
      %4683 = vset.pattern.permute.xlu0 2
      %4684 = vperm.xlu0 %4683, %v792
      %v4685 = vpop.permute.xlu0 %4684
      %4686 = vset.pattern.permute.xlu0 2
      %4687 = vperm.xlu0 %4686, %v793
      %v4688 = vpop.permute.xlu0 %4687
      %4689 = vset.pattern.permute.xlu0 2
      %4690 = vperm.xlu0 %4689, %v794
      %v4691 = vpop.permute.xlu0 %4690
      %4692 = vset.pattern.permute.xlu0 2
      %4693 = vperm.xlu0 %4692, %v795
      %v4694 = vpop.permute.xlu0 %4693
      %4695 = vset.pattern.permute.xlu0 2
      %4696 = vperm.xlu0 %4695, %v796
      %v4697 = vpop.permute.xlu0 %4696
      %4698 = vset.pattern.permute.xlu0 2
      %4699 = vperm.xlu0 %4698, %v797
      %v4700 = vpop.permute.xlu0 %4699
      %4701 = vset.pattern.permute.xlu0 2
      %4702 = vperm.xlu0 %4701, %v798
      %v4703 = vpop.permute.xlu0 %4702
      %4704 = vset.pattern.permute.xlu0 2
      %4705 = vperm.xlu0 %4704, %v799
      %v4706 = vpop.permute.xlu0 %4705
      %4707 = vset.pattern.permute.xlu0 2
      %4708 = vperm.xlu0 %4707, %v800
      %v4709 = vpop.permute.xlu0 %4708
      %4710 = vset.pattern.permute.xlu0 2
      %4711 = vperm.xlu0 %4710, %v801
      %v4712 = vpop.permute.xlu0 %4711
      %4713 = vset.pattern.permute.xlu0 2
      %4714 = vperm.xlu0 %4713, %v802
      %v4715 = vpop.permute.xlu0 %4714
      %4716 = vset.pattern.permute.xlu0 2
      %4717 = vperm.xlu0 %4716, %v803
      %v4718 = vpop.permute.xlu0 %4717
      %4719 = vset.pattern.permute.xlu0 2
      %4720 = vperm.xlu0 %4719, %v804
      %v4721 = vpop.permute.xlu0 %4720
      %4722 = vset.pattern.permute.xlu0 2
      %4723 = vperm.xlu0 %4722, %v805
      %v4724 = vpop.permute.xlu0 %4723
      %4725 = vset.pattern.permute.xlu0 2
      %4726 = vperm.xlu0 %4725, %v806
      %v4727 = vpop.permute.xlu0 %4726
      %v4728 = vsub.s32 %v4535, %v4538
      %v4729 = vsub.s32 %v4535, %v4541
      %v4730 = vsub.s32 %v4535, %v4544
      %v4731 = vsub.s32 %v4535, %v4547
      %v4732 = vsub.s32 %v4535, %v4550
      %v4733 = vsub.s32 %v4535, %v4553
      %v4734 = vsub.s32 %v4535, %v4556
      %v4735 = vsub.s32 %v4535, %v4559
      %v4736 = vsub.s32 %v4535, %v4562
      %v4737 = vsub.s32 %v4535, %v4565
      %v4738 = vsub.s32 %v4535, %v4568
      %v4739 = vsub.s32 %v4535, %v4571
      %v4740 = vsub.s32 %v4535, %v4574
      %v4741 = vsub.s32 %v4535, %v4577
      %v4742 = vsub.s32 %v4535, %v4580
      %v4743 = vsub.s32 %v4535, %v4583
      %v4744 = vsub.s32 %v4535, %v4586
      %v4745 = vsub.s32 %v4535, %v4589
      %v4746 = vsub.s32 %v4535, %v4592
      %v4747 = vsub.s32 %v4535, %v4595
      %v4748 = vsub.s32 %v4535, %v4598
      %v4749 = vsub.s32 %v4535, %v4601
      %v4750 = vsub.s32 %v4535, %v4604
      %v4751 = vsub.s32 %v4535, %v4607
      %v4752 = vsub.s32 %v4535, %v4610
      %v4753 = vsub.s32 %v4535, %v4613
      %v4754 = vsub.s32 %v4535, %v4616
      %v4755 = vsub.s32 %v4535, %v4619
      %v4756 = vsub.s32 %v4535, %v4622
      %v4757 = vsub.s32 %v4535, %v4625
      %v4758 = vsub.s32 %v4535, %v4628
      %v4759 = vsub.s32 %v4535, %v4631
      %v4760 = vsub.s32 %v4535, %v4634
      %v4761 = vsub.s32 %v4535, %v4637
      %v4762 = vsub.s32 %v4535, %v4640
      %v4763 = vsub.s32 %v4535, %v4643
      %v4764 = vsub.s32 %v4535, %v4646
      %v4765 = vsub.s32 %v4535, %v4649
      %v4766 = vsub.s32 %v4535, %v4652
      %v4767 = vsub.s32 %v4535, %v4655
      %v4768 = vsub.s32 %v4535, %v4658
      %v4769 = vsub.s32 %v4535, %v4661
      %v4770 = vsub.s32 %v4535, %v4664
      %v4771 = vsub.s32 %v4535, %v4667
      %v4772 = vsub.s32 %v4535, %v4670
      %v4773 = vsub.s32 %v4535, %v4673
      %v4774 = vsub.s32 %v4535, %v4676
      %v4775 = vsub.s32 %v4535, %v4679
      %v4776 = vsub.s32 %v4535, %v4682
      %v4777 = vsub.s32 %v4535, %v4685
      %v4778 = vsub.s32 %v4535, %v4688
      %v4779 = vsub.s32 %v4535, %v4691
      %v4780 = vsub.s32 %v4535, %v4694
      %v4781 = vsub.s32 %v4535, %v4697
      %v4782 = vsub.s32 %v4535, %v4700
      %v4783 = vsub.s32 %v4535, %v4703
      %v4784 = vsub.s32 %v4535, %v4706
      %v4785 = vsub.s32 %v4535, %v4709
      %v4786 = vsub.s32 %v4535, %v4712
      %v4787 = vsub.s32 %v4535, %v4715
      %v4788 = vsub.s32 %v4535, %v4718
      %v4789 = vsub.s32 %v4535, %v4721
      %v4790 = vsub.s32 %v4535, %v4724
      %v4791 = vsub.s32 %v4535, %v4727
      %vm4792 = vcmp.eq.s32.totalorder %v4728, 0
      %vm4793 = vcmp.eq.s32.totalorder %v4729, 0
      %vm4794 = vcmp.eq.s32.totalorder %v4730, 0
      %vm4795 = vcmp.eq.s32.totalorder %v4731, 0
      %vm4796 = vcmp.eq.s32.totalorder %v4732, 0
      %vm4797 = vcmp.eq.s32.totalorder %v4733, 0
      %vm4798 = vcmp.eq.s32.totalorder %v4734, 0
      %vm4799 = vcmp.eq.s32.totalorder %v4735, 0
      %vm4800 = vcmp.eq.s32.totalorder %v4736, 0
      %vm4801 = vcmp.eq.s32.totalorder %v4737, 0
      %vm4802 = vcmp.eq.s32.totalorder %v4738, 0
      %vm4803 = vcmp.eq.s32.totalorder %v4739, 0
      %vm4804 = vcmp.eq.s32.totalorder %v4740, 0
      %vm4805 = vcmp.eq.s32.totalorder %v4741, 0
      %vm4806 = vcmp.eq.s32.totalorder %v4742, 0
      %vm4807 = vcmp.eq.s32.totalorder %v4743, 0
      %vm4808 = vcmp.eq.s32.totalorder %v4744, 0
      %vm4809 = vcmp.eq.s32.totalorder %v4745, 0
      %vm4810 = vcmp.eq.s32.totalorder %v4746, 0
      %vm4811 = vcmp.eq.s32.totalorder %v4747, 0
      %vm4812 = vcmp.eq.s32.totalorder %v4748, 0
      %vm4813 = vcmp.eq.s32.totalorder %v4749, 0
      %vm4814 = vcmp.eq.s32.totalorder %v4750, 0
      %vm4815 = vcmp.eq.s32.totalorder %v4751, 0
      %vm4816 = vcmp.eq.s32.totalorder %v4752, 0
      %vm4817 = vcmp.eq.s32.totalorder %v4753, 0
      %vm4818 = vcmp.eq.s32.totalorder %v4754, 0
      %vm4819 = vcmp.eq.s32.totalorder %v4755, 0
      %vm4820 = vcmp.eq.s32.totalorder %v4756, 0
      %vm4821 = vcmp.eq.s32.totalorder %v4757, 0
      %vm4822 = vcmp.eq.s32.totalorder %v4758, 0
      %vm4823 = vcmp.eq.s32.totalorder %v4759, 0
      %vm4824 = vcmp.eq.s32.totalorder %v4760, 0
      %vm4825 = vcmp.eq.s32.totalorder %v4761, 0
      %vm4826 = vcmp.eq.s32.totalorder %v4762, 0
      %vm4827 = vcmp.eq.s32.totalorder %v4763, 0
      %vm4828 = vcmp.eq.s32.totalorder %v4764, 0
      %vm4829 = vcmp.eq.s32.totalorder %v4765, 0
      %vm4830 = vcmp.eq.s32.totalorder %v4766, 0
      %vm4831 = vcmp.eq.s32.totalorder %v4767, 0
      %vm4832 = vcmp.eq.s32.totalorder %v4768, 0
      %vm4833 = vcmp.eq.s32.totalorder %v4769, 0
      %vm4834 = vcmp.eq.s32.totalorder %v4770, 0
      %vm4835 = vcmp.eq.s32.totalorder %v4771, 0
      %vm4836 = vcmp.eq.s32.totalorder %v4772, 0
      %vm4837 = vcmp.eq.s32.totalorder %v4773, 0
      %vm4838 = vcmp.eq.s32.totalorder %v4774, 0
      %vm4839 = vcmp.eq.s32.totalorder %v4775, 0
      %vm4840 = vcmp.eq.s32.totalorder %v4776, 0
      %vm4841 = vcmp.eq.s32.totalorder %v4777, 0
      %vm4842 = vcmp.eq.s32.totalorder %v4778, 0
      %vm4843 = vcmp.eq.s32.totalorder %v4779, 0
      %vm4844 = vcmp.eq.s32.totalorder %v4780, 0
      %vm4845 = vcmp.eq.s32.totalorder %v4781, 0
      %vm4846 = vcmp.eq.s32.totalorder %v4782, 0
      %vm4847 = vcmp.eq.s32.totalorder %v4783, 0
      %vm4848 = vcmp.eq.s32.totalorder %v4784, 0
      %vm4849 = vcmp.eq.s32.totalorder %v4785, 0
      %vm4850 = vcmp.eq.s32.totalorder %v4786, 0
      %vm4851 = vcmp.eq.s32.totalorder %v4787, 0
      %vm4852 = vcmp.eq.s32.totalorder %v4788, 0
      %vm4853 = vcmp.eq.s32.totalorder %v4789, 0
      %vm4854 = vcmp.eq.s32.totalorder %v4790, 0
      %vm4855 = vcmp.eq.s32.totalorder %v4791, 0
      %4856 = vset.pattern.permute.xlu0 2
      %4857 = vperm.xlu0 %4856, %v807
      %v4858 = vpop.permute.xlu0 %4857
      %4860 = vset.pattern.permute.xlu0 2
      %4861 = vperm.xlu0 %4860, %v808
      %v4862 = vpop.permute.xlu0 %4861
      %4864 = vset.pattern.permute.xlu0 2
      %4865 = vperm.xlu0 %4864, %v809
      %v4866 = vpop.permute.xlu0 %4865
      %4868 = vset.pattern.permute.xlu0 2
      %4869 = vperm.xlu0 %4868, %v810
      %v4870 = vpop.permute.xlu0 %4869
      %4872 = vset.pattern.permute.xlu0 2
      %4873 = vperm.xlu0 %4872, %v811
      %v4874 = vpop.permute.xlu0 %4873
      %4876 = vset.pattern.permute.xlu0 2
      %4877 = vperm.xlu0 %4876, %v812
      %v4878 = vpop.permute.xlu0 %4877
      %4880 = vset.pattern.permute.xlu0 2
      %4881 = vperm.xlu0 %4880, %v813
      %v4882 = vpop.permute.xlu0 %4881
      %4884 = vset.pattern.permute.xlu0 2
      %4885 = vperm.xlu0 %4884, %v814
      %v4886 = vpop.permute.xlu0 %4885
      %4888 = vset.pattern.permute.xlu0 2
      %4889 = vperm.xlu0 %4888, %v815
      %v4890 = vpop.permute.xlu0 %4889
      %4892 = vset.pattern.permute.xlu0 2
      %4893 = vperm.xlu0 %4892, %v816
      %v4894 = vpop.permute.xlu0 %4893
      %4896 = vset.pattern.permute.xlu0 2
      %4897 = vperm.xlu0 %4896, %v817
      %v4898 = vpop.permute.xlu0 %4897
      %4900 = vset.pattern.permute.xlu0 2
      %4901 = vperm.xlu0 %4900, %v818
      %v4902 = vpop.permute.xlu0 %4901
      %4904 = vset.pattern.permute.xlu0 2
      %4905 = vperm.xlu0 %4904, %v819
      %v4906 = vpop.permute.xlu0 %4905
      %4908 = vset.pattern.permute.xlu0 2
      %4909 = vperm.xlu0 %4908, %v820
      %v4910 = vpop.permute.xlu0 %4909
      %4912 = vset.pattern.permute.xlu0 2
      %4913 = vperm.xlu0 %4912, %v821
      %v4914 = vpop.permute.xlu0 %4913
      %4916 = vset.pattern.permute.xlu0 2
      %4917 = vperm.xlu0 %4916, %v822
      %v4918 = vpop.permute.xlu0 %4917
      %4920 = vset.pattern.permute.xlu0 2
      %4921 = vperm.xlu0 %4920, %v823
      %v4922 = vpop.permute.xlu0 %4921
      %4924 = vset.pattern.permute.xlu0 2
      %4925 = vperm.xlu0 %4924, %v824
      %v4926 = vpop.permute.xlu0 %4925
      %4928 = vset.pattern.permute.xlu0 2
      %4929 = vperm.xlu0 %4928, %v825
      %v4930 = vpop.permute.xlu0 %4929
      %4932 = vset.pattern.permute.xlu0 2
      %4933 = vperm.xlu0 %4932, %v826
      %v4934 = vpop.permute.xlu0 %4933
      %4936 = vset.pattern.permute.xlu0 2
      %4937 = vperm.xlu0 %4936, %v827
      %v4938 = vpop.permute.xlu0 %4937
      %4940 = vset.pattern.permute.xlu0 2
      %4941 = vperm.xlu0 %4940, %v828
      %v4942 = vpop.permute.xlu0 %4941
      %4944 = vset.pattern.permute.xlu0 2
      %4945 = vperm.xlu0 %4944, %v829
      %v4946 = vpop.permute.xlu0 %4945
      %4948 = vset.pattern.permute.xlu0 2
      %4949 = vperm.xlu0 %4948, %v830
      %v4950 = vpop.permute.xlu0 %4949
      %4952 = vset.pattern.permute.xlu0 2
      %4953 = vperm.xlu0 %4952, %v831
      %v4954 = vpop.permute.xlu0 %4953
      %4956 = vset.pattern.permute.xlu0 2
      %4957 = vperm.xlu0 %4956, %v832
      %v4958 = vpop.permute.xlu0 %4957
      %4960 = vset.pattern.permute.xlu0 2
      %4961 = vperm.xlu0 %4960, %v833
      %v4962 = vpop.permute.xlu0 %4961
      %4964 = vset.pattern.permute.xlu0 2
      %4965 = vperm.xlu0 %4964, %v834
      %v4966 = vpop.permute.xlu0 %4965
      %4968 = vset.pattern.permute.xlu0 2
      %4969 = vperm.xlu0 %4968, %v835
      %v4970 = vpop.permute.xlu0 %4969
      %4972 = vset.pattern.permute.xlu0 2
      %4973 = vperm.xlu0 %4972, %v836
      %v4974 = vpop.permute.xlu0 %4973
      %4976 = vset.pattern.permute.xlu0 2
      %4977 = vperm.xlu0 %4976, %v837
      %v4978 = vpop.permute.xlu0 %4977
      %4980 = vset.pattern.permute.xlu0 2
      %4981 = vperm.xlu0 %4980, %v838
      %v4982 = vpop.permute.xlu0 %4981
      %4984 = vset.pattern.permute.xlu0 2
      %4985 = vperm.xlu0 %4984, %v839
      %v4986 = vpop.permute.xlu0 %4985
      %4988 = vset.pattern.permute.xlu0 2
      %4989 = vperm.xlu0 %4988, %v840
      %v4990 = vpop.permute.xlu0 %4989
      %4992 = vset.pattern.permute.xlu0 2
      %4993 = vperm.xlu0 %4992, %v841
      %v4994 = vpop.permute.xlu0 %4993
      %4996 = vset.pattern.permute.xlu0 2
      %4997 = vperm.xlu0 %4996, %v842
      %v4998 = vpop.permute.xlu0 %4997
      %5000 = vset.pattern.permute.xlu0 2
      %5001 = vperm.xlu0 %5000, %v843
      %v5002 = vpop.permute.xlu0 %5001
      %5004 = vset.pattern.permute.xlu0 2
      %5005 = vperm.xlu0 %5004, %v844
      %v5006 = vpop.permute.xlu0 %5005
      %5008 = vset.pattern.permute.xlu0 2
      %5009 = vperm.xlu0 %5008, %v845
      %v5010 = vpop.permute.xlu0 %5009
      %5012 = vset.pattern.permute.xlu0 2
      %5013 = vperm.xlu0 %5012, %v846
      %v5014 = vpop.permute.xlu0 %5013
      %5016 = vset.pattern.permute.xlu0 2
      %5017 = vperm.xlu0 %5016, %v847
      %v5018 = vpop.permute.xlu0 %5017
      %5020 = vset.pattern.permute.xlu0 2
      %5021 = vperm.xlu0 %5020, %v848
      %v5022 = vpop.permute.xlu0 %5021
      %5024 = vset.pattern.permute.xlu0 2
      %5025 = vperm.xlu0 %5024, %v849
      %v5026 = vpop.permute.xlu0 %5025
      %5028 = vset.pattern.permute.xlu0 2
      %5029 = vperm.xlu0 %5028, %v850
      %v5030 = vpop.permute.xlu0 %5029
      %5032 = vset.pattern.permute.xlu0 2
      %5033 = vperm.xlu0 %5032, %v851
      %v5034 = vpop.permute.xlu0 %5033
      %5036 = vset.pattern.permute.xlu0 2
      %5037 = vperm.xlu0 %5036, %v852
      %v5038 = vpop.permute.xlu0 %5037
      %5040 = vset.pattern.permute.xlu0 2
      %5041 = vperm.xlu0 %5040, %v853
      %v5042 = vpop.permute.xlu0 %5041
      %5044 = vset.pattern.permute.xlu0 2
      %5045 = vperm.xlu0 %5044, %v854
      %v5046 = vpop.permute.xlu0 %5045
      %5048 = vset.pattern.permute.xlu0 2
      %5049 = vperm.xlu0 %5048, %v855
      %v5050 = vpop.permute.xlu0 %5049
      %5052 = vset.pattern.permute.xlu0 2
      %5053 = vperm.xlu0 %5052, %v856
      %v5054 = vpop.permute.xlu0 %5053
      %5056 = vset.pattern.permute.xlu0 2
      %5057 = vperm.xlu0 %5056, %v857
      %v5058 = vpop.permute.xlu0 %5057
      %5060 = vset.pattern.permute.xlu0 2
      %5061 = vperm.xlu0 %5060, %v858
      %v5062 = vpop.permute.xlu0 %5061
      %5064 = vset.pattern.permute.xlu0 2
      %5065 = vperm.xlu0 %5064, %v859
      %v5066 = vpop.permute.xlu0 %5065
      %5068 = vset.pattern.permute.xlu0 2
      %5069 = vperm.xlu0 %5068, %v860
      %v5070 = vpop.permute.xlu0 %5069
      %5072 = vset.pattern.permute.xlu0 2
      %5073 = vperm.xlu0 %5072, %v861
      %v5074 = vpop.permute.xlu0 %5073
      %5076 = vset.pattern.permute.xlu0 2
      %5077 = vperm.xlu0 %5076, %v862
      %v5078 = vpop.permute.xlu0 %5077
      %5080 = vset.pattern.permute.xlu0 2
      %5081 = vperm.xlu0 %5080, %v863
      %v5082 = vpop.permute.xlu0 %5081
      %5084 = vset.pattern.permute.xlu0 2
      %5085 = vperm.xlu0 %5084, %v864
      %v5086 = vpop.permute.xlu0 %5085
      %5088 = vset.pattern.permute.xlu0 2
      %5089 = vperm.xlu0 %5088, %v865
      %v5090 = vpop.permute.xlu0 %5089
      %5092 = vset.pattern.permute.xlu0 2
      %5093 = vperm.xlu0 %5092, %v866
      %v5094 = vpop.permute.xlu0 %5093
      %5096 = vset.pattern.permute.xlu0 2
      %5097 = vperm.xlu0 %5096, %v867
      %v5098 = vpop.permute.xlu0 %5097
      %5100 = vset.pattern.permute.xlu0 2
      %5101 = vperm.xlu0 %5100, %v868
      %v5102 = vpop.permute.xlu0 %5101
      %5104 = vset.pattern.permute.xlu0 2
      %5105 = vperm.xlu0 %5104, %v869
      %v5106 = vpop.permute.xlu0 %5105
      %5108 = vset.pattern.permute.xlu0 2
      %5109 = vperm.xlu0 %5108, %v870
      %v5110 = vpop.permute.xlu0 %5109
      %v5112 = vsel %vm4792, %v4858, 0.0
      %v5113 = vsel %vm4793, %v4862, 0.0
      %v5114 = vsel %vm4794, %v4866, 0.0
      %v5115 = vsel %vm4795, %v4870, 0.0
      %v5116 = vsel %vm4796, %v4874, 0.0
      %v5117 = vsel %vm4797, %v4878, 0.0
      %v5118 = vsel %vm4798, %v4882, 0.0
      %v5119 = vsel %vm4799, %v4886, 0.0
      %v5120 = vsel %vm4800, %v4890, 0.0
      %v5121 = vsel %vm4801, %v4894, 0.0
      %v5122 = vsel %vm4802, %v4898, 0.0
      %v5123 = vsel %vm4803, %v4902, 0.0
      %v5124 = vsel %vm4804, %v4906, 0.0
      %v5125 = vsel %vm4805, %v4910, 0.0
      %v5126 = vsel %vm4806, %v4914, 0.0
      %v5127 = vsel %vm4807, %v4918, 0.0
      %v5128 = vsel %vm4808, %v4922, 0.0
      %v5129 = vsel %vm4809, %v4926, 0.0
      %v5130 = vsel %vm4810, %v4930, 0.0
      %v5131 = vsel %vm4811, %v4934, 0.0
      %v5132 = vsel %vm4812, %v4938, 0.0
      %v5133 = vsel %vm4813, %v4942, 0.0
      %v5134 = vsel %vm4814, %v4946, 0.0
      %v5135 = vsel %vm4815, %v4950, 0.0
      %v5136 = vsel %vm4816, %v4954, 0.0
      %v5137 = vsel %vm4817, %v4958, 0.0
      %v5138 = vsel %vm4818, %v4962, 0.0
      %v5139 = vsel %vm4819, %v4966, 0.0
      %v5140 = vsel %vm4820, %v4970, 0.0
      %v5141 = vsel %vm4821, %v4974, 0.0
      %v5142 = vsel %vm4822, %v4978, 0.0
      %v5143 = vsel %vm4823, %v4982, 0.0
      %v5144 = vsel %vm4824, %v4986, 0.0
      %v5145 = vsel %vm4825, %v4990, 0.0
      %v5146 = vsel %vm4826, %v4994, 0.0
      %v5147 = vsel %vm4827, %v4998, 0.0
      %v5148 = vsel %vm4828, %v5002, 0.0
      %v5149 = vsel %vm4829, %v5006, 0.0
      %v5150 = vsel %vm4830, %v5010, 0.0
      %v5151 = vsel %vm4831, %v5014, 0.0
      %v5152 = vsel %vm4832, %v5018, 0.0
      %v5153 = vsel %vm4833, %v5022, 0.0
      %v5154 = vsel %vm4834, %v5026, 0.0
      %v5155 = vsel %vm4835, %v5030, 0.0
      %v5156 = vsel %vm4836, %v5034, 0.0
      %v5157 = vsel %vm4837, %v5038, 0.0
      %v5158 = vsel %vm4838, %v5042, 0.0
      %v5159 = vsel %vm4839, %v5046, 0.0
      %v5160 = vsel %vm4840, %v5050, 0.0
      %v5161 = vsel %vm4841, %v5054, 0.0
      %v5162 = vsel %vm4842, %v5058, 0.0
      %v5163 = vsel %vm4843, %v5062, 0.0
      %v5164 = vsel %vm4844, %v5066, 0.0
      %v5165 = vsel %vm4845, %v5070, 0.0
      %v5166 = vsel %vm4846, %v5074, 0.0
      %v5167 = vsel %vm4847, %v5078, 0.0
      %v5168 = vsel %vm4848, %v5082, 0.0
      %v5169 = vsel %vm4849, %v5086, 0.0
      %v5170 = vsel %vm4850, %v5090, 0.0
      %v5171 = vsel %vm4851, %v5094, 0.0
      %v5172 = vsel %vm4852, %v5098, 0.0
      %v5173 = vsel %vm4853, %v5102, 0.0
      %v5174 = vsel %vm4854, %v5106, 0.0
      %v5175 = vsel %vm4855, %v5110, 0.0
      %vm5176 = vcmp.eq.s32.totalorder %v4728, 1
      %vm5177 = vcmp.eq.s32.totalorder %v4729, 1
      %vm5178 = vcmp.eq.s32.totalorder %v4730, 1
      %vm5179 = vcmp.eq.s32.totalorder %v4731, 1
      %vm5180 = vcmp.eq.s32.totalorder %v4732, 1
      %vm5181 = vcmp.eq.s32.totalorder %v4733, 1
      %vm5182 = vcmp.eq.s32.totalorder %v4734, 1
      %vm5183 = vcmp.eq.s32.totalorder %v4735, 1
      %vm5184 = vcmp.eq.s32.totalorder %v4736, 1
      %vm5185 = vcmp.eq.s32.totalorder %v4737, 1
      %vm5186 = vcmp.eq.s32.totalorder %v4738, 1
      %vm5187 = vcmp.eq.s32.totalorder %v4739, 1
      %vm5188 = vcmp.eq.s32.totalorder %v4740, 1
      %vm5189 = vcmp.eq.s32.totalorder %v4741, 1
      %vm5190 = vcmp.eq.s32.totalorder %v4742, 1
      %vm5191 = vcmp.eq.s32.totalorder %v4743, 1
      %vm5192 = vcmp.eq.s32.totalorder %v4744, 1
      %vm5193 = vcmp.eq.s32.totalorder %v4745, 1
      %vm5194 = vcmp.eq.s32.totalorder %v4746, 1
      %vm5195 = vcmp.eq.s32.totalorder %v4747, 1
      %vm5196 = vcmp.eq.s32.totalorder %v4748, 1
      %vm5197 = vcmp.eq.s32.totalorder %v4749, 1
      %vm5198 = vcmp.eq.s32.totalorder %v4750, 1
      %vm5199 = vcmp.eq.s32.totalorder %v4751, 1
      %vm5200 = vcmp.eq.s32.totalorder %v4752, 1
      %vm5201 = vcmp.eq.s32.totalorder %v4753, 1
      %vm5202 = vcmp.eq.s32.totalorder %v4754, 1
      %vm5203 = vcmp.eq.s32.totalorder %v4755, 1
      %vm5204 = vcmp.eq.s32.totalorder %v4756, 1
      %vm5205 = vcmp.eq.s32.totalorder %v4757, 1
      %vm5206 = vcmp.eq.s32.totalorder %v4758, 1
      %vm5207 = vcmp.eq.s32.totalorder %v4759, 1
      %vm5208 = vcmp.eq.s32.totalorder %v4760, 1
      %vm5209 = vcmp.eq.s32.totalorder %v4761, 1
      %vm5210 = vcmp.eq.s32.totalorder %v4762, 1
      %vm5211 = vcmp.eq.s32.totalorder %v4763, 1
      %vm5212 = vcmp.eq.s32.totalorder %v4764, 1
      %vm5213 = vcmp.eq.s32.totalorder %v4765, 1
      %vm5214 = vcmp.eq.s32.totalorder %v4766, 1
      %vm5215 = vcmp.eq.s32.totalorder %v4767, 1
      %vm5216 = vcmp.eq.s32.totalorder %v4768, 1
      %vm5217 = vcmp.eq.s32.totalorder %v4769, 1
      %vm5218 = vcmp.eq.s32.totalorder %v4770, 1
      %vm5219 = vcmp.eq.s32.totalorder %v4771, 1
      %vm5220 = vcmp.eq.s32.totalorder %v4772, 1
      %vm5221 = vcmp.eq.s32.totalorder %v4773, 1
      %vm5222 = vcmp.eq.s32.totalorder %v4774, 1
      %vm5223 = vcmp.eq.s32.totalorder %v4775, 1
      %vm5224 = vcmp.eq.s32.totalorder %v4776, 1
      %vm5225 = vcmp.eq.s32.totalorder %v4777, 1
      %vm5226 = vcmp.eq.s32.totalorder %v4778, 1
      %vm5227 = vcmp.eq.s32.totalorder %v4779, 1
      %vm5228 = vcmp.eq.s32.totalorder %v4780, 1
      %vm5229 = vcmp.eq.s32.totalorder %v4781, 1
      %vm5230 = vcmp.eq.s32.totalorder %v4782, 1
      %vm5231 = vcmp.eq.s32.totalorder %v4783, 1
      %vm5232 = vcmp.eq.s32.totalorder %v4784, 1
      %vm5233 = vcmp.eq.s32.totalorder %v4785, 1
      %vm5234 = vcmp.eq.s32.totalorder %v4786, 1
      %vm5235 = vcmp.eq.s32.totalorder %v4787, 1
      %vm5236 = vcmp.eq.s32.totalorder %v4788, 1
      %vm5237 = vcmp.eq.s32.totalorder %v4789, 1
      %vm5238 = vcmp.eq.s32.totalorder %v4790, 1
      %vm5239 = vcmp.eq.s32.totalorder %v4791, 1
      %5240 = vset.pattern.permute.xlu0 2
      %5241 = vperm.xlu0 %5240, %v679
      %v5242 = vpop.permute.xlu0 %5241
      %5244 = vset.pattern.permute.xlu0 2
      %5245 = vperm.xlu0 %5244, %v680
      %v5246 = vpop.permute.xlu0 %5245
      %5248 = vset.pattern.permute.xlu0 2
      %5249 = vperm.xlu0 %5248, %v681
      %v5250 = vpop.permute.xlu0 %5249
      %5252 = vset.pattern.permute.xlu0 2
      %5253 = vperm.xlu0 %5252, %v682
      %v5254 = vpop.permute.xlu0 %5253
      %5256 = vset.pattern.permute.xlu0 2
      %5257 = vperm.xlu0 %5256, %v683
      %v5258 = vpop.permute.xlu0 %5257
      %5260 = vset.pattern.permute.xlu0 2
      %5261 = vperm.xlu0 %5260, %v684
      %v5262 = vpop.permute.xlu0 %5261
      %5264 = vset.pattern.permute.xlu0 2
      %5265 = vperm.xlu0 %5264, %v685
      %v5266 = vpop.permute.xlu0 %5265
      %5268 = vset.pattern.permute.xlu0 2
      %5269 = vperm.xlu0 %5268, %v686
      %v5270 = vpop.permute.xlu0 %5269
      %5272 = vset.pattern.permute.xlu0 2
      %5273 = vperm.xlu0 %5272, %v687
      %v5274 = vpop.permute.xlu0 %5273
      %5276 = vset.pattern.permute.xlu0 2
      %5277 = vperm.xlu0 %5276, %v688
      %v5278 = vpop.permute.xlu0 %5277
      %5280 = vset.pattern.permute.xlu0 2
      %5281 = vperm.xlu0 %5280, %v689
      %v5282 = vpop.permute.xlu0 %5281
      %5284 = vset.pattern.permute.xlu0 2
      %5285 = vperm.xlu0 %5284, %v690
      %v5286 = vpop.permute.xlu0 %5285
      %5288 = vset.pattern.permute.xlu0 2
      %5289 = vperm.xlu0 %5288, %v691
      %v5290 = vpop.permute.xlu0 %5289
      %5292 = vset.pattern.permute.xlu0 2
      %5293 = vperm.xlu0 %5292, %v692
      %v5294 = vpop.permute.xlu0 %5293
      %5296 = vset.pattern.permute.xlu0 2
      %5297 = vperm.xlu0 %5296, %v693
      %v5298 = vpop.permute.xlu0 %5297
      %5300 = vset.pattern.permute.xlu0 2
      %5301 = vperm.xlu0 %5300, %v694
      %v5302 = vpop.permute.xlu0 %5301
      %5304 = vset.pattern.permute.xlu0 2
      %5305 = vperm.xlu0 %5304, %v695
      %v5306 = vpop.permute.xlu0 %5305
      %5308 = vset.pattern.permute.xlu0 2
      %5309 = vperm.xlu0 %5308, %v696
      %v5310 = vpop.permute.xlu0 %5309
      %5312 = vset.pattern.permute.xlu0 2
      %5313 = vperm.xlu0 %5312, %v697
      %v5314 = vpop.permute.xlu0 %5313
      %5316 = vset.pattern.permute.xlu0 2
      %5317 = vperm.xlu0 %5316, %v698
      %v5318 = vpop.permute.xlu0 %5317
      %5320 = vset.pattern.permute.xlu0 2
      %5321 = vperm.xlu0 %5320, %v699
      %v5322 = vpop.permute.xlu0 %5321
      %5324 = vset.pattern.permute.xlu0 2
      %5325 = vperm.xlu0 %5324, %v700
      %v5326 = vpop.permute.xlu0 %5325
      %5328 = vset.pattern.permute.xlu0 2
      %5329 = vperm.xlu0 %5328, %v701
      %v5330 = vpop.permute.xlu0 %5329
      %5332 = vset.pattern.permute.xlu0 2
      %5333 = vperm.xlu0 %5332, %v702
      %v5334 = vpop.permute.xlu0 %5333
      %5336 = vset.pattern.permute.xlu0 2
      %5337 = vperm.xlu0 %5336, %v703
      %v5338 = vpop.permute.xlu0 %5337
      %5340 = vset.pattern.permute.xlu0 2
      %5341 = vperm.xlu0 %5340, %v704
      %v5342 = vpop.permute.xlu0 %5341
      %5344 = vset.pattern.permute.xlu0 2
      %5345 = vperm.xlu0 %5344, %v705
      %v5346 = vpop.permute.xlu0 %5345
      %5348 = vset.pattern.permute.xlu0 2
      %5349 = vperm.xlu0 %5348, %v706
      %v5350 = vpop.permute.xlu0 %5349
      %5352 = vset.pattern.permute.xlu0 2
      %5353 = vperm.xlu0 %5352, %v707
      %v5354 = vpop.permute.xlu0 %5353
      %5356 = vset.pattern.permute.xlu0 2
      %5357 = vperm.xlu0 %5356, %v708
      %v5358 = vpop.permute.xlu0 %5357
      %5360 = vset.pattern.permute.xlu0 2
      %5361 = vperm.xlu0 %5360, %v709
      %v5362 = vpop.permute.xlu0 %5361
      %5364 = vset.pattern.permute.xlu0 2
      %5365 = vperm.xlu0 %5364, %v710
      %v5366 = vpop.permute.xlu0 %5365
      %5368 = vset.pattern.permute.xlu0 2
      %5369 = vperm.xlu0 %5368, %v711
      %v5370 = vpop.permute.xlu0 %5369
      %5372 = vset.pattern.permute.xlu0 2
      %5373 = vperm.xlu0 %5372, %v712
      %v5374 = vpop.permute.xlu0 %5373
      %5376 = vset.pattern.permute.xlu0 2
      %5377 = vperm.xlu0 %5376, %v713
      %v5378 = vpop.permute.xlu0 %5377
      %5380 = vset.pattern.permute.xlu0 2
      %5381 = vperm.xlu0 %5380, %v714
      %v5382 = vpop.permute.xlu0 %5381
      %5384 = vset.pattern.permute.xlu0 2
      %5385 = vperm.xlu0 %5384, %v715
      %v5386 = vpop.permute.xlu0 %5385
      %5388 = vset.pattern.permute.xlu0 2
      %5389 = vperm.xlu0 %5388, %v716
      %v5390 = vpop.permute.xlu0 %5389
      %5392 = vset.pattern.permute.xlu0 2
      %5393 = vperm.xlu0 %5392, %v717
      %v5394 = vpop.permute.xlu0 %5393
      %5396 = vset.pattern.permute.xlu0 2
      %5397 = vperm.xlu0 %5396, %v718
      %v5398 = vpop.permute.xlu0 %5397
      %5400 = vset.pattern.permute.xlu0 2
      %5401 = vperm.xlu0 %5400, %v719
      %v5402 = vpop.permute.xlu0 %5401
      %5404 = vset.pattern.permute.xlu0 2
      %5405 = vperm.xlu0 %5404, %v720
      %v5406 = vpop.permute.xlu0 %5405
      %5408 = vset.pattern.permute.xlu0 2
      %5409 = vperm.xlu0 %5408, %v721
      %v5410 = vpop.permute.xlu0 %5409
      %5412 = vset.pattern.permute.xlu0 2
      %5413 = vperm.xlu0 %5412, %v722
      %v5414 = vpop.permute.xlu0 %5413
      %5416 = vset.pattern.permute.xlu0 2
      %5417 = vperm.xlu0 %5416, %v723
      %v5418 = vpop.permute.xlu0 %5417
      %5420 = vset.pattern.permute.xlu0 2
      %5421 = vperm.xlu0 %5420, %v724
      %v5422 = vpop.permute.xlu0 %5421
      %5424 = vset.pattern.permute.xlu0 2
      %5425 = vperm.xlu0 %5424, %v725
      %v5426 = vpop.permute.xlu0 %5425
      %5428 = vset.pattern.permute.xlu0 2
      %5429 = vperm.xlu0 %5428, %v726
      %v5430 = vpop.permute.xlu0 %5429
      %5432 = vset.pattern.permute.xlu0 2
      %5433 = vperm.xlu0 %5432, %v727
      %v5434 = vpop.permute.xlu0 %5433
      %5436 = vset.pattern.permute.xlu0 2
      %5437 = vperm.xlu0 %5436, %v728
      %v5438 = vpop.permute.xlu0 %5437
      %5440 = vset.pattern.permute.xlu0 2
      %5441 = vperm.xlu0 %5440, %v729
      %v5442 = vpop.permute.xlu0 %5441
      %5444 = vset.pattern.permute.xlu0 2
      %5445 = vperm.xlu0 %5444, %v730
      %v5446 = vpop.permute.xlu0 %5445
      %5448 = vset.pattern.permute.xlu0 2
      %5449 = vperm.xlu0 %5448, %v731
      %v5450 = vpop.permute.xlu0 %5449
      %5452 = vset.pattern.permute.xlu0 2
      %5453 = vperm.xlu0 %5452, %v732
      %v5454 = vpop.permute.xlu0 %5453
      %5456 = vset.pattern.permute.xlu0 2
      %5457 = vperm.xlu0 %5456, %v733
      %v5458 = vpop.permute.xlu0 %5457
      %5460 = vset.pattern.permute.xlu0 2
      %5461 = vperm.xlu0 %5460, %v734
      %v5462 = vpop.permute.xlu0 %5461
      %5464 = vset.pattern.permute.xlu0 2
      %5465 = vperm.xlu0 %5464, %v735
      %v5466 = vpop.permute.xlu0 %5465
      %5468 = vset.pattern.permute.xlu0 2
      %5469 = vperm.xlu0 %5468, %v736
      %v5470 = vpop.permute.xlu0 %5469
      %5472 = vset.pattern.permute.xlu0 2
      %5473 = vperm.xlu0 %5472, %v737
      %v5474 = vpop.permute.xlu0 %5473
      %5476 = vset.pattern.permute.xlu0 2
      %5477 = vperm.xlu0 %5476, %v738
      %v5478 = vpop.permute.xlu0 %5477
      %5480 = vset.pattern.permute.xlu0 2
      %5481 = vperm.xlu0 %5480, %v739
      %v5482 = vpop.permute.xlu0 %5481
      %5484 = vset.pattern.permute.xlu0 2
      %5485 = vperm.xlu0 %5484, %v740
      %v5486 = vpop.permute.xlu0 %5485
      %5488 = vset.pattern.permute.xlu0 2
      %5489 = vperm.xlu0 %5488, %v741
      %v5490 = vpop.permute.xlu0 %5489
      %5492 = vset.pattern.permute.xlu0 2
      %5493 = vperm.xlu0 %5492, %v742
      %v5494 = vpop.permute.xlu0 %5493
      %v5496 = vsel %vm5176, %v5242, %v5112
      %v5497 = vsel %vm5177, %v5246, %v5113
      %v5498 = vsel %vm5178, %v5250, %v5114
      %v5499 = vsel %vm5179, %v5254, %v5115
      %v5500 = vsel %vm5180, %v5258, %v5116
      %v5501 = vsel %vm5181, %v5262, %v5117
      %v5502 = vsel %vm5182, %v5266, %v5118
      %v5503 = vsel %vm5183, %v5270, %v5119
      %v5504 = vsel %vm5184, %v5274, %v5120
      %v5505 = vsel %vm5185, %v5278, %v5121
      %v5506 = vsel %vm5186, %v5282, %v5122
      %v5507 = vsel %vm5187, %v5286, %v5123
      %v5508 = vsel %vm5188, %v5290, %v5124
      %v5509 = vsel %vm5189, %v5294, %v5125
      %v5510 = vsel %vm5190, %v5298, %v5126
      %v5511 = vsel %vm5191, %v5302, %v5127
      %v5512 = vsel %vm5192, %v5306, %v5128
      %v5513 = vsel %vm5193, %v5310, %v5129
      %v5514 = vsel %vm5194, %v5314, %v5130
      %v5515 = vsel %vm5195, %v5318, %v5131
      %v5516 = vsel %vm5196, %v5322, %v5132
      %v5517 = vsel %vm5197, %v5326, %v5133
      %v5518 = vsel %vm5198, %v5330, %v5134
      %v5519 = vsel %vm5199, %v5334, %v5135
      %v5520 = vsel %vm5200, %v5338, %v5136
      %v5521 = vsel %vm5201, %v5342, %v5137
      %v5522 = vsel %vm5202, %v5346, %v5138
      %v5523 = vsel %vm5203, %v5350, %v5139
      %v5524 = vsel %vm5204, %v5354, %v5140
      %v5525 = vsel %vm5205, %v5358, %v5141
      %v5526 = vsel %vm5206, %v5362, %v5142
      %v5527 = vsel %vm5207, %v5366, %v5143
      %v5528 = vsel %vm5208, %v5370, %v5144
      %v5529 = vsel %vm5209, %v5374, %v5145
      %v5530 = vsel %vm5210, %v5378, %v5146
      %v5531 = vsel %vm5211, %v5382, %v5147
      %v5532 = vsel %vm5212, %v5386, %v5148
      %v5533 = vsel %vm5213, %v5390, %v5149
      %v5534 = vsel %vm5214, %v5394, %v5150
      %v5535 = vsel %vm5215, %v5398, %v5151
      %v5536 = vsel %vm5216, %v5402, %v5152
      %v5537 = vsel %vm5217, %v5406, %v5153
      %v5538 = vsel %vm5218, %v5410, %v5154
      %v5539 = vsel %vm5219, %v5414, %v5155
      %v5540 = vsel %vm5220, %v5418, %v5156
      %v5541 = vsel %vm5221, %v5422, %v5157
      %v5542 = vsel %vm5222, %v5426, %v5158
      %v5543 = vsel %vm5223, %v5430, %v5159
      %v5544 = vsel %vm5224, %v5434, %v5160
      %v5545 = vsel %vm5225, %v5438, %v5161
      %v5546 = vsel %vm5226, %v5442, %v5162
      %v5547 = vsel %vm5227, %v5446, %v5163
      %v5548 = vsel %vm5228, %v5450, %v5164
      %v5549 = vsel %vm5229, %v5454, %v5165
      %v5550 = vsel %vm5230, %v5458, %v5166
      %v5551 = vsel %vm5231, %v5462, %v5167
      %v5552 = vsel %vm5232, %v5466, %v5168
      %v5553 = vsel %vm5233, %v5470, %v5169
      %v5554 = vsel %vm5234, %v5474, %v5170
      %v5555 = vsel %vm5235, %v5478, %v5171
      %v5556 = vsel %vm5236, %v5482, %v5172
      %v5557 = vsel %vm5237, %v5486, %v5173
      %v5558 = vsel %vm5238, %v5490, %v5174
      %v5559 = vsel %vm5239, %v5494, %v5175
      %v5560 = vmul.f32 %v4213, %v5496
      %v5561 = vmul.f32 %v4218, %v5497
      %v5562 = vmul.f32 %v4223, %v5498
      %v5563 = vmul.f32 %v4228, %v5499
      %v5564 = vmul.f32 %v4233, %v5500
      %v5565 = vmul.f32 %v4238, %v5501
      %v5566 = vmul.f32 %v4243, %v5502
      %v5567 = vmul.f32 %v4248, %v5503
      %v5568 = vmul.f32 %v4253, %v5504
      %v5569 = vmul.f32 %v4258, %v5505
      %v5570 = vmul.f32 %v4263, %v5506
      %v5571 = vmul.f32 %v4268, %v5507
      %v5572 = vmul.f32 %v4273, %v5508
      %v5573 = vmul.f32 %v4278, %v5509
      %v5574 = vmul.f32 %v4283, %v5510
      %v5575 = vmul.f32 %v4288, %v5511
      %v5576 = vmul.f32 %v4293, %v5512
      %v5577 = vmul.f32 %v4298, %v5513
      %v5578 = vmul.f32 %v4303, %v5514
      %v5579 = vmul.f32 %v4308, %v5515
      %v5580 = vmul.f32 %v4313, %v5516
      %v5581 = vmul.f32 %v4318, %v5517
      %v5582 = vmul.f32 %v4323, %v5518
      %v5583 = vmul.f32 %v4328, %v5519
      %v5584 = vmul.f32 %v4333, %v5520
      %v5585 = vmul.f32 %v4338, %v5521
      %v5586 = vmul.f32 %v4343, %v5522
      %v5587 = vmul.f32 %v4348, %v5523
      %v5588 = vmul.f32 %v4353, %v5524
      %v5589 = vmul.f32 %v4358, %v5525
      %v5590 = vmul.f32 %v4363, %v5526
      %v5591 = vmul.f32 %v4368, %v5527
      %v5592 = vmul.f32 %v4373, %v5528
      %v5593 = vmul.f32 %v4378, %v5529
      %v5594 = vmul.f32 %v4383, %v5530
      %v5595 = vmul.f32 %v4388, %v5531
      %v5596 = vmul.f32 %v4393, %v5532
      %v5597 = vmul.f32 %v4398, %v5533
      %v5598 = vmul.f32 %v4403, %v5534
      %v5599 = vmul.f32 %v4408, %v5535
      %v5600 = vmul.f32 %v4413, %v5536
      %v5601 = vmul.f32 %v4418, %v5537
      %v5602 = vmul.f32 %v4423, %v5538
      %v5603 = vmul.f32 %v4428, %v5539
      %v5604 = vmul.f32 %v4433, %v5540
      %v5605 = vmul.f32 %v4438, %v5541
      %v5606 = vmul.f32 %v4443, %v5542
      %v5607 = vmul.f32 %v4448, %v5543
      %v5608 = vmul.f32 %v4453, %v5544
      %v5609 = vmul.f32 %v4458, %v5545
      %v5610 = vmul.f32 %v4463, %v5546
      %v5611 = vmul.f32 %v4468, %v5547
      %v5612 = vmul.f32 %v4473, %v5548
      %v5613 = vmul.f32 %v4478, %v5549
      %v5614 = vmul.f32 %v4483, %v5550
      %v5615 = vmul.f32 %v4488, %v5551
      %v5616 = vmul.f32 %v4493, %v5552
      %v5617 = vmul.f32 %v4498, %v5553
      %v5618 = vmul.f32 %v4503, %v5554
      %v5619 = vmul.f32 %v4508, %v5555
      %v5620 = vmul.f32 %v4513, %v5556
      %v5621 = vmul.f32 %v4518, %v5557
      %v5622 = vmul.f32 %v4523, %v5558
      %v5623 = vmul.f32 %v4528, %v5559
      %v5624 = vld [vmem:[%s4] sm:$0xff]
      %v5625 = vld [vmem:[%s4 + $0x8] sm:$0xff]
      %v5626 = vld [vmem:[%s4 + $0x10] sm:$0xff]
      %v5627 = vld [vmem:[%s4 + $0x18] sm:$0xff]
      %v5628 = vld [vmem:[%s4 + $0x20] sm:$0xff]
      %v5629 = vld [vmem:[%s4 + $0x28] sm:$0xff]
      %v5630 = vld [vmem:[%s4 + $0x30] sm:$0xff]
      %v5631 = vld [vmem:[%s4 + $0x38] sm:$0xff]
      %v5632 = vld [vmem:[%s4 + $0x40] sm:$0xff]
      %v5633 = vld [vmem:[%s4 + $0x48] sm:$0xff]
      %v5634 = vld [vmem:[%s4 + $0x50] sm:$0xff]
      %v5635 = vld [vmem:[%s4 + $0x58] sm:$0xff]
      %v5636 = vld [vmem:[%s4 + $0x60] sm:$0xff]
      %v5637 = vld [vmem:[%s4 + $0x68] sm:$0xff]
      %v5638 = vld [vmem:[%s4 + $0x70] sm:$0xff]
      %v5639 = vld [vmem:[%s4 + $0x78] sm:$0xff]
      %5640 = vmatprep.subr.mxu0 0.0
      %5641 = vmatpush1.msra.mxu0 %v5639
      %5642 = vmatprep.subr.mxu0 0.0
      %5643 = vmatpush1.msra.mxu0 %v5638
      %5644 = vmatprep.subr.mxu0 0.0
      %5645 = vmatpush1.msra.mxu0 %v5637
      %5646 = vmatprep.subr.mxu0 0.0
      %5647 = vmatpush1.msra.mxu0 %v5636
      %5648 = vmatprep.subr.mxu0 0.0
      %5649 = vmatpush1.msra.mxu0 %v5635
      %5650 = vmatprep.subr.mxu0 0.0
      %5651 = vmatpush1.msra.mxu0 %v5634
      %5652 = vmatprep.subr.mxu0 0.0
      %5653 = vmatpush1.msra.mxu0 %v5633
      %5654 = vmatprep.subr.mxu0 0.0
      %5655 = vmatpush1.msra.mxu0 %v5632
      %5656 = vmatprep.subr.mxu0 0.0
      %5657 = vmatpush1.msra.mxu0 %v5631
      %5658 = vmatprep.subr.mxu0 0.0
      %5659 = vmatpush1.msra.mxu0 %v5630
      %5660 = vmatprep.subr.mxu0 0.0
      %5661 = vmatpush1.msra.mxu0 %v5629
      %5662 = vmatprep.subr.mxu0 0.0
      %5663 = vmatpush1.msra.mxu0 %v5628
      %5664 = vmatprep.subr.mxu0 0.0
      %5665 = vmatpush1.msra.mxu0 %v5627
      %5666 = vmatprep.subr.mxu0 0.0
      %5667 = vmatpush1.msra.mxu0 %v5626
      %5668 = vmatprep.subr.mxu0 0.0
      %5669 = vmatpush1.msra.mxu0 %v5625
      %5670 = vmatprep.subr.mxu0 0.0
      %5671 = vmatpush1.msra.mxu0 %v5624
      %5672 = vmatprep.subr.mxu0 0.0
      %5673 = vmatpush2.msra.mxu0 0.0
      %5674 = vmatprep.subr.mxu0 0.0
      %5675 = vmatpush2.msra.mxu0 0.0
      %5676 = vmatprep.subr.mxu0 0.0
      %5677 = vmatpush2.msra.mxu0 0.0
      %5678 = vmatprep.subr.mxu0 0.0
      %5679 = vmatpush2.msra.mxu0 0.0
      %5680 = vmatprep.subr.mxu0 0.0
      %5681 = vmatpush2.msra.mxu0 0.0
      %5682 = vmatprep.subr.mxu0 0.0
      %5683 = vmatpush2.msra.mxu0 0.0
      %5684 = vmatprep.subr.mxu0 0.0
      %5685 = vmatpush2.msra.mxu0 0.0
      %5686 = vmatprep.subr.mxu0 0.0
      %5687 = vmatpush2.msra.mxu0 0.0
      %5688 = vmatprep.subr.mxu0 0.0
      %5689 = vmatpush2.msra.mxu0 0.0
      %5690 = vmatprep.subr.mxu0 0.0
      %5691 = vmatpush2.msra.mxu0 0.0
      %5692 = vmatprep.subr.mxu0 0.0
      %5693 = vmatpush2.msra.mxu0 0.0
      %5694 = vmatprep.subr.mxu0 0.0
      %5695 = vmatpush2.msra.mxu0 0.0
      %5696 = vmatprep.subr.mxu0 0.0
      %5697 = vmatpush2.msra.mxu0 0.0
      %5698 = vmatprep.subr.mxu0 0.0
      %5699 = vmatpush2.msra.mxu0 0.0
      %5700 = vmatprep.subr.mxu0 0.0
      %5701 = vmatpush2.msra.mxu0 0.0
      %5702 = vmatprep.subr.mxu0 0.0
      %5703 = vmatpush2.msra.mxu0 0.0
      %5704 = vmatprep.mubr.f32.mxu0 0.0
      %5705 = vmatmul.mubr.f32.gmra.mxu0 %v5560
      %v5706 = vpop.f32.mrf.mxu0
      %v5707 = vadd.f32 0.0, %v5706
      %v5708 = vpop.f32.mrf.mxu0
      %5709 = vmatprep.mubr.f32.mxu0 0.0
      %5710 = vmatmul.mubr.f32.gmra.mxu0 %v5561
      %v5711 = vpop.f32.mrf.mxu0
      %v5712 = vadd.f32 0.0, %v5711
      %v5713 = vpop.f32.mrf.mxu0
      %5714 = vmatprep.mubr.f32.mxu0 0.0
      %5715 = vmatmul.mubr.f32.gmra.mxu0 %v5562
      %v5716 = vpop.f32.mrf.mxu0
      %v5717 = vadd.f32 0.0, %v5716
      %v5718 = vpop.f32.mrf.mxu0
      %5719 = vmatprep.mubr.f32.mxu0 0.0
      %5720 = vmatmul.mubr.f32.gmra.mxu0 %v5563
      %v5721 = vpop.f32.mrf.mxu0
      %v5722 = vadd.f32 0.0, %v5721
      %v5723 = vpop.f32.mrf.mxu0
      %5724 = vmatprep.mubr.f32.mxu0 0.0
      %5725 = vmatmul.mubr.f32.gmra.mxu0 %v5564
      %v5726 = vpop.f32.mrf.mxu0
      %v5727 = vadd.f32 0.0, %v5726
      %v5728 = vpop.f32.mrf.mxu0
      %5729 = vmatprep.mubr.f32.mxu0 0.0
      %5730 = vmatmul.mubr.f32.gmra.mxu0 %v5565
      %v5731 = vpop.f32.mrf.mxu0
      %v5732 = vadd.f32 0.0, %v5731
      %v5733 = vpop.f32.mrf.mxu0
      %5734 = vmatprep.mubr.f32.mxu0 0.0
      %5735 = vmatmul.mubr.f32.gmra.mxu0 %v5566
      %v5736 = vpop.f32.mrf.mxu0
      %v5737 = vadd.f32 0.0, %v5736
      %v5738 = vpop.f32.mrf.mxu0
      %5739 = vmatprep.mubr.f32.mxu0 0.0
      %5740 = vmatmul.mubr.f32.gmra.mxu0 %v5567
      %v5741 = vpop.f32.mrf.mxu0
      %v5742 = vadd.f32 0.0, %v5741
      %v5743 = vpop.f32.mrf.mxu0
      %5744 = vmatprep.mubr.f32.mxu0 0.0
      %5745 = vmatmul.mubr.f32.gmra.mxu0 %v5568
      %v5746 = vpop.f32.mrf.mxu0
      %v5747 = vadd.f32 0.0, %v5746
      %v5748 = vpop.f32.mrf.mxu0
      %5749 = vmatprep.mubr.f32.mxu0 0.0
      %5750 = vmatmul.mubr.f32.gmra.mxu0 %v5569
      %v5751 = vpop.f32.mrf.mxu0
      %v5752 = vadd.f32 0.0, %v5751
      %v5753 = vpop.f32.mrf.mxu0
      %5754 = vmatprep.mubr.f32.mxu0 0.0
      %5755 = vmatmul.mubr.f32.gmra.mxu0 %v5570
      %v5756 = vpop.f32.mrf.mxu0
      %v5757 = vadd.f32 0.0, %v5756
      %v5758 = vpop.f32.mrf.mxu0
      %5759 = vmatprep.mubr.f32.mxu0 0.0
      %5760 = vmatmul.mubr.f32.gmra.mxu0 %v5571
      %v5761 = vpop.f32.mrf.mxu0
      %v5762 = vadd.f32 0.0, %v5761
      %v5763 = vpop.f32.mrf.mxu0
      %5764 = vmatprep.mubr.f32.mxu0 0.0
      %5765 = vmatmul.mubr.f32.gmra.mxu0 %v5572
      %v5766 = vpop.f32.mrf.mxu0
      %v5767 = vadd.f32 0.0, %v5766
      %v5768 = vpop.f32.mrf.mxu0
      %5769 = vmatprep.mubr.f32.mxu0 0.0
      %5770 = vmatmul.mubr.f32.gmra.mxu0 %v5573
      %v5771 = vpop.f32.mrf.mxu0
      %v5772 = vadd.f32 0.0, %v5771
      %v5773 = vpop.f32.mrf.mxu0
      %5774 = vmatprep.mubr.f32.mxu0 0.0
      %5775 = vmatmul.mubr.f32.gmra.mxu0 %v5574
      %v5776 = vpop.f32.mrf.mxu0
      %v5777 = vadd.f32 0.0, %v5776
      %v5778 = vpop.f32.mrf.mxu0
      %5779 = vmatprep.mubr.f32.mxu0 0.0
      %5780 = vmatmul.mubr.f32.gmra.mxu0 %v5575
      %v5781 = vpop.f32.mrf.mxu0
      %v5782 = vadd.f32 0.0, %v5781
      %v5783 = vpop.f32.mrf.mxu0
      %5784 = vmatprep.mubr.f32.mxu0 0.0
      %5785 = vmatmul.mubr.f32.gmra.mxu0 %v5576
      %v5786 = vpop.f32.mrf.mxu0
      %v5787 = vadd.f32 0.0, %v5786
      %v5788 = vpop.f32.mrf.mxu0
      %5789 = vmatprep.mubr.f32.mxu0 0.0
      %5790 = vmatmul.mubr.f32.gmra.mxu0 %v5577
      %v5791 = vpop.f32.mrf.mxu0
      %v5792 = vadd.f32 0.0, %v5791
      %v5793 = vpop.f32.mrf.mxu0
      %5794 = vmatprep.mubr.f32.mxu0 0.0
      %5795 = vmatmul.mubr.f32.gmra.mxu0 %v5578
      %v5796 = vpop.f32.mrf.mxu0
      %v5797 = vadd.f32 0.0, %v5796
      %v5798 = vpop.f32.mrf.mxu0
      %5799 = vmatprep.mubr.f32.mxu0 0.0
      %5800 = vmatmul.mubr.f32.gmra.mxu0 %v5579
      %v5801 = vpop.f32.mrf.mxu0
      %v5802 = vadd.f32 0.0, %v5801
      %v5803 = vpop.f32.mrf.mxu0
      %5804 = vmatprep.mubr.f32.mxu0 0.0
      %5805 = vmatmul.mubr.f32.gmra.mxu0 %v5580
      %v5806 = vpop.f32.mrf.mxu0
      %v5807 = vadd.f32 0.0, %v5806
      %v5808 = vpop.f32.mrf.mxu0
      %5809 = vmatprep.mubr.f32.mxu0 0.0
      %5810 = vmatmul.mubr.f32.gmra.mxu0 %v5581
      %v5811 = vpop.f32.mrf.mxu0
      %v5812 = vadd.f32 0.0, %v5811
      %v5813 = vpop.f32.mrf.mxu0
      %5814 = vmatprep.mubr.f32.mxu0 0.0
      %5815 = vmatmul.mubr.f32.gmra.mxu0 %v5582
      %v5816 = vpop.f32.mrf.mxu0
      %v5817 = vadd.f32 0.0, %v5816
      %v5818 = vpop.f32.mrf.mxu0
      %5819 = vmatprep.mubr.f32.mxu0 0.0
      %5820 = vmatmul.mubr.f32.gmra.mxu0 %v5583
      %v5821 = vpop.f32.mrf.mxu0
      %v5822 = vadd.f32 0.0, %v5821
      %v5823 = vpop.f32.mrf.mxu0
      %5824 = vmatprep.mubr.f32.mxu0 0.0
      %5825 = vmatmul.mubr.f32.gmra.mxu0 %v5584
      %v5826 = vpop.f32.mrf.mxu0
      %v5827 = vadd.f32 0.0, %v5826
      %v5828 = vpop.f32.mrf.mxu0
      %5829 = vmatprep.mubr.f32.mxu0 0.0
      %5830 = vmatmul.mubr.f32.gmra.mxu0 %v5585
      %v5831 = vpop.f32.mrf.mxu0
      %v5832 = vadd.f32 0.0, %v5831
      %v5833 = vpop.f32.mrf.mxu0
      %5834 = vmatprep.mubr.f32.mxu0 0.0
      %5835 = vmatmul.mubr.f32.gmra.mxu0 %v5586
      %v5836 = vpop.f32.mrf.mxu0
      %v5837 = vadd.f32 0.0, %v5836
      %v5838 = vpop.f32.mrf.mxu0
      %5839 = vmatprep.mubr.f32.mxu0 0.0
      %5840 = vmatmul.mubr.f32.gmra.mxu0 %v5587
      %v5841 = vpop.f32.mrf.mxu0
      %v5842 = vadd.f32 0.0, %v5841
      %v5843 = vpop.f32.mrf.mxu0
      %5844 = vmatprep.mubr.f32.mxu0 0.0
      %5845 = vmatmul.mubr.f32.gmra.mxu0 %v5588
      %v5846 = vpop.f32.mrf.mxu0
      %v5847 = vadd.f32 0.0, %v5846
      %v5848 = vpop.f32.mrf.mxu0
      %5849 = vmatprep.mubr.f32.mxu0 0.0
      %5850 = vmatmul.mubr.f32.gmra.mxu0 %v5589
      %v5851 = vpop.f32.mrf.mxu0
      %v5852 = vadd.f32 0.0, %v5851
      %v5853 = vpop.f32.mrf.mxu0
      %5854 = vmatprep.mubr.f32.mxu0 0.0
      %5855 = vmatmul.mubr.f32.gmra.mxu0 %v5590
      %v5856 = vpop.f32.mrf.mxu0
      %v5857 = vadd.f32 0.0, %v5856
      %v5858 = vpop.f32.mrf.mxu0
      %5859 = vmatprep.mubr.f32.mxu0 0.0
      %5860 = vmatmul.mubr.f32.gmra.mxu0 %v5591
      %v5861 = vpop.f32.mrf.mxu0
      %v5862 = vadd.f32 0.0, %v5861
      %v5863 = vpop.f32.mrf.mxu0
      %5864 = vmatprep.mubr.f32.mxu0 0.0
      %5865 = vmatmul.mubr.f32.gmra.mxu0 %v5592
      %v5866 = vpop.f32.mrf.mxu0
      %v5867 = vadd.f32 0.0, %v5866
      %v5868 = vpop.f32.mrf.mxu0
      %5869 = vmatprep.mubr.f32.mxu0 0.0
      %5870 = vmatmul.mubr.f32.gmra.mxu0 %v5593
      %v5871 = vpop.f32.mrf.mxu0
      %v5872 = vadd.f32 0.0, %v5871
      %v5873 = vpop.f32.mrf.mxu0
      %5874 = vmatprep.mubr.f32.mxu0 0.0
      %5875 = vmatmul.mubr.f32.gmra.mxu0 %v5594
      %v5876 = vpop.f32.mrf.mxu0
      %v5877 = vadd.f32 0.0, %v5876
      %v5878 = vpop.f32.mrf.mxu0
      %5879 = vmatprep.mubr.f32.mxu0 0.0
      %5880 = vmatmul.mubr.f32.gmra.mxu0 %v5595
      %v5881 = vpop.f32.mrf.mxu0
      %v5882 = vadd.f32 0.0, %v5881
      %v5883 = vpop.f32.mrf.mxu0
      %5884 = vmatprep.mubr.f32.mxu0 0.0
      %5885 = vmatmul.mubr.f32.gmra.mxu0 %v5596
      %v5886 = vpop.f32.mrf.mxu0
      %v5887 = vadd.f32 0.0, %v5886
      %v5888 = vpop.f32.mrf.mxu0
      %5889 = vmatprep.mubr.f32.mxu0 0.0
      %5890 = vmatmul.mubr.f32.gmra.mxu0 %v5597
      %v5891 = vpop.f32.mrf.mxu0
      %v5892 = vadd.f32 0.0, %v5891
      %v5893 = vpop.f32.mrf.mxu0
      %5894 = vmatprep.mubr.f32.mxu0 0.0
      %5895 = vmatmul.mubr.f32.gmra.mxu0 %v5598
      %v5896 = vpop.f32.mrf.mxu0
      %v5897 = vadd.f32 0.0, %v5896
      %v5898 = vpop.f32.mrf.mxu0
      %5899 = vmatprep.mubr.f32.mxu0 0.0
      %5900 = vmatmul.mubr.f32.gmra.mxu0 %v5599
      %v5901 = vpop.f32.mrf.mxu0
      %v5902 = vadd.f32 0.0, %v5901
      %v5903 = vpop.f32.mrf.mxu0
      %5904 = vmatprep.mubr.f32.mxu0 0.0
      %5905 = vmatmul.mubr.f32.gmra.mxu0 %v5600
      %v5906 = vpop.f32.mrf.mxu0
      %v5907 = vadd.f32 0.0, %v5906
      %v5908 = vpop.f32.mrf.mxu0
      %5909 = vmatprep.mubr.f32.mxu0 0.0
      %5910 = vmatmul.mubr.f32.gmra.mxu0 %v5601
      %v5911 = vpop.f32.mrf.mxu0
      %v5912 = vadd.f32 0.0, %v5911
      %v5913 = vpop.f32.mrf.mxu0
      %5914 = vmatprep.mubr.f32.mxu0 0.0
      %5915 = vmatmul.mubr.f32.gmra.mxu0 %v5602
      %v5916 = vpop.f32.mrf.mxu0
      %v5917 = vadd.f32 0.0, %v5916
      %v5918 = vpop.f32.mrf.mxu0
      %5919 = vmatprep.mubr.f32.mxu0 0.0
      %5920 = vmatmul.mubr.f32.gmra.mxu0 %v5603
      %v5921 = vpop.f32.mrf.mxu0
      %v5922 = vadd.f32 0.0, %v5921
      %v5923 = vpop.f32.mrf.mxu0
      %5924 = vmatprep.mubr.f32.mxu0 0.0
      %5925 = vmatmul.mubr.f32.gmra.mxu0 %v5604
      %v5926 = vpop.f32.mrf.mxu0
      %v5927 = vadd.f32 0.0, %v5926
      %v5928 = vpop.f32.mrf.mxu0
      %5929 = vmatprep.mubr.f32.mxu0 0.0
      %5930 = vmatmul.mubr.f32.gmra.mxu0 %v5605
      %v5931 = vpop.f32.mrf.mxu0
      %v5932 = vadd.f32 0.0, %v5931
      %v5933 = vpop.f32.mrf.mxu0
      %5934 = vmatprep.mubr.f32.mxu0 0.0
      %5935 = vmatmul.mubr.f32.gmra.mxu0 %v5606
      %v5936 = vpop.f32.mrf.mxu0
      %v5937 = vadd.f32 0.0, %v5936
      %v5938 = vpop.f32.mrf.mxu0
      %5939 = vmatprep.mubr.f32.mxu0 0.0
      %5940 = vmatmul.mubr.f32.gmra.mxu0 %v5607
      %v5941 = vpop.f32.mrf.mxu0
      %v5942 = vadd.f32 0.0, %v5941
      %v5943 = vpop.f32.mrf.mxu0
      %5944 = vmatprep.mubr.f32.mxu0 0.0
      %5945 = vmatmul.mubr.f32.gmra.mxu0 %v5608
      %v5946 = vpop.f32.mrf.mxu0
      %v5947 = vadd.f32 0.0, %v5946
      %v5948 = vpop.f32.mrf.mxu0
      %5949 = vmatprep.mubr.f32.mxu0 0.0
      %5950 = vmatmul.mubr.f32.gmra.mxu0 %v5609
      %v5951 = vpop.f32.mrf.mxu0
      %v5952 = vadd.f32 0.0, %v5951
      %v5953 = vpop.f32.mrf.mxu0
      %5954 = vmatprep.mubr.f32.mxu0 0.0
      %5955 = vmatmul.mubr.f32.gmra.mxu0 %v5610
      %v5956 = vpop.f32.mrf.mxu0
      %v5957 = vadd.f32 0.0, %v5956
      %v5958 = vpop.f32.mrf.mxu0
      %5959 = vmatprep.mubr.f32.mxu0 0.0
      %5960 = vmatmul.mubr.f32.gmra.mxu0 %v5611
      %v5961 = vpop.f32.mrf.mxu0
      %v5962 = vadd.f32 0.0, %v5961
      %v5963 = vpop.f32.mrf.mxu0
      %5964 = vmatprep.mubr.f32.mxu0 0.0
      %5965 = vmatmul.mubr.f32.gmra.mxu0 %v5612
      %v5966 = vpop.f32.mrf.mxu0
      %v5967 = vadd.f32 0.0, %v5966
      %v5968 = vpop.f32.mrf.mxu0
      %5969 = vmatprep.mubr.f32.mxu0 0.0
      %5970 = vmatmul.mubr.f32.gmra.mxu0 %v5613
      %v5971 = vpop.f32.mrf.mxu0
      %v5972 = vadd.f32 0.0, %v5971
      %v5973 = vpop.f32.mrf.mxu0
      %5974 = vmatprep.mubr.f32.mxu0 0.0
      %5975 = vmatmul.mubr.f32.gmra.mxu0 %v5614
      %v5976 = vpop.f32.mrf.mxu0
      %v5977 = vadd.f32 0.0, %v5976
      %v5978 = vpop.f32.mrf.mxu0
      %5979 = vmatprep.mubr.f32.mxu0 0.0
      %5980 = vmatmul.mubr.f32.gmra.mxu0 %v5615
      %v5981 = vpop.f32.mrf.mxu0
      %v5982 = vadd.f32 0.0, %v5981
      %v5983 = vpop.f32.mrf.mxu0
      %5984 = vmatprep.mubr.f32.mxu0 0.0
      %5985 = vmatmul.mubr.f32.gmra.mxu0 %v5616
      %v5986 = vpop.f32.mrf.mxu0
      %v5987 = vadd.f32 0.0, %v5986
      %v5988 = vpop.f32.mrf.mxu0
      %5989 = vmatprep.mubr.f32.mxu0 0.0
      %5990 = vmatmul.mubr.f32.gmra.mxu0 %v5617
      %v5991 = vpop.f32.mrf.mxu0
      %v5992 = vadd.f32 0.0, %v5991
      %v5993 = vpop.f32.mrf.mxu0
      %5994 = vmatprep.mubr.f32.mxu0 0.0
      %5995 = vmatmul.mubr.f32.gmra.mxu0 %v5618
      %v5996 = vpop.f32.mrf.mxu0
      %v5997 = vadd.f32 0.0, %v5996
      %v5998 = vpop.f32.mrf.mxu0
      %5999 = vmatprep.mubr.f32.mxu0 0.0
      %6000 = vmatmul.mubr.f32.gmra.mxu0 %v5619
      %v6001 = vpop.f32.mrf.mxu0
      %v6002 = vadd.f32 0.0, %v6001
      %v6003 = vpop.f32.mrf.mxu0
      %6004 = vmatprep.mubr.f32.mxu0 0.0
      %6005 = vmatmul.mubr.f32.gmra.mxu0 %v5620
      %v6006 = vpop.f32.mrf.mxu0
      %v6007 = vadd.f32 0.0, %v6006
      %v6008 = vpop.f32.mrf.mxu0
      %6009 = vmatprep.mubr.f32.mxu0 0.0
      %6010 = vmatmul.mubr.f32.gmra.mxu0 %v5621
      %v6011 = vpop.f32.mrf.mxu0
      %v6012 = vadd.f32 0.0, %v6011
      %v6013 = vpop.f32.mrf.mxu0
      %6014 = vmatprep.mubr.f32.mxu0 0.0
      %6015 = vmatmul.mubr.f32.gmra.mxu0 %v5622
      %v6016 = vpop.f32.mrf.mxu0
      %v6017 = vadd.f32 0.0, %v6016
      %v6018 = vpop.f32.mrf.mxu0
      %6019 = vmatprep.mubr.f32.mxu0 0.0
      %6020 = vmatmul.mubr.f32.gmra.mxu0 %v5623
      %v6021 = vpop.f32.mrf.mxu0
      %v6022 = vadd.f32 0.0, %v6021
      %v6023 = vpop.f32.mrf.mxu0
      %6024 = vdwg.mxu0
      %v6025 = vmax.f32 %v5707, 0.0
      %v6026 = vmax.f32 %v5712, 0.0
      %v6027 = vmax.f32 %v5717, 0.0
      %v6028 = vmax.f32 %v5722, 0.0
      %v6029 = vmax.f32 %v5727, 0.0
      %v6030 = vmax.f32 %v5732, 0.0
      %v6031 = vmax.f32 %v5737, 0.0
      %v6032 = vmax.f32 %v5742, 0.0
      %v6033 = vmax.f32 %v5747, 0.0
      %v6034 = vmax.f32 %v5752, 0.0
      %v6035 = vmax.f32 %v5757, 0.0
      %v6036 = vmax.f32 %v5762, 0.0
      %v6037 = vmax.f32 %v5767, 0.0
      %v6038 = vmax.f32 %v5772, 0.0
      %v6039 = vmax.f32 %v5777, 0.0
      %v6040 = vmax.f32 %v5782, 0.0
      %v6041 = vmax.f32 %v5787, 0.0
      %v6042 = vmax.f32 %v5792, 0.0
      %v6043 = vmax.f32 %v5797, 0.0
      %v6044 = vmax.f32 %v5802, 0.0
      %v6045 = vmax.f32 %v5807, 0.0
      %v6046 = vmax.f32 %v5812, 0.0
      %v6047 = vmax.f32 %v5817, 0.0
      %v6048 = vmax.f32 %v5822, 0.0
      %v6049 = vmax.f32 %v5827, 0.0
      %v6050 = vmax.f32 %v5832, 0.0
      %v6051 = vmax.f32 %v5837, 0.0
      %v6052 = vmax.f32 %v5842, 0.0
      %v6053 = vmax.f32 %v5847, 0.0
      %v6054 = vmax.f32 %v5852, 0.0
      %v6055 = vmax.f32 %v5857, 0.0
      %v6056 = vmax.f32 %v5862, 0.0
      %v6057 = vmax.f32 %v5867, 0.0
      %v6058 = vmax.f32 %v5872, 0.0
      %v6059 = vmax.f32 %v5877, 0.0
      %v6060 = vmax.f32 %v5882, 0.0
      %v6061 = vmax.f32 %v5887, 0.0
      %v6062 = vmax.f32 %v5892, 0.0
      %v6063 = vmax.f32 %v5897, 0.0
      %v6064 = vmax.f32 %v5902, 0.0
      %v6065 = vmax.f32 %v5907, 0.0
      %v6066 = vmax.f32 %v5912, 0.0
      %v6067 = vmax.f32 %v5917, 0.0
      %v6068 = vmax.f32 %v5922, 0.0
      %v6069 = vmax.f32 %v5927, 0.0
      %v6070 = vmax.f32 %v5932, 0.0
      %v6071 = vmax.f32 %v5937, 0.0
      %v6072 = vmax.f32 %v5942, 0.0
      %v6073 = vmax.f32 %v5947, 0.0
      %v6074 = vmax.f32 %v5952, 0.0
      %v6075 = vmax.f32 %v5957, 0.0
      %v6076 = vmax.f32 %v5962, 0.0
      %v6077 = vmax.f32 %v5967, 0.0
      %v6078 = vmax.f32 %v5972, 0.0
      %v6079 = vmax.f32 %v5977, 0.0
      %v6080 = vmax.f32 %v5982, 0.0
      %v6081 = vmax.f32 %v5987, 0.0
      %v6082 = vmax.f32 %v5992, 0.0
      %v6083 = vmax.f32 %v5997, 0.0
      %v6084 = vmax.f32 %v6002, 0.0
      %v6085 = vmax.f32 %v6007, 0.0
      %v6086 = vmax.f32 %v6012, 0.0
      %v6087 = vmax.f32 %v6017, 0.0
      %v6088 = vmax.f32 %v6022, 0.0
      %v6089 = vld [vmem:[%s5] sm:$0xff]
      %v6090 = vld [vmem:[%s5 + $0x8] sm:$0xff]
      %v6091 = vld [vmem:[%s5 + $0x10] sm:$0xff]
      %v6092 = vld [vmem:[%s5 + $0x18] sm:$0xff]
      %vm6093 = vcmask 261120
      %v6095 = vsel %vm6093, %v6025, 0
      %v6098 = vsel %vm6093, %v6026, 0
      %v6101 = vsel %vm6093, %v6027, 0
      %v6104 = vsel %vm6093, %v6028, 0
      %v6107 = vsel %vm6093, %v6029, 0
      %v6110 = vsel %vm6093, %v6030, 0
      %v6113 = vsel %vm6093, %v6031, 0
      %v6116 = vsel %vm6093, %v6032, 0
      %v6119 = vsel %vm6093, %v6033, 0
      %v6122 = vsel %vm6093, %v6034, 0
      %v6125 = vsel %vm6093, %v6035, 0
      %v6128 = vsel %vm6093, %v6036, 0
      %v6131 = vsel %vm6093, %v6037, 0
      %v6134 = vsel %vm6093, %v6038, 0
      %v6137 = vsel %vm6093, %v6039, 0
      %v6140 = vsel %vm6093, %v6040, 0
      %v6143 = vsel %vm6093, %v6041, 0
      %v6146 = vsel %vm6093, %v6042, 0
      %v6149 = vsel %vm6093, %v6043, 0
      %v6152 = vsel %vm6093, %v6044, 0
      %v6155 = vsel %vm6093, %v6045, 0
      %v6158 = vsel %vm6093, %v6046, 0
      %v6161 = vsel %vm6093, %v6047, 0
      %v6164 = vsel %vm6093, %v6048, 0
      %v6167 = vsel %vm6093, %v6049, 0
      %v6170 = vsel %vm6093, %v6050, 0
      %v6173 = vsel %vm6093, %v6051, 0
      %v6176 = vsel %vm6093, %v6052, 0
      %v6179 = vsel %vm6093, %v6053, 0
      %v6182 = vsel %vm6093, %v6054, 0
      %v6185 = vsel %vm6093, %v6055, 0
      %v6188 = vsel %vm6093, %v6056, 0
      %v6191 = vsel %vm6093, %v6057, 0
      %v6194 = vsel %vm6093, %v6058, 0
      %v6197 = vsel %vm6093, %v6059, 0
      %v6200 = vsel %vm6093, %v6060, 0
      %v6203 = vsel %vm6093, %v6061, 0
      %v6206 = vsel %vm6093, %v6062, 0
      %v6209 = vsel %vm6093, %v6063, 0
      %v6212 = vsel %vm6093, %v6064, 0
      %v6215 = vsel %vm6093, %v6065, 0
      %v6218 = vsel %vm6093, %v6066, 0
      %v6221 = vsel %vm6093, %v6067, 0
      %v6224 = vsel %vm6093, %v6068, 0
      %v6227 = vsel %vm6093, %v6069, 0
      %v6230 = vsel %vm6093, %v6070, 0
      %v6233 = vsel %vm6093, %v6071, 0
      %v6236 = vsel %vm6093, %v6072, 0
      %v6239 = vsel %vm6093, %v6073, 0
      %v6242 = vsel %vm6093, %v6074, 0
      %v6245 = vsel %vm6093, %v6075, 0
      %v6248 = vsel %vm6093, %v6076, 0
      %v6251 = vsel %vm6093, %v6077, 0
      %v6254 = vsel %vm6093, %v6078, 0
      %v6257 = vsel %vm6093, %v6079, 0
      %v6260 = vsel %vm6093, %v6080, 0
      %v6263 = vsel %vm6093, %v6081, 0
      %v6266 = vsel %vm6093, %v6082, 0
      %v6269 = vsel %vm6093, %v6083, 0
      %v6272 = vsel %vm6093, %v6084, 0
      %v6275 = vsel %vm6093, %v6085, 0
      %v6278 = vsel %vm6093, %v6086, 0
      %v6281 = vsel %vm6093, %v6087, 0
      %v6284 = vsel %vm6093, %v6088, 0
      %6286 = vmatprep.subr.mxu0 0.0
      %6287 = vmatpush1.msra.mxu0 0.0
      %6288 = vmatprep.subr.mxu0 0.0
      %6289 = vmatpush1.msra.mxu0 0.0
      %6290 = vmatprep.subr.mxu0 0.0
      %6291 = vmatpush1.msra.mxu0 0.0
      %6292 = vmatprep.subr.mxu0 0.0
      %6293 = vmatpush1.msra.mxu0 0.0
      %6294 = vmatprep.subr.mxu0 0.0
      %6295 = vmatpush1.msra.mxu0 0.0
      %6296 = vmatprep.subr.mxu0 0.0
      %6297 = vmatpush1.msra.mxu0 0.0
      %6298 = vmatprep.subr.mxu0 0.0
      %6299 = vmatpush1.msra.mxu0 0.0
      %6300 = vmatprep.subr.mxu0 0.0
      %6301 = vmatpush1.msra.mxu0 0.0
      %6302 = vmatprep.subr.mxu0 0.0
      %6303 = vmatpush1.msra.mxu0 0.0
      %6304 = vmatprep.subr.mxu0 0.0
      %6305 = vmatpush1.msra.mxu0 0.0
      %6306 = vmatprep.subr.mxu0 0.0
      %6307 = vmatpush1.msra.mxu0 0.0
      %6308 = vmatprep.subr.mxu0 0.0
      %6309 = vmatpush1.msra.mxu0 0.0
      %6310 = vmatprep.subr.mxu0 0.0
      %6311 = vmatpush1.msra.mxu0 %v6092
      %6312 = vmatprep.subr.mxu0 0.0
      %6313 = vmatpush1.msra.mxu0 %v6091
      %6314 = vmatprep.subr.mxu0 0.0
      %6315 = vmatpush1.msra.mxu0 %v6090
      %6316 = vmatprep.subr.mxu0 0.0
      %6317 = vmatpush1.msra.mxu0 %v6089
      %6318 = vmatprep.subr.mxu0 0.0
      %6319 = vmatpush2.msra.mxu0 0.0
      %6320 = vmatprep.subr.mxu0 0.0
      %6321 = vmatpush2.msra.mxu0 0.0
      %6322 = vmatprep.subr.mxu0 0.0
      %6323 = vmatpush2.msra.mxu0 0.0
      %6324 = vmatprep.subr.mxu0 0.0
      %6325 = vmatpush2.msra.mxu0 0.0
      %6326 = vmatprep.subr.mxu0 0.0
      %6327 = vmatpush2.msra.mxu0 0.0
      %6328 = vmatprep.subr.mxu0 0.0
      %6329 = vmatpush2.msra.mxu0 0.0
      %6330 = vmatprep.subr.mxu0 0.0
      %6331 = vmatpush2.msra.mxu0 0.0
      %6332 = vmatprep.subr.mxu0 0.0
      %6333 = vmatpush2.msra.mxu0 0.0
      %6334 = vmatprep.subr.mxu0 0.0
      %6335 = vmatpush2.msra.mxu0 0.0
      %6336 = vmatprep.subr.mxu0 0.0
      %6337 = vmatpush2.msra.mxu0 0.0
      %6338 = vmatprep.subr.mxu0 0.0
      %6339 = vmatpush2.msra.mxu0 0.0
      %6340 = vmatprep.subr.mxu0 0.0
      %6341 = vmatpush2.msra.mxu0 0.0
      %6342 = vmatprep.subr.mxu0 0.0
      %6343 = vmatpush2.msra.mxu0 0.0
      %6344 = vmatprep.subr.mxu0 0.0
      %6345 = vmatpush2.msra.mxu0 0.0
      %6346 = vmatprep.subr.mxu0 0.0
      %6347 = vmatpush2.msra.mxu0 0.0
      %6348 = vmatprep.subr.mxu0 0.0
      %6349 = vmatpush2.msra.mxu0 0.0
      %6350 = vmatprep.mubr.f32.mxu0 0.0
      %6351 = vmatmul.mubr.f32.gmra.mxu0 %v6095
      %v6352 = vpop.f32.mrf.mxu0
      %v6353 = vadd.f32 0.0, %v6352
      %v6354 = vpop.f32.mrf.mxu0
      %6355 = vmatprep.mubr.f32.mxu0 0.0
      %6356 = vmatmul.mubr.f32.gmra.mxu0 %v6098
      %v6357 = vpop.f32.mrf.mxu0
      %v6358 = vadd.f32 0.0, %v6357
      %v6359 = vpop.f32.mrf.mxu0
      %6360 = vmatprep.mubr.f32.mxu0 0.0
      %6361 = vmatmul.mubr.f32.gmra.mxu0 %v6101
      %v6362 = vpop.f32.mrf.mxu0
      %v6363 = vadd.f32 0.0, %v6362
      %v6364 = vpop.f32.mrf.mxu0
      %6365 = vmatprep.mubr.f32.mxu0 0.0
      %6366 = vmatmul.mubr.f32.gmra.mxu0 %v6104
      %v6367 = vpop.f32.mrf.mxu0
      %v6368 = vadd.f32 0.0, %v6367
      %v6369 = vpop.f32.mrf.mxu0
      %6370 = vmatprep.mubr.f32.mxu0 0.0
      %6371 = vmatmul.mubr.f32.gmra.mxu0 %v6107
      %v6372 = vpop.f32.mrf.mxu0
      %v6373 = vadd.f32 0.0, %v6372
      %v6374 = vpop.f32.mrf.mxu0
      %6375 = vmatprep.mubr.f32.mxu0 0.0
      %6376 = vmatmul.mubr.f32.gmra.mxu0 %v6110
      %v6377 = vpop.f32.mrf.mxu0
      %v6378 = vadd.f32 0.0, %v6377
      %v6379 = vpop.f32.mrf.mxu0
      %6380 = vmatprep.mubr.f32.mxu0 0.0
      %6381 = vmatmul.mubr.f32.gmra.mxu0 %v6113
      %v6382 = vpop.f32.mrf.mxu0
      %v6383 = vadd.f32 0.0, %v6382
      %v6384 = vpop.f32.mrf.mxu0
      %6385 = vmatprep.mubr.f32.mxu0 0.0
      %6386 = vmatmul.mubr.f32.gmra.mxu0 %v6116
      %v6387 = vpop.f32.mrf.mxu0
      %v6388 = vadd.f32 0.0, %v6387
      %v6389 = vpop.f32.mrf.mxu0
      %6390 = vmatprep.mubr.f32.mxu0 0.0
      %6391 = vmatmul.mubr.f32.gmra.mxu0 %v6119
      %v6392 = vpop.f32.mrf.mxu0
      %v6393 = vadd.f32 0.0, %v6392
      %v6394 = vpop.f32.mrf.mxu0
      %6395 = vmatprep.mubr.f32.mxu0 0.0
      %6396 = vmatmul.mubr.f32.gmra.mxu0 %v6122
      %v6397 = vpop.f32.mrf.mxu0
      %v6398 = vadd.f32 0.0, %v6397
      %v6399 = vpop.f32.mrf.mxu0
      %6400 = vmatprep.mubr.f32.mxu0 0.0
      %6401 = vmatmul.mubr.f32.gmra.mxu0 %v6125
      %v6402 = vpop.f32.mrf.mxu0
      %v6403 = vadd.f32 0.0, %v6402
      %v6404 = vpop.f32.mrf.mxu0
      %6405 = vmatprep.mubr.f32.mxu0 0.0
      %6406 = vmatmul.mubr.f32.gmra.mxu0 %v6128
      %v6407 = vpop.f32.mrf.mxu0
      %v6408 = vadd.f32 0.0, %v6407
      %v6409 = vpop.f32.mrf.mxu0
      %6410 = vmatprep.mubr.f32.mxu0 0.0
      %6411 = vmatmul.mubr.f32.gmra.mxu0 %v6131
      %v6412 = vpop.f32.mrf.mxu0
      %v6413 = vadd.f32 0.0, %v6412
      %v6414 = vpop.f32.mrf.mxu0
      %6415 = vmatprep.mubr.f32.mxu0 0.0
      %6416 = vmatmul.mubr.f32.gmra.mxu0 %v6134
      %v6417 = vpop.f32.mrf.mxu0
      %v6418 = vadd.f32 0.0, %v6417
      %v6419 = vpop.f32.mrf.mxu0
      %6420 = vmatprep.mubr.f32.mxu0 0.0
      %6421 = vmatmul.mubr.f32.gmra.mxu0 %v6137
      %v6422 = vpop.f32.mrf.mxu0
      %v6423 = vadd.f32 0.0, %v6422
      %v6424 = vpop.f32.mrf.mxu0
      %6425 = vmatprep.mubr.f32.mxu0 0.0
      %6426 = vmatmul.mubr.f32.gmra.mxu0 %v6140
      %v6427 = vpop.f32.mrf.mxu0
      %v6428 = vadd.f32 0.0, %v6427
      %v6429 = vpop.f32.mrf.mxu0
      %6430 = vmatprep.mubr.f32.mxu0 0.0
      %6431 = vmatmul.mubr.f32.gmra.mxu0 %v6143
      %v6432 = vpop.f32.mrf.mxu0
      %v6433 = vadd.f32 0.0, %v6432
      %v6434 = vpop.f32.mrf.mxu0
      %6435 = vmatprep.mubr.f32.mxu0 0.0
      %6436 = vmatmul.mubr.f32.gmra.mxu0 %v6146
      %v6437 = vpop.f32.mrf.mxu0
      %v6438 = vadd.f32 0.0, %v6437
      %v6439 = vpop.f32.mrf.mxu0
      %6440 = vmatprep.mubr.f32.mxu0 0.0
      %6441 = vmatmul.mubr.f32.gmra.mxu0 %v6149
      %v6442 = vpop.f32.mrf.mxu0
      %v6443 = vadd.f32 0.0, %v6442
      %v6444 = vpop.f32.mrf.mxu0
      %6445 = vmatprep.mubr.f32.mxu0 0.0
      %6446 = vmatmul.mubr.f32.gmra.mxu0 %v6152
      %v6447 = vpop.f32.mrf.mxu0
      %v6448 = vadd.f32 0.0, %v6447
      %v6449 = vpop.f32.mrf.mxu0
      %6450 = vmatprep.mubr.f32.mxu0 0.0
      %6451 = vmatmul.mubr.f32.gmra.mxu0 %v6155
      %v6452 = vpop.f32.mrf.mxu0
      %v6453 = vadd.f32 0.0, %v6452
      %v6454 = vpop.f32.mrf.mxu0
      %6455 = vmatprep.mubr.f32.mxu0 0.0
      %6456 = vmatmul.mubr.f32.gmra.mxu0 %v6158
      %v6457 = vpop.f32.mrf.mxu0
      %v6458 = vadd.f32 0.0, %v6457
      %v6459 = vpop.f32.mrf.mxu0
      %6460 = vmatprep.mubr.f32.mxu0 0.0
      %6461 = vmatmul.mubr.f32.gmra.mxu0 %v6161
      %v6462 = vpop.f32.mrf.mxu0
      %v6463 = vadd.f32 0.0, %v6462
      %v6464 = vpop.f32.mrf.mxu0
      %6465 = vmatprep.mubr.f32.mxu0 0.0
      %6466 = vmatmul.mubr.f32.gmra.mxu0 %v6164
      %v6467 = vpop.f32.mrf.mxu0
      %v6468 = vadd.f32 0.0, %v6467
      %v6469 = vpop.f32.mrf.mxu0
      %6470 = vmatprep.mubr.f32.mxu0 0.0
      %6471 = vmatmul.mubr.f32.gmra.mxu0 %v6167
      %v6472 = vpop.f32.mrf.mxu0
      %v6473 = vadd.f32 0.0, %v6472
      %v6474 = vpop.f32.mrf.mxu0
      %6475 = vmatprep.mubr.f32.mxu0 0.0
      %6476 = vmatmul.mubr.f32.gmra.mxu0 %v6170
      %v6477 = vpop.f32.mrf.mxu0
      %v6478 = vadd.f32 0.0, %v6477
      %v6479 = vpop.f32.mrf.mxu0
      %6480 = vmatprep.mubr.f32.mxu0 0.0
      %6481 = vmatmul.mubr.f32.gmra.mxu0 %v6173
      %v6482 = vpop.f32.mrf.mxu0
      %v6483 = vadd.f32 0.0, %v6482
      %v6484 = vpop.f32.mrf.mxu0
      %6485 = vmatprep.mubr.f32.mxu0 0.0
      %6486 = vmatmul.mubr.f32.gmra.mxu0 %v6176
      %v6487 = vpop.f32.mrf.mxu0
      %v6488 = vadd.f32 0.0, %v6487
      %v6489 = vpop.f32.mrf.mxu0
      %6490 = vmatprep.mubr.f32.mxu0 0.0
      %6491 = vmatmul.mubr.f32.gmra.mxu0 %v6179
      %v6492 = vpop.f32.mrf.mxu0
      %v6493 = vadd.f32 0.0, %v6492
      %v6494 = vpop.f32.mrf.mxu0
      %6495 = vmatprep.mubr.f32.mxu0 0.0
      %6496 = vmatmul.mubr.f32.gmra.mxu0 %v6182
      %v6497 = vpop.f32.mrf.mxu0
      %v6498 = vadd.f32 0.0, %v6497
      %v6499 = vpop.f32.mrf.mxu0
      %6500 = vmatprep.mubr.f32.mxu0 0.0
      %6501 = vmatmul.mubr.f32.gmra.mxu0 %v6185
      %v6502 = vpop.f32.mrf.mxu0
      %v6503 = vadd.f32 0.0, %v6502
      %v6504 = vpop.f32.mrf.mxu0
      %6505 = vmatprep.mubr.f32.mxu0 0.0
      %6506 = vmatmul.mubr.f32.gmra.mxu0 %v6188
      %v6507 = vpop.f32.mrf.mxu0
      %v6508 = vadd.f32 0.0, %v6507
      %v6509 = vpop.f32.mrf.mxu0
      %6510 = vmatprep.mubr.f32.mxu0 0.0
      %6511 = vmatmul.mubr.f32.gmra.mxu0 %v6191
      %v6512 = vpop.f32.mrf.mxu0
      %v6513 = vadd.f32 0.0, %v6512
      %v6514 = vpop.f32.mrf.mxu0
      %6515 = vmatprep.mubr.f32.mxu0 0.0
      %6516 = vmatmul.mubr.f32.gmra.mxu0 %v6194
      %v6517 = vpop.f32.mrf.mxu0
      %v6518 = vadd.f32 0.0, %v6517
      %v6519 = vpop.f32.mrf.mxu0
      %6520 = vmatprep.mubr.f32.mxu0 0.0
      %6521 = vmatmul.mubr.f32.gmra.mxu0 %v6197
      %v6522 = vpop.f32.mrf.mxu0
      %v6523 = vadd.f32 0.0, %v6522
      %v6524 = vpop.f32.mrf.mxu0
      %6525 = vmatprep.mubr.f32.mxu0 0.0
      %6526 = vmatmul.mubr.f32.gmra.mxu0 %v6200
      %v6527 = vpop.f32.mrf.mxu0
      %v6528 = vadd.f32 0.0, %v6527
      %v6529 = vpop.f32.mrf.mxu0
      %6530 = vmatprep.mubr.f32.mxu0 0.0
      %6531 = vmatmul.mubr.f32.gmra.mxu0 %v6203
      %v6532 = vpop.f32.mrf.mxu0
      %v6533 = vadd.f32 0.0, %v6532
      %v6534 = vpop.f32.mrf.mxu0
      %6535 = vmatprep.mubr.f32.mxu0 0.0
      %6536 = vmatmul.mubr.f32.gmra.mxu0 %v6206
      %v6537 = vpop.f32.mrf.mxu0
      %v6538 = vadd.f32 0.0, %v6537
      %v6539 = vpop.f32.mrf.mxu0
      %6540 = vmatprep.mubr.f32.mxu0 0.0
      %6541 = vmatmul.mubr.f32.gmra.mxu0 %v6209
      %v6542 = vpop.f32.mrf.mxu0
      %v6543 = vadd.f32 0.0, %v6542
      %v6544 = vpop.f32.mrf.mxu0
      %6545 = vmatprep.mubr.f32.mxu0 0.0
      %6546 = vmatmul.mubr.f32.gmra.mxu0 %v6212
      %v6547 = vpop.f32.mrf.mxu0
      %v6548 = vadd.f32 0.0, %v6547
      %v6549 = vpop.f32.mrf.mxu0
      %6550 = vmatprep.mubr.f32.mxu0 0.0
      %6551 = vmatmul.mubr.f32.gmra.mxu0 %v6215
      %v6552 = vpop.f32.mrf.mxu0
      %v6553 = vadd.f32 0.0, %v6552
      %v6554 = vpop.f32.mrf.mxu0
      %6555 = vmatprep.mubr.f32.mxu0 0.0
      %6556 = vmatmul.mubr.f32.gmra.mxu0 %v6218
      %v6557 = vpop.f32.mrf.mxu0
      %v6558 = vadd.f32 0.0, %v6557
      %v6559 = vpop.f32.mrf.mxu0
      %6560 = vmatprep.mubr.f32.mxu0 0.0
      %6561 = vmatmul.mubr.f32.gmra.mxu0 %v6221
      %v6562 = vpop.f32.mrf.mxu0
      %v6563 = vadd.f32 0.0, %v6562
      %v6564 = vpop.f32.mrf.mxu0
      %6565 = vmatprep.mubr.f32.mxu0 0.0
      %6566 = vmatmul.mubr.f32.gmra.mxu0 %v6224
      %v6567 = vpop.f32.mrf.mxu0
      %v6568 = vadd.f32 0.0, %v6567
      %v6569 = vpop.f32.mrf.mxu0
      %6570 = vmatprep.mubr.f32.mxu0 0.0
      %6571 = vmatmul.mubr.f32.gmra.mxu0 %v6227
      %v6572 = vpop.f32.mrf.mxu0
      %v6573 = vadd.f32 0.0, %v6572
      %v6574 = vpop.f32.mrf.mxu0
      %6575 = vmatprep.mubr.f32.mxu0 0.0
      %6576 = vmatmul.mubr.f32.gmra.mxu0 %v6230
      %v6577 = vpop.f32.mrf.mxu0
      %v6578 = vadd.f32 0.0, %v6577
      %v6579 = vpop.f32.mrf.mxu0
      %6580 = vmatprep.mubr.f32.mxu0 0.0
      %6581 = vmatmul.mubr.f32.gmra.mxu0 %v6233
      %v6582 = vpop.f32.mrf.mxu0
      %v6583 = vadd.f32 0.0, %v6582
      %v6584 = vpop.f32.mrf.mxu0
      %6585 = vmatprep.mubr.f32.mxu0 0.0
      %6586 = vmatmul.mubr.f32.gmra.mxu0 %v6236
      %v6587 = vpop.f32.mrf.mxu0
      %v6588 = vadd.f32 0.0, %v6587
      %v6589 = vpop.f32.mrf.mxu0
      %6590 = vmatprep.mubr.f32.mxu0 0.0
      %6591 = vmatmul.mubr.f32.gmra.mxu0 %v6239
      %v6592 = vpop.f32.mrf.mxu0
      %v6593 = vadd.f32 0.0, %v6592
      %v6594 = vpop.f32.mrf.mxu0
      %6595 = vmatprep.mubr.f32.mxu0 0.0
      %6596 = vmatmul.mubr.f32.gmra.mxu0 %v6242
      %v6597 = vpop.f32.mrf.mxu0
      %v6598 = vadd.f32 0.0, %v6597
      %v6599 = vpop.f32.mrf.mxu0
      %6600 = vmatprep.mubr.f32.mxu0 0.0
      %6601 = vmatmul.mubr.f32.gmra.mxu0 %v6245
      %v6602 = vpop.f32.mrf.mxu0
      %v6603 = vadd.f32 0.0, %v6602
      %v6604 = vpop.f32.mrf.mxu0
      %6605 = vmatprep.mubr.f32.mxu0 0.0
      %6606 = vmatmul.mubr.f32.gmra.mxu0 %v6248
      %v6607 = vpop.f32.mrf.mxu0
      %v6608 = vadd.f32 0.0, %v6607
      %v6609 = vpop.f32.mrf.mxu0
      %6610 = vmatprep.mubr.f32.mxu0 0.0
      %6611 = vmatmul.mubr.f32.gmra.mxu0 %v6251
      %v6612 = vpop.f32.mrf.mxu0
      %v6613 = vadd.f32 0.0, %v6612
      %v6614 = vpop.f32.mrf.mxu0
      %6615 = vmatprep.mubr.f32.mxu0 0.0
      %6616 = vmatmul.mubr.f32.gmra.mxu0 %v6254
      %v6617 = vpop.f32.mrf.mxu0
      %v6618 = vadd.f32 0.0, %v6617
      %v6619 = vpop.f32.mrf.mxu0
      %6620 = vmatprep.mubr.f32.mxu0 0.0
      %6621 = vmatmul.mubr.f32.gmra.mxu0 %v6257
      %v6622 = vpop.f32.mrf.mxu0
      %v6623 = vadd.f32 0.0, %v6622
      %v6624 = vpop.f32.mrf.mxu0
      %6625 = vmatprep.mubr.f32.mxu0 0.0
      %6626 = vmatmul.mubr.f32.gmra.mxu0 %v6260
      %v6627 = vpop.f32.mrf.mxu0
      %v6628 = vadd.f32 0.0, %v6627
      %v6629 = vpop.f32.mrf.mxu0
      %6630 = vmatprep.mubr.f32.mxu0 0.0
      %6631 = vmatmul.mubr.f32.gmra.mxu0 %v6263
      %v6632 = vpop.f32.mrf.mxu0
      %v6633 = vadd.f32 0.0, %v6632
      %v6634 = vpop.f32.mrf.mxu0
      %6635 = vmatprep.mubr.f32.mxu0 0.0
      %6636 = vmatmul.mubr.f32.gmra.mxu0 %v6266
      %v6637 = vpop.f32.mrf.mxu0
      %v6638 = vadd.f32 0.0, %v6637
      %v6639 = vpop.f32.mrf.mxu0
      %6640 = vmatprep.mubr.f32.mxu0 0.0
      %6641 = vmatmul.mubr.f32.gmra.mxu0 %v6269
      %v6642 = vpop.f32.mrf.mxu0
      %v6643 = vadd.f32 0.0, %v6642
      %v6644 = vpop.f32.mrf.mxu0
      %6645 = vmatprep.mubr.f32.mxu0 0.0
      %6646 = vmatmul.mubr.f32.gmra.mxu0 %v6272
      %v6647 = vpop.f32.mrf.mxu0
      %v6648 = vadd.f32 0.0, %v6647
      %v6649 = vpop.f32.mrf.mxu0
      %6650 = vmatprep.mubr.f32.mxu0 0.0
      %6651 = vmatmul.mubr.f32.gmra.mxu0 %v6275
      %v6652 = vpop.f32.mrf.mxu0
      %v6653 = vadd.f32 0.0, %v6652
      %v6654 = vpop.f32.mrf.mxu0
      %6655 = vmatprep.mubr.f32.mxu0 0.0
      %6656 = vmatmul.mubr.f32.gmra.mxu0 %v6278
      %v6657 = vpop.f32.mrf.mxu0
      %v6658 = vadd.f32 0.0, %v6657
      %v6659 = vpop.f32.mrf.mxu0
      %6660 = vmatprep.mubr.f32.mxu0 0.0
      %6661 = vmatmul.mubr.f32.gmra.mxu0 %v6281
      %v6662 = vpop.f32.mrf.mxu0
      %v6663 = vadd.f32 0.0, %v6662
      %v6664 = vpop.f32.mrf.mxu0
      %6665 = vmatprep.mubr.f32.mxu0 0.0
      %6666 = vmatmul.mubr.f32.gmra.mxu0 %v6284
      %v6667 = vpop.f32.mrf.mxu0
      %v6668 = vadd.f32 0.0, %v6667
      %v6669 = vpop.f32.mrf.mxu0
      %6670 = vdwg.mxu0
      %v6671 = vmax.f32 %v6353, 0.0
      %v6672 = vmax.f32 %v6358, 0.0
      %v6673 = vmax.f32 %v6363, 0.0
      %v6674 = vmax.f32 %v6368, 0.0
      %v6675 = vmax.f32 %v6373, 0.0
      %v6676 = vmax.f32 %v6378, 0.0
      %v6677 = vmax.f32 %v6383, 0.0
      %v6678 = vmax.f32 %v6388, 0.0
      %v6679 = vmax.f32 %v6393, 0.0
      %v6680 = vmax.f32 %v6398, 0.0
      %v6681 = vmax.f32 %v6403, 0.0
      %v6682 = vmax.f32 %v6408, 0.0
      %v6683 = vmax.f32 %v6413, 0.0
      %v6684 = vmax.f32 %v6418, 0.0
      %v6685 = vmax.f32 %v6423, 0.0
      %v6686 = vmax.f32 %v6428, 0.0
      %v6687 = vmax.f32 %v6433, 0.0
      %v6688 = vmax.f32 %v6438, 0.0
      %v6689 = vmax.f32 %v6443, 0.0
      %v6690 = vmax.f32 %v6448, 0.0
      %v6691 = vmax.f32 %v6453, 0.0
      %v6692 = vmax.f32 %v6458, 0.0
      %v6693 = vmax.f32 %v6463, 0.0
      %v6694 = vmax.f32 %v6468, 0.0
      %v6695 = vmax.f32 %v6473, 0.0
      %v6696 = vmax.f32 %v6478, 0.0
      %v6697 = vmax.f32 %v6483, 0.0
      %v6698 = vmax.f32 %v6488, 0.0
      %v6699 = vmax.f32 %v6493, 0.0
      %v6700 = vmax.f32 %v6498, 0.0
      %v6701 = vmax.f32 %v6503, 0.0
      %v6702 = vmax.f32 %v6508, 0.0
      %v6703 = vmax.f32 %v6513, 0.0
      %v6704 = vmax.f32 %v6518, 0.0
      %v6705 = vmax.f32 %v6523, 0.0
      %v6706 = vmax.f32 %v6528, 0.0
      %v6707 = vmax.f32 %v6533, 0.0
      %v6708 = vmax.f32 %v6538, 0.0
      %v6709 = vmax.f32 %v6543, 0.0
      %v6710 = vmax.f32 %v6548, 0.0
      %v6711 = vmax.f32 %v6553, 0.0
      %v6712 = vmax.f32 %v6558, 0.0
      %v6713 = vmax.f32 %v6563, 0.0
      %v6714 = vmax.f32 %v6568, 0.0
      %v6715 = vmax.f32 %v6573, 0.0
      %v6716 = vmax.f32 %v6578, 0.0
      %v6717 = vmax.f32 %v6583, 0.0
      %v6718 = vmax.f32 %v6588, 0.0
      %v6719 = vmax.f32 %v6593, 0.0
      %v6720 = vmax.f32 %v6598, 0.0
      %v6721 = vmax.f32 %v6603, 0.0
      %v6722 = vmax.f32 %v6608, 0.0
      %v6723 = vmax.f32 %v6613, 0.0
      %v6724 = vmax.f32 %v6618, 0.0
      %v6725 = vmax.f32 %v6623, 0.0
      %v6726 = vmax.f32 %v6628, 0.0
      %v6727 = vmax.f32 %v6633, 0.0
      %v6728 = vmax.f32 %v6638, 0.0
      %v6729 = vmax.f32 %v6643, 0.0
      %v6730 = vmax.f32 %v6648, 0.0
      %v6731 = vmax.f32 %v6653, 0.0
      %v6732 = vmax.f32 %v6658, 0.0
      %v6733 = vmax.f32 %v6663, 0.0
      %v6734 = vmax.f32 %v6668, 0.0
      %v6735 = vld [vmem:[%s6] sm:$0xff]
      %v6736 = vld [vmem:[%s6 + $0x8] sm:$0xff]
      %v6737 = vld [vmem:[%s6 + $0x10] sm:$0xff]
      %v6738 = vld [vmem:[%s6 + $0x18] sm:$0xff]
      %v6740 = vsel %vm6093, %v6671, 0
      %v6743 = vsel %vm6093, %v6672, 0
      %v6746 = vsel %vm6093, %v6673, 0
      %v6749 = vsel %vm6093, %v6674, 0
      %v6752 = vsel %vm6093, %v6675, 0
      %v6755 = vsel %vm6093, %v6676, 0
      %v6758 = vsel %vm6093, %v6677, 0
      %v6761 = vsel %vm6093, %v6678, 0
      %v6764 = vsel %vm6093, %v6679, 0
      %v6767 = vsel %vm6093, %v6680, 0
      %v6770 = vsel %vm6093, %v6681, 0
      %v6773 = vsel %vm6093, %v6682, 0
      %v6776 = vsel %vm6093, %v6683, 0
      %v6779 = vsel %vm6093, %v6684, 0
      %v6782 = vsel %vm6093, %v6685, 0
      %v6785 = vsel %vm6093, %v6686, 0
      %v6788 = vsel %vm6093, %v6687, 0
      %v6791 = vsel %vm6093, %v6688, 0
      %v6794 = vsel %vm6093, %v6689, 0
      %v6797 = vsel %vm6093, %v6690, 0
      %v6800 = vsel %vm6093, %v6691, 0
      %v6803 = vsel %vm6093, %v6692, 0
      %v6806 = vsel %vm6093, %v6693, 0
      %v6809 = vsel %vm6093, %v6694, 0
      %v6812 = vsel %vm6093, %v6695, 0
      %v6815 = vsel %vm6093, %v6696, 0
      %v6818 = vsel %vm6093, %v6697, 0
      %v6821 = vsel %vm6093, %v6698, 0
      %v6824 = vsel %vm6093, %v6699, 0
      %v6827 = vsel %vm6093, %v6700, 0
      %v6830 = vsel %vm6093, %v6701, 0
      %v6833 = vsel %vm6093, %v6702, 0
      %v6836 = vsel %vm6093, %v6703, 0
      %v6839 = vsel %vm6093, %v6704, 0
      %v6842 = vsel %vm6093, %v6705, 0
      %v6845 = vsel %vm6093, %v6706, 0
      %v6848 = vsel %vm6093, %v6707, 0
      %v6851 = vsel %vm6093, %v6708, 0
      %v6854 = vsel %vm6093, %v6709, 0
      %v6857 = vsel %vm6093, %v6710, 0
      %v6860 = vsel %vm6093, %v6711, 0
      %v6863 = vsel %vm6093, %v6712, 0
      %v6866 = vsel %vm6093, %v6713, 0
      %v6869 = vsel %vm6093, %v6714, 0
      %v6872 = vsel %vm6093, %v6715, 0
      %v6875 = vsel %vm6093, %v6716, 0
      %v6878 = vsel %vm6093, %v6717, 0
      %v6881 = vsel %vm6093, %v6718, 0
      %v6884 = vsel %vm6093, %v6719, 0
      %v6887 = vsel %vm6093, %v6720, 0
      %v6890 = vsel %vm6093, %v6721, 0
      %v6893 = vsel %vm6093, %v6722, 0
      %v6896 = vsel %vm6093, %v6723, 0
      %v6899 = vsel %vm6093, %v6724, 0
      %v6902 = vsel %vm6093, %v6725, 0
      %v6905 = vsel %vm6093, %v6726, 0
      %v6908 = vsel %vm6093, %v6727, 0
      %v6911 = vsel %vm6093, %v6728, 0
      %v6914 = vsel %vm6093, %v6729, 0
      %v6917 = vsel %vm6093, %v6730, 0
      %v6920 = vsel %vm6093, %v6731, 0
      %v6923 = vsel %vm6093, %v6732, 0
      %v6926 = vsel %vm6093, %v6733, 0
      %v6929 = vsel %vm6093, %v6734, 0
      %6931 = vmatprep.subr.mxu0 0.0
      %6932 = vmatpush1.msra.mxu0 0.0
      %6933 = vmatprep.subr.mxu0 0.0
      %6934 = vmatpush1.msra.mxu0 0.0
      %6935 = vmatprep.subr.mxu0 0.0
      %6936 = vmatpush1.msra.mxu0 0.0
      %6937 = vmatprep.subr.mxu0 0.0
      %6938 = vmatpush1.msra.mxu0 0.0
      %6939 = vmatprep.subr.mxu0 0.0
      %6940 = vmatpush1.msra.mxu0 0.0
      %6941 = vmatprep.subr.mxu0 0.0
      %6942 = vmatpush1.msra.mxu0 0.0
      %6943 = vmatprep.subr.mxu0 0.0
      %6944 = vmatpush1.msra.mxu0 0.0
      %6945 = vmatprep.subr.mxu0 0.0
      %6946 = vmatpush1.msra.mxu0 0.0
      %6947 = vmatprep.subr.mxu0 0.0
      %6948 = vmatpush1.msra.mxu0 0.0
      %6949 = vmatprep.subr.mxu0 0.0
      %6950 = vmatpush1.msra.mxu0 0.0
      %6951 = vmatprep.subr.mxu0 0.0
      %6952 = vmatpush1.msra.mxu0 0.0
      %6953 = vmatprep.subr.mxu0 0.0
      %6954 = vmatpush1.msra.mxu0 0.0
      %6955 = vmatprep.subr.mxu0 0.0
      %6956 = vmatpush1.msra.mxu0 %v6738
      %6957 = vmatprep.subr.mxu0 0.0
      %6958 = vmatpush1.msra.mxu0 %v6737
      %6959 = vmatprep.subr.mxu0 0.0
      %6960 = vmatpush1.msra.mxu0 %v6736
      %6961 = vmatprep.subr.mxu0 0.0
      %6962 = vmatpush1.msra.mxu0 %v6735
      %6963 = vmatprep.subr.mxu0 0.0
      %6964 = vmatpush2.msra.mxu0 0.0
      %6965 = vmatprep.subr.mxu0 0.0
      %6966 = vmatpush2.msra.mxu0 0.0
      %6967 = vmatprep.subr.mxu0 0.0
      %6968 = vmatpush2.msra.mxu0 0.0
      %6969 = vmatprep.subr.mxu0 0.0
      %6970 = vmatpush2.msra.mxu0 0.0
      %6971 = vmatprep.subr.mxu0 0.0
      %6972 = vmatpush2.msra.mxu0 0.0
      %6973 = vmatprep.subr.mxu0 0.0
      %6974 = vmatpush2.msra.mxu0 0.0
      %6975 = vmatprep.subr.mxu0 0.0
      %6976 = vmatpush2.msra.mxu0 0.0
      %6977 = vmatprep.subr.mxu0 0.0
      %6978 = vmatpush2.msra.mxu0 0.0
      %6979 = vmatprep.subr.mxu0 0.0
      %6980 = vmatpush2.msra.mxu0 0.0
      %6981 = vmatprep.subr.mxu0 0.0
      %6982 = vmatpush2.msra.mxu0 0.0
      %6983 = vmatprep.subr.mxu0 0.0
      %6984 = vmatpush2.msra.mxu0 0.0
      %6985 = vmatprep.subr.mxu0 0.0
      %6986 = vmatpush2.msra.mxu0 0.0
      %6987 = vmatprep.subr.mxu0 0.0
      %6988 = vmatpush2.msra.mxu0 0.0
      %6989 = vmatprep.subr.mxu0 0.0
      %6990 = vmatpush2.msra.mxu0 0.0
      %6991 = vmatprep.subr.mxu0 0.0
      %6992 = vmatpush2.msra.mxu0 0.0
      %6993 = vmatprep.subr.mxu0 0.0
      %6994 = vmatpush2.msra.mxu0 0.0
      %6995 = vmatprep.mubr.f32.mxu0 0.0
      %6996 = vmatmul.mubr.f32.gmra.mxu0 %v6740
      %v6997 = vpop.f32.mrf.mxu0
      %v6998 = vadd.f32 0.0, %v6997
      %v6999 = vpop.f32.mrf.mxu0
      %7000 = vmatprep.mubr.f32.mxu0 0.0
      %7001 = vmatmul.mubr.f32.gmra.mxu0 %v6743
      %v7002 = vpop.f32.mrf.mxu0
      %v7003 = vadd.f32 0.0, %v7002
      %v7004 = vpop.f32.mrf.mxu0
      %7005 = vmatprep.mubr.f32.mxu0 0.0
      %7006 = vmatmul.mubr.f32.gmra.mxu0 %v6746
      %v7007 = vpop.f32.mrf.mxu0
      %v7008 = vadd.f32 0.0, %v7007
      %v7009 = vpop.f32.mrf.mxu0
      %7010 = vmatprep.mubr.f32.mxu0 0.0
      %7011 = vmatmul.mubr.f32.gmra.mxu0 %v6749
      %v7012 = vpop.f32.mrf.mxu0
      %v7013 = vadd.f32 0.0, %v7012
      %v7014 = vpop.f32.mrf.mxu0
      %7015 = vmatprep.mubr.f32.mxu0 0.0
      %7016 = vmatmul.mubr.f32.gmra.mxu0 %v6752
      %v7017 = vpop.f32.mrf.mxu0
      %v7018 = vadd.f32 0.0, %v7017
      %v7019 = vpop.f32.mrf.mxu0
      %7020 = vmatprep.mubr.f32.mxu0 0.0
      %7021 = vmatmul.mubr.f32.gmra.mxu0 %v6755
      %v7022 = vpop.f32.mrf.mxu0
      %v7023 = vadd.f32 0.0, %v7022
      %v7024 = vpop.f32.mrf.mxu0
      %7025 = vmatprep.mubr.f32.mxu0 0.0
      %7026 = vmatmul.mubr.f32.gmra.mxu0 %v6758
      %v7027 = vpop.f32.mrf.mxu0
      %v7028 = vadd.f32 0.0, %v7027
      %v7029 = vpop.f32.mrf.mxu0
      %7030 = vmatprep.mubr.f32.mxu0 0.0
      %7031 = vmatmul.mubr.f32.gmra.mxu0 %v6761
      %v7032 = vpop.f32.mrf.mxu0
      %v7033 = vadd.f32 0.0, %v7032
      %v7034 = vpop.f32.mrf.mxu0
      %7035 = vmatprep.mubr.f32.mxu0 0.0
      %7036 = vmatmul.mubr.f32.gmra.mxu0 %v6764
      %v7037 = vpop.f32.mrf.mxu0
      %v7038 = vadd.f32 0.0, %v7037
      %v7039 = vpop.f32.mrf.mxu0
      %7040 = vmatprep.mubr.f32.mxu0 0.0
      %7041 = vmatmul.mubr.f32.gmra.mxu0 %v6767
      %v7042 = vpop.f32.mrf.mxu0
      %v7043 = vadd.f32 0.0, %v7042
      %v7044 = vpop.f32.mrf.mxu0
      %7045 = vmatprep.mubr.f32.mxu0 0.0
      %7046 = vmatmul.mubr.f32.gmra.mxu0 %v6770
      %v7047 = vpop.f32.mrf.mxu0
      %v7048 = vadd.f32 0.0, %v7047
      %v7049 = vpop.f32.mrf.mxu0
      %7050 = vmatprep.mubr.f32.mxu0 0.0
      %7051 = vmatmul.mubr.f32.gmra.mxu0 %v6773
      %v7052 = vpop.f32.mrf.mxu0
      %v7053 = vadd.f32 0.0, %v7052
      %v7054 = vpop.f32.mrf.mxu0
      %7055 = vmatprep.mubr.f32.mxu0 0.0
      %7056 = vmatmul.mubr.f32.gmra.mxu0 %v6776
      %v7057 = vpop.f32.mrf.mxu0
      %v7058 = vadd.f32 0.0, %v7057
      %v7059 = vpop.f32.mrf.mxu0
      %7060 = vmatprep.mubr.f32.mxu0 0.0
      %7061 = vmatmul.mubr.f32.gmra.mxu0 %v6779
      %v7062 = vpop.f32.mrf.mxu0
      %v7063 = vadd.f32 0.0, %v7062
      %v7064 = vpop.f32.mrf.mxu0
      %7065 = vmatprep.mubr.f32.mxu0 0.0
      %7066 = vmatmul.mubr.f32.gmra.mxu0 %v6782
      %v7067 = vpop.f32.mrf.mxu0
      %v7068 = vadd.f32 0.0, %v7067
      %v7069 = vpop.f32.mrf.mxu0
      %7070 = vmatprep.mubr.f32.mxu0 0.0
      %7071 = vmatmul.mubr.f32.gmra.mxu0 %v6785
      %v7072 = vpop.f32.mrf.mxu0
      %v7073 = vadd.f32 0.0, %v7072
      %v7074 = vpop.f32.mrf.mxu0
      %7075 = vmatprep.mubr.f32.mxu0 0.0
      %7076 = vmatmul.mubr.f32.gmra.mxu0 %v6788
      %v7077 = vpop.f32.mrf.mxu0
      %v7078 = vadd.f32 0.0, %v7077
      %v7079 = vpop.f32.mrf.mxu0
      %7080 = vmatprep.mubr.f32.mxu0 0.0
      %7081 = vmatmul.mubr.f32.gmra.mxu0 %v6791
      %v7082 = vpop.f32.mrf.mxu0
      %v7083 = vadd.f32 0.0, %v7082
      %v7084 = vpop.f32.mrf.mxu0
      %7085 = vmatprep.mubr.f32.mxu0 0.0
      %7086 = vmatmul.mubr.f32.gmra.mxu0 %v6794
      %v7087 = vpop.f32.mrf.mxu0
      %v7088 = vadd.f32 0.0, %v7087
      %v7089 = vpop.f32.mrf.mxu0
      %7090 = vmatprep.mubr.f32.mxu0 0.0
      %7091 = vmatmul.mubr.f32.gmra.mxu0 %v6797
      %v7092 = vpop.f32.mrf.mxu0
      %v7093 = vadd.f32 0.0, %v7092
      %v7094 = vpop.f32.mrf.mxu0
      %7095 = vmatprep.mubr.f32.mxu0 0.0
      %7096 = vmatmul.mubr.f32.gmra.mxu0 %v6800
      %v7097 = vpop.f32.mrf.mxu0
      %v7098 = vadd.f32 0.0, %v7097
      %v7099 = vpop.f32.mrf.mxu0
      %7100 = vmatprep.mubr.f32.mxu0 0.0
      %7101 = vmatmul.mubr.f32.gmra.mxu0 %v6803
      %v7102 = vpop.f32.mrf.mxu0
      %v7103 = vadd.f32 0.0, %v7102
      %v7104 = vpop.f32.mrf.mxu0
      %7105 = vmatprep.mubr.f32.mxu0 0.0
      %7106 = vmatmul.mubr.f32.gmra.mxu0 %v6806
      %v7107 = vpop.f32.mrf.mxu0
      %v7108 = vadd.f32 0.0, %v7107
      %v7109 = vpop.f32.mrf.mxu0
      %7110 = vmatprep.mubr.f32.mxu0 0.0
      %7111 = vmatmul.mubr.f32.gmra.mxu0 %v6809
      %v7112 = vpop.f32.mrf.mxu0
      %v7113 = vadd.f32 0.0, %v7112
      %v7114 = vpop.f32.mrf.mxu0
      %7115 = vmatprep.mubr.f32.mxu0 0.0
      %7116 = vmatmul.mubr.f32.gmra.mxu0 %v6812
      %v7117 = vpop.f32.mrf.mxu0
      %v7118 = vadd.f32 0.0, %v7117
      %v7119 = vpop.f32.mrf.mxu0
      %7120 = vmatprep.mubr.f32.mxu0 0.0
      %7121 = vmatmul.mubr.f32.gmra.mxu0 %v6815
      %v7122 = vpop.f32.mrf.mxu0
      %v7123 = vadd.f32 0.0, %v7122
      %v7124 = vpop.f32.mrf.mxu0
      %7125 = vmatprep.mubr.f32.mxu0 0.0
      %7126 = vmatmul.mubr.f32.gmra.mxu0 %v6818
      %v7127 = vpop.f32.mrf.mxu0
      %v7128 = vadd.f32 0.0, %v7127
      %v7129 = vpop.f32.mrf.mxu0
      %7130 = vmatprep.mubr.f32.mxu0 0.0
      %7131 = vmatmul.mubr.f32.gmra.mxu0 %v6821
      %v7132 = vpop.f32.mrf.mxu0
      %v7133 = vadd.f32 0.0, %v7132
      %v7134 = vpop.f32.mrf.mxu0
      %7135 = vmatprep.mubr.f32.mxu0 0.0
      %7136 = vmatmul.mubr.f32.gmra.mxu0 %v6824
      %v7137 = vpop.f32.mrf.mxu0
      %v7138 = vadd.f32 0.0, %v7137
      %v7139 = vpop.f32.mrf.mxu0
      %7140 = vmatprep.mubr.f32.mxu0 0.0
      %7141 = vmatmul.mubr.f32.gmra.mxu0 %v6827
      %v7142 = vpop.f32.mrf.mxu0
      %v7143 = vadd.f32 0.0, %v7142
      %v7144 = vpop.f32.mrf.mxu0
      %7145 = vmatprep.mubr.f32.mxu0 0.0
      %7146 = vmatmul.mubr.f32.gmra.mxu0 %v6830
      %v7147 = vpop.f32.mrf.mxu0
      %v7148 = vadd.f32 0.0, %v7147
      %v7149 = vpop.f32.mrf.mxu0
      %7150 = vmatprep.mubr.f32.mxu0 0.0
      %7151 = vmatmul.mubr.f32.gmra.mxu0 %v6833
      %v7152 = vpop.f32.mrf.mxu0
      %v7153 = vadd.f32 0.0, %v7152
      %v7154 = vpop.f32.mrf.mxu0
      %7155 = vmatprep.mubr.f32.mxu0 0.0
      %7156 = vmatmul.mubr.f32.gmra.mxu0 %v6836
      %v7157 = vpop.f32.mrf.mxu0
      %v7158 = vadd.f32 0.0, %v7157
      %v7159 = vpop.f32.mrf.mxu0
      %7160 = vmatprep.mubr.f32.mxu0 0.0
      %7161 = vmatmul.mubr.f32.gmra.mxu0 %v6839
      %v7162 = vpop.f32.mrf.mxu0
      %v7163 = vadd.f32 0.0, %v7162
      %v7164 = vpop.f32.mrf.mxu0
      %7165 = vmatprep.mubr.f32.mxu0 0.0
      %7166 = vmatmul.mubr.f32.gmra.mxu0 %v6842
      %v7167 = vpop.f32.mrf.mxu0
      %v7168 = vadd.f32 0.0, %v7167
      %v7169 = vpop.f32.mrf.mxu0
      %7170 = vmatprep.mubr.f32.mxu0 0.0
      %7171 = vmatmul.mubr.f32.gmra.mxu0 %v6845
      %v7172 = vpop.f32.mrf.mxu0
      %v7173 = vadd.f32 0.0, %v7172
      %v7174 = vpop.f32.mrf.mxu0
      %7175 = vmatprep.mubr.f32.mxu0 0.0
      %7176 = vmatmul.mubr.f32.gmra.mxu0 %v6848
      %v7177 = vpop.f32.mrf.mxu0
      %v7178 = vadd.f32 0.0, %v7177
      %v7179 = vpop.f32.mrf.mxu0
      %7180 = vmatprep.mubr.f32.mxu0 0.0
      %7181 = vmatmul.mubr.f32.gmra.mxu0 %v6851
      %v7182 = vpop.f32.mrf.mxu0
      %v7183 = vadd.f32 0.0, %v7182
      %v7184 = vpop.f32.mrf.mxu0
      %7185 = vmatprep.mubr.f32.mxu0 0.0
      %7186 = vmatmul.mubr.f32.gmra.mxu0 %v6854
      %v7187 = vpop.f32.mrf.mxu0
      %v7188 = vadd.f32 0.0, %v7187
      %v7189 = vpop.f32.mrf.mxu0
      %7190 = vmatprep.mubr.f32.mxu0 0.0
      %7191 = vmatmul.mubr.f32.gmra.mxu0 %v6857
      %v7192 = vpop.f32.mrf.mxu0
      %v7193 = vadd.f32 0.0, %v7192
      %v7194 = vpop.f32.mrf.mxu0
      %7195 = vmatprep.mubr.f32.mxu0 0.0
      %7196 = vmatmul.mubr.f32.gmra.mxu0 %v6860
      %v7197 = vpop.f32.mrf.mxu0
      %v7198 = vadd.f32 0.0, %v7197
      %v7199 = vpop.f32.mrf.mxu0
      %7200 = vmatprep.mubr.f32.mxu0 0.0
      %7201 = vmatmul.mubr.f32.gmra.mxu0 %v6863
      %v7202 = vpop.f32.mrf.mxu0
      %v7203 = vadd.f32 0.0, %v7202
      %v7204 = vpop.f32.mrf.mxu0
      %7205 = vmatprep.mubr.f32.mxu0 0.0
      %7206 = vmatmul.mubr.f32.gmra.mxu0 %v6866
      %v7207 = vpop.f32.mrf.mxu0
      %v7208 = vadd.f32 0.0, %v7207
      %v7209 = vpop.f32.mrf.mxu0
      %7210 = vmatprep.mubr.f32.mxu0 0.0
      %7211 = vmatmul.mubr.f32.gmra.mxu0 %v6869
      %v7212 = vpop.f32.mrf.mxu0
      %v7213 = vadd.f32 0.0, %v7212
      %v7214 = vpop.f32.mrf.mxu0
      %7215 = vmatprep.mubr.f32.mxu0 0.0
      %7216 = vmatmul.mubr.f32.gmra.mxu0 %v6872
      %v7217 = vpop.f32.mrf.mxu0
      %v7218 = vadd.f32 0.0, %v7217
      %v7219 = vpop.f32.mrf.mxu0
      %7220 = vmatprep.mubr.f32.mxu0 0.0
      %7221 = vmatmul.mubr.f32.gmra.mxu0 %v6875
      %v7222 = vpop.f32.mrf.mxu0
      %v7223 = vadd.f32 0.0, %v7222
      %v7224 = vpop.f32.mrf.mxu0
      %7225 = vmatprep.mubr.f32.mxu0 0.0
      %7226 = vmatmul.mubr.f32.gmra.mxu0 %v6878
      %v7227 = vpop.f32.mrf.mxu0
      %v7228 = vadd.f32 0.0, %v7227
      %v7229 = vpop.f32.mrf.mxu0
      %7230 = vmatprep.mubr.f32.mxu0 0.0
      %7231 = vmatmul.mubr.f32.gmra.mxu0 %v6881
      %v7232 = vpop.f32.mrf.mxu0
      %v7233 = vadd.f32 0.0, %v7232
      %v7234 = vpop.f32.mrf.mxu0
      %7235 = vmatprep.mubr.f32.mxu0 0.0
      %7236 = vmatmul.mubr.f32.gmra.mxu0 %v6884
      %v7237 = vpop.f32.mrf.mxu0
      %v7238 = vadd.f32 0.0, %v7237
      %v7239 = vpop.f32.mrf.mxu0
      %7240 = vmatprep.mubr.f32.mxu0 0.0
      %7241 = vmatmul.mubr.f32.gmra.mxu0 %v6887
      %v7242 = vpop.f32.mrf.mxu0
      %v7243 = vadd.f32 0.0, %v7242
      %v7244 = vpop.f32.mrf.mxu0
      %7245 = vmatprep.mubr.f32.mxu0 0.0
      %7246 = vmatmul.mubr.f32.gmra.mxu0 %v6890
      %v7247 = vpop.f32.mrf.mxu0
      %v7248 = vadd.f32 0.0, %v7247
      %v7249 = vpop.f32.mrf.mxu0
      %7250 = vmatprep.mubr.f32.mxu0 0.0
      %7251 = vmatmul.mubr.f32.gmra.mxu0 %v6893
      %v7252 = vpop.f32.mrf.mxu0
      %v7253 = vadd.f32 0.0, %v7252
      %v7254 = vpop.f32.mrf.mxu0
      %7255 = vmatprep.mubr.f32.mxu0 0.0
      %7256 = vmatmul.mubr.f32.gmra.mxu0 %v6896
      %v7257 = vpop.f32.mrf.mxu0
      %v7258 = vadd.f32 0.0, %v7257
      %v7259 = vpop.f32.mrf.mxu0
      %7260 = vmatprep.mubr.f32.mxu0 0.0
      %7261 = vmatmul.mubr.f32.gmra.mxu0 %v6899
      %v7262 = vpop.f32.mrf.mxu0
      %v7263 = vadd.f32 0.0, %v7262
      %v7264 = vpop.f32.mrf.mxu0
      %7265 = vmatprep.mubr.f32.mxu0 0.0
      %7266 = vmatmul.mubr.f32.gmra.mxu0 %v6902
      %v7267 = vpop.f32.mrf.mxu0
      %v7268 = vadd.f32 0.0, %v7267
      %v7269 = vpop.f32.mrf.mxu0
      %7270 = vmatprep.mubr.f32.mxu0 0.0
      %7271 = vmatmul.mubr.f32.gmra.mxu0 %v6905
      %v7272 = vpop.f32.mrf.mxu0
      %v7273 = vadd.f32 0.0, %v7272
      %v7274 = vpop.f32.mrf.mxu0
      %7275 = vmatprep.mubr.f32.mxu0 0.0
      %7276 = vmatmul.mubr.f32.gmra.mxu0 %v6908
      %v7277 = vpop.f32.mrf.mxu0
      %v7278 = vadd.f32 0.0, %v7277
      %v7279 = vpop.f32.mrf.mxu0
      %7280 = vmatprep.mubr.f32.mxu0 0.0
      %7281 = vmatmul.mubr.f32.gmra.mxu0 %v6911
      %v7282 = vpop.f32.mrf.mxu0
      %v7283 = vadd.f32 0.0, %v7282
      %v7284 = vpop.f32.mrf.mxu0
      %7285 = vmatprep.mubr.f32.mxu0 0.0
      %7286 = vmatmul.mubr.f32.gmra.mxu0 %v6914
      %v7287 = vpop.f32.mrf.mxu0
      %v7288 = vadd.f32 0.0, %v7287
      %v7289 = vpop.f32.mrf.mxu0
      %7290 = vmatprep.mubr.f32.mxu0 0.0
      %7291 = vmatmul.mubr.f32.gmra.mxu0 %v6917
      %v7292 = vpop.f32.mrf.mxu0
      %v7293 = vadd.f32 0.0, %v7292
      %v7294 = vpop.f32.mrf.mxu0
      %7295 = vmatprep.mubr.f32.mxu0 0.0
      %7296 = vmatmul.mubr.f32.gmra.mxu0 %v6920
      %v7297 = vpop.f32.mrf.mxu0
      %v7298 = vadd.f32 0.0, %v7297
      %v7299 = vpop.f32.mrf.mxu0
      %7300 = vmatprep.mubr.f32.mxu0 0.0
      %7301 = vmatmul.mubr.f32.gmra.mxu0 %v6923
      %v7302 = vpop.f32.mrf.mxu0
      %v7303 = vadd.f32 0.0, %v7302
      %v7304 = vpop.f32.mrf.mxu0
      %7305 = vmatprep.mubr.f32.mxu0 0.0
      %7306 = vmatmul.mubr.f32.gmra.mxu0 %v6926
      %v7307 = vpop.f32.mrf.mxu0
      %v7308 = vadd.f32 0.0, %v7307
      %v7309 = vpop.f32.mrf.mxu0
      %7310 = vmatprep.mubr.f32.mxu0 0.0
      %7311 = vmatmul.mubr.f32.gmra.mxu0 %v6929
      %v7312 = vpop.f32.mrf.mxu0
      %v7313 = vadd.f32 0.0, %v7312
      %v7314 = vpop.f32.mrf.mxu0
      %7315 = vdwg.mxu0
      %vm7316 = vcmask 31744
      %7317 = vst.msk [vmem:[%s280] sm:$0xff] %vm7316, %v6998
      %7318 = vst.msk [vmem:[%s280 + $0x8] sm:$0xff] %vm7316, %v7003
      %7319 = vst.msk [vmem:[%s280 + $0x10] sm:$0xff] %vm7316, %v7008
      %7320 = vst.msk [vmem:[%s280 + $0x18] sm:$0xff] %vm7316, %v7013
      %7321 = vst.msk [vmem:[%s280 + $0x20] sm:$0xff] %vm7316, %v7018
      %7322 = vst.msk [vmem:[%s280 + $0x28] sm:$0xff] %vm7316, %v7023
      %7323 = vst.msk [vmem:[%s280 + $0x30] sm:$0xff] %vm7316, %v7028
      %7324 = vst.msk [vmem:[%s280 + $0x38] sm:$0xff] %vm7316, %v7033
      %7325 = vst.msk [vmem:[%s280 + $0x40] sm:$0xff] %vm7316, %v7038
      %7326 = vst.msk [vmem:[%s280 + $0x48] sm:$0xff] %vm7316, %v7043
      %7327 = vst.msk [vmem:[%s280 + $0x50] sm:$0xff] %vm7316, %v7048
      %7328 = vst.msk [vmem:[%s280 + $0x58] sm:$0xff] %vm7316, %v7053
      %7329 = vst.msk [vmem:[%s280 + $0x60] sm:$0xff] %vm7316, %v7058
      %7330 = vst.msk [vmem:[%s280 + $0x68] sm:$0xff] %vm7316, %v7063
      %7331 = vst.msk [vmem:[%s280 + $0x70] sm:$0xff] %vm7316, %v7068
      %7332 = vst.msk [vmem:[%s280 + $0x78] sm:$0xff] %vm7316, %v7073
      %7333 = vst.msk [vmem:[%s280 + $0x80] sm:$0xff] %vm7316, %v7078
      %7334 = vst.msk [vmem:[%s280 + $0x88] sm:$0xff] %vm7316, %v7083
      %7335 = vst.msk [vmem:[%s280 + $0x90] sm:$0xff] %vm7316, %v7088
      %7336 = vst.msk [vmem:[%s280 + $0x98] sm:$0xff] %vm7316, %v7093
      %7337 = vst.msk [vmem:[%s280 + $0xa0] sm:$0xff] %vm7316, %v7098
      %7338 = vst.msk [vmem:[%s280 + $0xa8] sm:$0xff] %vm7316, %v7103
      %7339 = vst.msk [vmem:[%s280 + $0xb0] sm:$0xff] %vm7316, %v7108
      %7340 = vst.msk [vmem:[%s280 + $0xb8] sm:$0xff] %vm7316, %v7113
      %7341 = vst.msk [vmem:[%s280 + $0xc0] sm:$0xff] %vm7316, %v7118
      %7342 = vst.msk [vmem:[%s280 + $0xc8] sm:$0xff] %vm7316, %v7123
      %7343 = vst.msk [vmem:[%s280 + $0xd0] sm:$0xff] %vm7316, %v7128
      %7344 = vst.msk [vmem:[%s280 + $0xd8] sm:$0xff] %vm7316, %v7133
      %7345 = vst.msk [vmem:[%s280 + $0xe0] sm:$0xff] %vm7316, %v7138
      %7346 = vst.msk [vmem:[%s280 + $0xe8] sm:$0xff] %vm7316, %v7143
      %7347 = vst.msk [vmem:[%s280 + $0xf0] sm:$0xff] %vm7316, %v7148
      %7348 = vst.msk [vmem:[%s280 + $0xf8] sm:$0xff] %vm7316, %v7153
      %7349 = vst.msk [vmem:[%s280 + $0x100] sm:$0xff] %vm7316, %v7158
      %7350 = vst.msk [vmem:[%s280 + $0x108] sm:$0xff] %vm7316, %v7163
      %7351 = vst.msk [vmem:[%s280 + $0x110] sm:$0xff] %vm7316, %v7168
      %7352 = vst.msk [vmem:[%s280 + $0x118] sm:$0xff] %vm7316, %v7173
      %7353 = vst.msk [vmem:[%s280 + $0x120] sm:$0xff] %vm7316, %v7178
      %7354 = vst.msk [vmem:[%s280 + $0x128] sm:$0xff] %vm7316, %v7183
      %7355 = vst.msk [vmem:[%s280 + $0x130] sm:$0xff] %vm7316, %v7188
      %7356 = vst.msk [vmem:[%s280 + $0x138] sm:$0xff] %vm7316, %v7193
      %7357 = vst.msk [vmem:[%s280 + $0x140] sm:$0xff] %vm7316, %v7198
      %7358 = vst.msk [vmem:[%s280 + $0x148] sm:$0xff] %vm7316, %v7203
      %7359 = vst.msk [vmem:[%s280 + $0x150] sm:$0xff] %vm7316, %v7208
      %7360 = vst.msk [vmem:[%s280 + $0x158] sm:$0xff] %vm7316, %v7213
      %7361 = vst.msk [vmem:[%s280 + $0x160] sm:$0xff] %vm7316, %v7218
      %7362 = vst.msk [vmem:[%s280 + $0x168] sm:$0xff] %vm7316, %v7223
      %7363 = vst.msk [vmem:[%s280 + $0x170] sm:$0xff] %vm7316, %v7228
      %7364 = vst.msk [vmem:[%s280 + $0x178] sm:$0xff] %vm7316, %v7233
      %7365 = vst.msk [vmem:[%s280 + $0x180] sm:$0xff] %vm7316, %v7238
      %7366 = vst.msk [vmem:[%s280 + $0x188] sm:$0xff] %vm7316, %v7243
      %7367 = vst.msk [vmem:[%s280 + $0x190] sm:$0xff] %vm7316, %v7248
      %7368 = vst.msk [vmem:[%s280 + $0x198] sm:$0xff] %vm7316, %v7253
      %7369 = vst.msk [vmem:[%s280 + $0x1a0] sm:$0xff] %vm7316, %v7258
      %7370 = vst.msk [vmem:[%s280 + $0x1a8] sm:$0xff] %vm7316, %v7263
      %7371 = vst.msk [vmem:[%s280 + $0x1b0] sm:$0xff] %vm7316, %v7268
      %7372 = vst.msk [vmem:[%s280 + $0x1b8] sm:$0xff] %vm7316, %v7273
      %7373 = vst.msk [vmem:[%s280 + $0x1c0] sm:$0xff] %vm7316, %v7278
      %7374 = vst.msk [vmem:[%s280 + $0x1c8] sm:$0xff] %vm7316, %v7283
      %7375 = vst.msk [vmem:[%s280 + $0x1d0] sm:$0xff] %vm7316, %v7288
      %7376 = vst.msk [vmem:[%s280 + $0x1d8] sm:$0xff] %vm7316, %v7293
      %7377 = vst.msk [vmem:[%s280 + $0x1e0] sm:$0xff] %vm7316, %v7298
      %7378 = vst.msk [vmem:[%s280 + $0x1e8] sm:$0xff] %vm7316, %v7303
      %7379 = vst.msk [vmem:[%s280 + $0x1f0] sm:$0xff] %vm7316, %v7308
      %7380 = vst.msk [vmem:[%s280 + $0x1f8] sm:$0xff] %vm7316, %v7313
      %s7381 = smul.u32 64, %s18
      %p7382 = scmp.lt.s32.totalorder %s7381, 127
      %s7383 = scalar_select %p7382, %s7381, 127
      %s7384 = smul.addr %s7383, 8
      %s7385 = scalar_lea.vmem %s7, %s7384
      // Predicated region
      $region49: #{densegrid_mlp_forward.1} parent=47 // pred_check
        %p7386 = pneg %p188
      $region50: #{densegrid_mlp_forward.1} parent=47 // pred_check_branch
        %7388 = sbr.rel (%p7386) target = $region52
      $region51: #{densegrid_mlp_forward.1} parent=47 // pred_region
        %s7389 = smul.u32 64, %s18
      $region52: #{densegrid_mlp_forward.1} parent=47 // pred_fallthru
        _
    $region48: #{densegrid_mlp_forward.1} parent=5 // pred_fallthru
      _
    %p7390 = scmp.le.s32.totalorder 2, %s13
    // Predicated region
    $region53: #{densegrid_mlp_forward.1} parent=5 // pred_check
      %p7391 = pneg %p7390
    $region54: #{densegrid_mlp_forward.1} parent=5 // pred_check_branch
      %7393 = sbr.rel (%p7391) target = $region56
    $region55: #{densegrid_mlp_forward.1} parent=5 // pred_region
      %s7394 = ssub.s32 %s13, 2
      // Predicated region
      $region57: #{densegrid_mlp_forward.1} parent=55 // pred_check
        %p7395 = pneg %p194
      $region58: #{densegrid_mlp_forward.1} parent=55 // pred_check_branch
        %7397 = sbr.rel (%p7395) target = $region60
      $region59: #{densegrid_mlp_forward.1} parent=55 // pred_region
        %s7398 = smul.u32 64, %s19
        %p7399 = scmp.lt.s32.totalorder %s7398, 127
        %s7400 = scalar_select %p7399, %s7398, 127
        %s7401 = smul.addr %s7400, 8
        %s7402 = scalar_lea.vmem %s7, %s7401
      $region60: #{densegrid_mlp_forward.1} parent=55 // pred_fallthru
        _
    $region56: #{densegrid_mlp_forward.1} parent=5 // pred_fallthru
      _
  $region6: #{densegrid_mlp_forward.1} parent=0 // loop_footer
    %s17 = sadd.s32 1, %s13
  $region7: #{densegrid_mlp_forward.1} parent=0 // loop_footer_branch
    %12 = sbr.rel target = $region3
  $region8: #{densegrid_mlp_forward.1} parent=0 // loop_exit
    _

</llo_original>
